<compile_context>
chip_gen: v6e
topology: v6e:2x2x1
jax: 0.10.0
libtpu: 0.0.40
codegen_flags: <defaults>
</compile_context>

<pallas_src>
import math

import jax
import jax.numpy as jnp
from jax.experimental import pallas as pl
from jax.experimental.pallas import tpu as pltpu

Z_DIM = 32
HIDDEN = 32
N_ATT_LAYERS = 2
USE_RES = True
USE_FED = True
LEAKY_SLOPE = 0.01      # nn.LeakyReLU default
LN_EPS = 1e-5           # nn.LayerNorm default

# ---- packed-parameter slab row offsets --------------------------------------
_W32_LAYER = 7 * Z_DIM                      # per layer: Wqkv (3Z rows) + W1 (4Z rows)
_W32_WL0 = N_ATT_LAYERS * _W32_LAYER        # Wl[:, :Z]
_W32_WL1 = _W32_WL0 + HIDDEN                # Wl[:, Z:]
_W32_ROWS = _W32_WL1 + HIDDEN

_VEC_LAYER = 12 * Z_DIM                     # bqkv(3Z) g1(Z) be1(Z) b1(4Z) b2(Z) g2(Z) be2(Z)
_VEC_BL = N_ATT_LAYERS * _VEC_LAYER
_VEC_WO = _VEC_BL + HIDDEN
_VEC_BO = _VEC_WO + HIDDEN
_VEC_ROWS = (_VEC_BO + 1 + 7) // 8 * 8


def _round_up(x, m):
    return (x + m - 1) // m * m


def _leaky_relu(x):
    return jnp.where(x >= 0, x, LEAKY_SLOPE * x)


def _layernorm_feat(x, g, b):
    """LayerNorm over the feature (sublane) axis of a (Z, TB) slab."""
    mu = jnp.mean(x, axis=0, keepdims=True)
    var = jnp.mean((x - mu) ** 2, axis=0, keepdims=True)
    return (x - mu) * jax.lax.rsqrt(var + LN_EPS) * g + b


def mixnet_kernel(x0_ref, x1_ref, w32_ref, w128_ref, vec_ref, out_ref):
    Z = Z_DIM
    x0 = x0_ref[...]            # (Z, TB) -- forward_rep  (virtual seq position 0)
    x1 = x1_ref[...]            # (Z, TB) -- backward_rep (virtual seq position 1)
    inv_sqrt_z = 1.0 / math.sqrt(Z)

    for l in range(N_ATT_LAYERS):
        wb = l * _W32_LAYER
        vb = l * _VEC_LAYER
        wqkv = w32_ref[wb:wb + 3 * Z, :]                     # (3Z, Z)
        w1 = w32_ref[wb + 3 * Z:wb + 7 * Z, :]               # (4Z, Z)
        w2 = w128_ref[l * Z:(l + 1) * Z, :]                  # (Z, 4Z)
        bqkv = vec_ref[vb:vb + 3 * Z, :]                     # (3Z, 1)
        g1 = vec_ref[vb + 3 * Z:vb + 4 * Z, :]
        be1 = vec_ref[vb + 4 * Z:vb + 5 * Z, :]
        b1 = vec_ref[vb + 5 * Z:vb + 9 * Z, :]               # (4Z, 1)
        b2 = vec_ref[vb + 9 * Z:vb + 10 * Z, :]
        g2 = vec_ref[vb + 10 * Z:vb + 11 * Z, :]
        be2 = vec_ref[vb + 11 * Z:vb + 12 * Z, :]

        # Fused Q|K|V projection: one (3Z, Z) x (Z, TB) matmul per position.
        qkv0 = jnp.dot(wqkv, x0, preferred_element_type=jnp.float32) + bqkv
        qkv1 = jnp.dot(wqkv, x1, preferred_element_type=jnp.float32) + bqkv
        q0, k0, v0 = qkv0[0:Z], qkv0[Z:2 * Z], qkv0[2 * Z:3 * Z]
        q1, k1, v1 = qkv1[0:Z], qkv1[Z:2 * Z], qkv1[2 * Z:3 * Z]

        # 2x2 attention scores per batch column (sublane reduces on the VPU/XLU).
        s00 = jnp.sum(q0 * k0, axis=0, keepdims=True) * inv_sqrt_z   # (1, TB)
        s01 = jnp.sum(q0 * k1, axis=0, keepdims=True) * inv_sqrt_z
        s10 = jnp.sum(q1 * k0, axis=0, keepdims=True) * inv_sqrt_z
        s11 = jnp.sum(q1 * k1, axis=0, keepdims=True) * inv_sqrt_z

        # softmax over a length-2 key axis == sigmoid of the score difference.
        a00 = jax.nn.sigmoid(s00 - s01)
        a10 = jax.nn.sigmoid(s10 - s11)
        o0 = a00 * v0 + (1.0 - a00) * v1
        o1 = a10 * v0 + (1.0 - a10) * v1

        if USE_RES:
            x0 = x0 + o0
            x1 = x1 + o1
        else:
            x0, x1 = o0, o1

        x0 = _layernorm_feat(x0, g1, be1)
        x1 = _layernorm_feat(x1, g1, be1)
        # nn.Dropout -> identity at inference time.

        if USE_FED:
            # Two stacked Linear layers (no activation in between, per the module).
            h0 = jnp.dot(w1, x0, preferred_element_type=jnp.float32) + b1
            h1 = jnp.dot(w1, x1, preferred_element_type=jnp.float32) + b1
            x0 = jnp.dot(w2, h0, preferred_element_type=jnp.float32) + b2
            x1 = jnp.dot(w2, h1, preferred_element_type=jnp.float32) + b2
            x0 = _layernorm_feat(x0, g2, be2)
            x1 = _layernorm_feat(x1, g2, be2)

    # combined_output = cat(x0, x1, feature-axis) @ Wl^T + bl  (split matmul).
    wl0 = w32_ref[_W32_WL0:_W32_WL0 + HIDDEN, :]
    wl1 = w32_ref[_W32_WL1:_W32_WL1 + HIDDEN, :]
    bl = vec_ref[_VEC_BL:_VEC_BL + HIDDEN, :]
    h = (jnp.dot(wl0, x0, preferred_element_type=jnp.float32)
         + jnp.dot(wl1, x1, preferred_element_type=jnp.float32) + bl)
    h = _leaky_relu(h)                                       # (HIDDEN, TB)

    # hidden -> 1 head as a VPU multiply + sublane reduce (avoids an N=1 matmul).
    wo = vec_ref[_VEC_WO:_VEC_WO + HIDDEN, :]                # (HIDDEN, 1)
    bo = vec_ref[_VEC_BO:_VEC_BO + 1, :]                     # (1, 1)
    out = jnp.sum(h * wo, axis=0, keepdims=True) + bo        # (1, TB)
    # Lane-dense, unmasked store: replicate across the 8 output sublanes.
    out_ref[...] = jnp.broadcast_to(out, out_ref.shape).astype(out_ref.dtype)


def mixnet_forward(forward_rep, backward_rep, packed, tb=None):
    """forward_rep/backward_rep: (B, Z) f32.  Returns (B, 1) f32."""
    w32, w128, vecs = packed
    B = forward_rep.shape[0]
    if tb is None:
        tb = min(_round_up(B, 128), 512)      # lane-aligned batch tile
    Bp = _round_up(B, tb)

    x0 = forward_rep.T.astype(jnp.float32)    # feature-major: (Z, B)
    x1 = backward_rep.T.astype(jnp.float32)
    if Bp != B:
        pad = ((0, 0), (0, Bp - B))
        x0 = jnp.pad(x0, pad)
        x1 = jnp.pad(x1, pad)

    grid = (Bp // tb,)
    out = pl.pallas_call(
        mixnet_kernel,
        out_shape=jax.ShapeDtypeStruct((8, Bp), jnp.float32),
        grid=grid,
        in_specs=[
            pl.BlockSpec((Z_DIM, tb), lambda i: (0, i)),
            pl.BlockSpec((Z_DIM, tb), lambda i: (0, i)),
            # Parameter slabs: constant block index -> resident in VMEM across steps.
            pl.BlockSpec(w32.shape, lambda i: (0, 0)),
            pl.BlockSpec(w128.shape, lambda i: (0, 0)),
            pl.BlockSpec(vecs.shape, lambda i: (0, 0)),
        ],
        out_specs=pl.BlockSpec((8, tb), lambda i: (0, i)),
        compiler_params=pltpu.CompilerParams(
            dimension_semantics=("parallel",),
            vmem_limit_bytes=32 * 1024 * 1024,
        ),
    )(x0, x1, w32, w128, vecs)
    return out[0, :B].reshape(B, 1)


def make_params(key):
    """Parameters in torch layout (weight: (out, in), bias: (out,)), mirroring
    weight_init (orthogonal weights, zero biases)."""
    # TODO(synk): torch's nn.init.orthogonal_ sampling is not bit-reproduced here;
    # jax's orthogonal initializer is semantically equivalent.
    orth = jax.nn.initializers.orthogonal()
    keys = iter(jax.random.split(key, 64))

    def lin(din, dout):
        w = orth(next(keys), (dout, din), jnp.float32)
        b = jnp.zeros((dout,), jnp.float32)
        return w, b

    layers = []
    for _ in range(N_ATT_LAYERS):
        wq, bq = lin(Z_DIM, Z_DIM)
        wk, bk = lin(Z_DIM, Z_DIM)
        wv, bv = lin(Z_DIM, Z_DIM)
        layer = dict(wq=wq, bq=bq, wk=wk, bk=bk, wv=wv, bv=bv,
                     g1=jnp.ones((Z_DIM,), jnp.float32),
                     be1=jnp.zeros((Z_DIM,), jnp.float32))
        if USE_FED:
            w1, b1 = lin(Z_DIM, 4 * Z_DIM)
            w2, b2 = lin(4 * Z_DIM, Z_DIM)
            layer.update(w1=w1, b1=b1, w2=w2, b2=b2,
                         g2=jnp.ones((Z_DIM,), jnp.float32),
                         be2=jnp.zeros((Z_DIM,), jnp.float32))
        layers.append(layer)
    wl, bl = lin(2 * Z_DIM, HIDDEN)
    wo, bo = lin(HIDDEN, 1)
    return dict(layers=layers, wl=wl, bl=bl, wo=wo, bo=bo)


def pack_params(p):
    """Pack all parameters into 3 VMEM-friendly slabs:
         w32  : (512, 32)  -- all weights whose input (contracting) dim is Z
         w128 : (64, 128)  -- FFN down-projection weights (input dim 4Z)
         vecs : (840, 1)   -- every bias / gamma / beta / head vector."""
    rows32, rows128, vec = [], [], []
    for lp in p["layers"]:
        rows32.append(jnp.concatenate([lp["wq"], lp["wk"], lp["wv"]], axis=0))
        rows32.append(lp["w1"])
        rows128.append(lp["w2"])
        vec += [lp["bq"], lp["bk"], lp["bv"], lp["g1"], lp["be1"],
                lp["b1"], lp["b2"], lp["g2"], lp["be2"]]
    rows32.append(p["wl"][:, :Z_DIM])            # Wl split for the concat-matmul
    rows32.append(p["wl"][:, Z_DIM:])
    vec += [p["bl"], p["wo"][0], p["bo"]]

    w32 = jnp.concatenate(rows32, axis=0)
    w128 = jnp.concatenate(rows128, axis=0)
    v = jnp.concatenate(vec)
    v = jnp.pad(v, (0, _VEC_ROWS - v.shape[0]))
    vecs = v.reshape(_VEC_ROWS, 1)
    assert w32.shape == (_W32_ROWS, Z_DIM), w32.shape
    assert w128.shape == (N_ATT_LAYERS * Z_DIM, 4 * Z_DIM), w128.shape
    return w32, w128, vecs


def _layernorm_last(x, g, b):
    mu = jnp.mean(x, axis=-1, keepdims=True)
    var = jnp.mean((x - mu) ** 2, axis=-1, keepdims=True)
    return (x - mu) * jax.lax.rsqrt(var + LN_EPS) * g + b


def reference_forward(fwd, bwd, p):
    """Pure-JAX reference of the PyTorch forward (eval mode)."""
    x = jnp.stack([fwd, bwd], axis=1)                        # (B, 2, Z)
    for lp in p["layers"]:
        Q = x @ lp["wq"].T + lp["bq"]
        K = x @ lp["wk"].T + lp["bk"]
        V = x @ lp["wv"].T + lp["bv"]
        s = jnp.einsum('bqd,bkd->bqk', Q, K) / math.sqrt(Z_DIM)
        a = jax.nn.softmax(s, axis=-1)
        o = jnp.einsum('bqk,bkd->bqd', a, V)
        x = x + o if USE_RES else o
        x = _layernorm_last(x, lp["g1"], lp["be1"])
        if USE_FED:
            x = (x @ lp["w1"].T + lp["b1"]) @ lp["w2"].T + lp["b2"]
            x = _layernorm_last(x, lp["g2"], lp["be2"])
    co = jnp.concatenate([x[:, 0, :], x[:, 1, :]], axis=-1)
    h = _leaky_relu(co @ p["wl"].T + p["bl"])
    return h @ p["wo"].T + p["bo"]


if __name__ == "__main__":
    B = 8
    key = jax.random.PRNGKey(0)
    k_fwd, k_bwd, k_par = jax.random.split(key, 3)
    forward_rep = jax.random.normal(k_fwd, (B, Z_DIM), jnp.float32)
    backward_rep = jax.random.normal(k_bwd, (B, Z_DIM), jnp.float32)
    params = make_params(k_par)
    packed = pack_params(params)

    out = jax.block_until_ready(mixnet_forward(forward_rep, backward_rep, packed))
    ref = reference_forward(forward_rep, backward_rep, params)
    assert out.shape == (B, 1)
    assert jnp.allclose(out, ref, rtol=1e-4, atol=1e-4), (out, ref)

    # Also exercise the multi-tile (grid > 1) path with batch padding.
    B2 = 260
    kf2, kb2 = jax.random.split(jax.random.PRNGKey(1))
    f2 = jax.random.normal(kf2, (B2, Z_DIM), jnp.float32)
    r2 = jax.random.normal(kb2, (B2, Z_DIM), jnp.float32)
    out2 = jax.block_until_ready(mixnet_forward(f2, r2, packed, tb=128))
    ref2 = reference_forward(f2, r2, params)
    assert out2.shape == (B2, 1)
    assert jnp.allclose(out2, ref2, rtol=1e-4, atol=1e-4), (out2, ref2)

    print("KERNEL_OK")
</pallas_src>

<mosaic_0001>
module attributes {stable_mosaic.version = 11 : i64} {
  func.func @mixnet_kernel(%arg0: i32, %arg1: memref<32x128xf32, #tpu.memory_space<vmem>>, %arg2: memref<32x128xf32, #tpu.memory_space<vmem>>, %arg3: memref<512x32xf32, #tpu.memory_space<vmem>>, %arg4: memref<64x128xf32, #tpu.memory_space<vmem>>, %arg5: memref<840x1xf32, #tpu.memory_space<vmem>>, %arg6: memref<8x128xf32, #tpu.memory_space<vmem>>) attributes {dimension_semantics = [#tpu.dimension_semantics<parallel>], iteration_bounds = array<i64: 1>, scalar_prefetch = 0 : i64, scratch_operands = 0 : i64, tpu.core_type = #tpu.core_type<tc>, window_params = [{transform_indices = @transform_0, window_bounds = array<i64: 32, 128>}, {transform_indices = @transform_1, window_bounds = array<i64: 32, 128>}, {pipeline_mode = #tpu.pipeline_mode<synchronous>, transform_indices = @transform_2, window_bounds = array<i64: 512, 32>}, {pipeline_mode = #tpu.pipeline_mode<synchronous>, transform_indices = @transform_3, window_bounds = array<i64: 64, 128>}, {pipeline_mode = #tpu.pipeline_mode<synchronous>, transform_indices = @transform_4, window_bounds = array<i64: 840, 1>}, {transform_indices = @transform_5, window_bounds = array<i64: 8, 128>}]} {
    %c0 = arith.constant 0 : index
    %c0_0 = arith.constant 0 : index
    %0 = vector.load %arg1[%c0, %c0_0] : memref<32x128xf32, #tpu.memory_space<vmem>>, vector<32x128xf32>
    %c0_1 = arith.constant 0 : index
    %c0_2 = arith.constant 0 : index
    %1 = vector.load %arg2[%c0_1, %c0_2] : memref<32x128xf32, #tpu.memory_space<vmem>>, vector<32x128xf32>
    %c0_3 = arith.constant 0 : index
    %c0_4 = arith.constant 0 : index
    %2 = vector.load %arg3[%c0_3, %c0_4] : memref<512x32xf32, #tpu.memory_space<vmem>>, vector<96x32xf32>
    %c96 = arith.constant 96 : index
    %c0_5 = arith.constant 0 : index
    %3 = vector.load %arg3[%c96, %c0_5] : memref<512x32xf32, #tpu.memory_space<vmem>>, vector<128x32xf32>
    %c0_6 = arith.constant 0 : index
    %c0_7 = arith.constant 0 : index
    %4 = vector.load %arg4[%c0_6, %c0_7] : memref<64x128xf32, #tpu.memory_space<vmem>>, vector<32x128xf32>
    %c0_8 = arith.constant 0 : index
    %c0_9 = arith.constant 0 : index
    %5 = vector.load %arg5[%c0_8, %c0_9] : memref<840x1xf32, #tpu.memory_space<vmem>>, vector<96x1xf32>
    %c96_10 = arith.constant 96 : index
    %c0_11 = arith.constant 0 : index
    %6 = vector.load %arg5[%c96_10, %c0_11] : memref<840x1xf32, #tpu.memory_space<vmem>>, vector<32x1xf32>
    %c128 = arith.constant 128 : index
    %c0_12 = arith.constant 0 : index
    %7 = vector.load %arg5[%c128, %c0_12] : memref<840x1xf32, #tpu.memory_space<vmem>>, vector<32x1xf32>
    %c160 = arith.constant 160 : index
    %c0_13 = arith.constant 0 : index
    %8 = vector.load %arg5[%c160, %c0_13] : memref<840x1xf32, #tpu.memory_space<vmem>>, vector<128x1xf32>
    %c288 = arith.constant 288 : index
    %c0_14 = arith.constant 0 : index
    %9 = vector.load %arg5[%c288, %c0_14] : memref<840x1xf32, #tpu.memory_space<vmem>>, vector<32x1xf32>
    %c320 = arith.constant 320 : index
    %c0_15 = arith.constant 0 : index
    %10 = vector.load %arg5[%c320, %c0_15] : memref<840x1xf32, #tpu.memory_space<vmem>>, vector<32x1xf32>
    %c352 = arith.constant 352 : index
    %c0_16 = arith.constant 0 : index
    %11 = vector.load %arg5[%c352, %c0_16] : memref<840x1xf32, #tpu.memory_space<vmem>>, vector<32x1xf32>
    %cst = arith.constant dense<0.000000e+00> : vector<96x128xf32>
    %12 = tpu.matmul %2, %0, %cst {dimension_numbers = #tpu.dot_dimension_numbers<[1], [0], [0], [1], [0, 0, 1, 1], [], []>} : vector<96x32xf32>, vector<32x128xf32>, vector<96x128xf32> -> vector<96x128xf32>
    %13 = vector.broadcast %5 : vector<96x1xf32> to vector<96x128xf32>
    %14 = arith.addf %12, %13 : vector<96x128xf32>
    %cst_17 = arith.constant dense<0.000000e+00> : vector<96x128xf32>
    %15 = tpu.matmul %2, %1, %cst_17 {dimension_numbers = #tpu.dot_dimension_numbers<[1], [0], [0], [1], [0, 0, 1, 1], [], []>} : vector<96x32xf32>, vector<32x128xf32>, vector<96x128xf32> -> vector<96x128xf32>
    %16 = vector.broadcast %5 : vector<96x1xf32> to vector<96x128xf32>
    %17 = arith.addf %15, %16 : vector<96x128xf32>
    %18 = vector.extract_strided_slice %14 {offsets = [0, 0], sizes = [32, 128], strides = [1, 1]} : vector<96x128xf32> to vector<32x128xf32>
    %19 = vector.extract_strided_slice %14 {offsets = [32, 0], sizes = [32, 128], strides = [1, 1]} : vector<96x128xf32> to vector<32x128xf32>
    %20 = vector.extract_strided_slice %14 {offsets = [64, 0], sizes = [32, 128], strides = [1, 1]} : vector<96x128xf32> to vector<32x128xf32>
    %21 = vector.extract_strided_slice %17 {offsets = [0, 0], sizes = [32, 128], strides = [1, 1]} : vector<96x128xf32> to vector<32x128xf32>
    %22 = vector.extract_strided_slice %17 {offsets = [32, 0], sizes = [32, 128], strides = [1, 1]} : vector<96x128xf32> to vector<32x128xf32>
    %23 = vector.extract_strided_slice %17 {offsets = [64, 0], sizes = [32, 128], strides = [1, 1]} : vector<96x128xf32> to vector<32x128xf32>
    %24 = arith.mulf %18, %19 : vector<32x128xf32>
    %cst_18 = arith.constant dense<0.000000e+00> : vector<128xf32>
    %25 = vector.multi_reduction <add>, %24, %cst_18 [0] : vector<32x128xf32> to vector<128xf32>
    %26 = vector.shape_cast %25 : vector<128xf32> to vector<1x128xf32>
    %cst_19 = arith.constant 0.176776692 : f32
    %27 = vector.broadcast %cst_19 : f32 to vector<1x128xf32>
    %28 = arith.mulf %26, %27 : vector<1x128xf32>
    %29 = arith.mulf %18, %22 : vector<32x128xf32>
    %cst_20 = arith.constant dense<0.000000e+00> : vector<128xf32>
    %30 = vector.multi_reduction <add>, %29, %cst_20 [0] : vector<32x128xf32> to vector<128xf32>
    %31 = vector.shape_cast %30 : vector<128xf32> to vector<1x128xf32>
    %cst_21 = arith.constant 0.176776692 : f32
    %32 = vector.broadcast %cst_21 : f32 to vector<1x128xf32>
    %33 = arith.mulf %31, %32 : vector<1x128xf32>
    %34 = arith.mulf %21, %19 : vector<32x128xf32>
    %cst_22 = arith.constant dense<0.000000e+00> : vector<128xf32>
    %35 = vector.multi_reduction <add>, %34, %cst_22 [0] : vector<32x128xf32> to vector<128xf32>
    %36 = vector.shape_cast %35 : vector<128xf32> to vector<1x128xf32>
    %cst_23 = arith.constant 0.176776692 : f32
    %37 = vector.broadcast %cst_23 : f32 to vector<1x128xf32>
    %38 = arith.mulf %36, %37 : vector<1x128xf32>
    %39 = arith.mulf %21, %22 : vector<32x128xf32>
    %cst_24 = arith.constant dense<0.000000e+00> : vector<128xf32>
    %40 = vector.multi_reduction <add>, %39, %cst_24 [0] : vector<32x128xf32> to vector<128xf32>
    %41 = vector.shape_cast %40 : vector<128xf32> to vector<1x128xf32>
    %cst_25 = arith.constant 0.176776692 : f32
    %42 = vector.broadcast %cst_25 : f32 to vector<1x128xf32>
    %43 = arith.mulf %41, %42 : vector<1x128xf32>
    %44 = arith.subf %28, %33 : vector<1x128xf32>
    %45 = arith.negf %44 : vector<1x128xf32>
    %46 = math.exp %45 : vector<1x128xf32>
    %cst_26 = arith.constant 1.000000e+00 : f32
    %47 = vector.broadcast %cst_26 : f32 to vector<1x128xf32>
    %48 = arith.addf %47, %46 : vector<1x128xf32>
    %49 = arith.divf %47, %48 : vector<1x128xf32>
    %50 = arith.subf %38, %43 : vector<1x128xf32>
    %51 = arith.negf %50 : vector<1x128xf32>
    %52 = math.exp %51 : vector<1x128xf32>
    %cst_27 = arith.constant 1.000000e+00 : f32
    %53 = vector.broadcast %cst_27 : f32 to vector<1x128xf32>
    %54 = arith.addf %53, %52 : vector<1x128xf32>
    %55 = arith.divf %53, %54 : vector<1x128xf32>
    %56 = vector.broadcast %49 : vector<1x128xf32> to vector<32x128xf32>
    %57 = arith.mulf %56, %20 : vector<32x128xf32>
    %cst_28 = arith.constant 1.000000e+00 : f32
    %58 = vector.broadcast %cst_28 : f32 to vector<1x128xf32>
    %59 = arith.subf %58, %49 : vector<1x128xf32>
    %60 = vector.broadcast %59 : vector<1x128xf32> to vector<32x128xf32>
    %61 = arith.mulf %60, %23 : vector<32x128xf32>
    %62 = arith.addf %57, %61 : vector<32x128xf32>
    %63 = vector.broadcast %55 : vector<1x128xf32> to vector<32x128xf32>
    %64 = arith.mulf %63, %20 : vector<32x128xf32>
    %cst_29 = arith.constant 1.000000e+00 : f32
    %65 = vector.broadcast %cst_29 : f32 to vector<1x128xf32>
    %66 = arith.subf %65, %55 : vector<1x128xf32>
    %67 = vector.broadcast %66 : vector<1x128xf32> to vector<32x128xf32>
    %68 = arith.mulf %67, %23 : vector<32x128xf32>
    %69 = arith.addf %64, %68 : vector<32x128xf32>
    %70 = arith.addf %0, %62 : vector<32x128xf32>
    %71 = arith.addf %1, %69 : vector<32x128xf32>
    %cst_30 = arith.constant dense<0.000000e+00> : vector<128xf32>
    %72 = vector.multi_reduction <add>, %70, %cst_30 [0] : vector<32x128xf32> to vector<128xf32>
    %73 = vector.shape_cast %72 : vector<128xf32> to vector<1x128xf32>
    %cst_31 = arith.constant 3.200000e+01 : f32
    %74 = vector.broadcast %cst_31 : f32 to vector<1x128xf32>
    %75 = arith.divf %73, %74 : vector<1x128xf32>
    %76 = vector.broadcast %75 : vector<1x128xf32> to vector<32x128xf32>
    %77 = arith.subf %70, %76 : vector<32x128xf32>
    %78 = arith.mulf %77, %77 : vector<32x128xf32>
    %cst_32 = arith.constant dense<0.000000e+00> : vector<128xf32>
    %79 = vector.multi_reduction <add>, %78, %cst_32 [0] : vector<32x128xf32> to vector<128xf32>
    %80 = vector.shape_cast %79 : vector<128xf32> to vector<1x128xf32>
    %cst_33 = arith.constant 3.200000e+01 : f32
    %81 = vector.broadcast %cst_33 : f32 to vector<1x128xf32>
    %82 = arith.divf %80, %81 : vector<1x128xf32>
    %83 = vector.broadcast %75 : vector<1x128xf32> to vector<32x128xf32>
    %84 = arith.subf %70, %83 : vector<32x128xf32>
    %cst_34 = arith.constant 9.99999974E-6 : f32
    %85 = vector.broadcast %cst_34 : f32 to vector<1x128xf32>
    %86 = arith.addf %82, %85 : vector<1x128xf32>
    %87 = math.rsqrt %86 : vector<1x128xf32>
    %88 = vector.broadcast %87 : vector<1x128xf32> to vector<32x128xf32>
    %89 = arith.mulf %84, %88 : vector<32x128xf32>
    %90 = vector.broadcast %6 : vector<32x1xf32> to vector<32x128xf32>
    %91 = arith.mulf %89, %90 : vector<32x128xf32>
    %92 = vector.broadcast %7 : vector<32x1xf32> to vector<32x128xf32>
    %93 = arith.addf %91, %92 : vector<32x128xf32>
    %cst_35 = arith.constant dense<0.000000e+00> : vector<128xf32>
    %94 = vector.multi_reduction <add>, %71, %cst_35 [0] : vector<32x128xf32> to vector<128xf32>
    %95 = vector.shape_cast %94 : vector<128xf32> to vector<1x128xf32>
    %cst_36 = arith.constant 3.200000e+01 : f32
    %96 = vector.broadcast %cst_36 : f32 to vector<1x128xf32>
    %97 = arith.divf %95, %96 : vector<1x128xf32>
    %98 = vector.broadcast %97 : vector<1x128xf32> to vector<32x128xf32>
    %99 = arith.subf %71, %98 : vector<32x128xf32>
    %100 = arith.mulf %99, %99 : vector<32x128xf32>
    %cst_37 = arith.constant dense<0.000000e+00> : vector<128xf32>
    %101 = vector.multi_reduction <add>, %100, %cst_37 [0] : vector<32x128xf32> to vector<128xf32>
    %102 = vector.shape_cast %101 : vector<128xf32> to vector<1x128xf32>
    %cst_38 = arith.constant 3.200000e+01 : f32
    %103 = vector.broadcast %cst_38 : f32 to vector<1x128xf32>
    %104 = arith.divf %102, %103 : vector<1x128xf32>
    %105 = vector.broadcast %97 : vector<1x128xf32> to vector<32x128xf32>
    %106 = arith.subf %71, %105 : vector<32x128xf32>
    %cst_39 = arith.constant 9.99999974E-6 : f32
    %107 = vector.broadcast %cst_39 : f32 to vector<1x128xf32>
    %108 = arith.addf %104, %107 : vector<1x128xf32>
    %109 = math.rsqrt %108 : vector<1x128xf32>
    %110 = vector.broadcast %109 : vector<1x128xf32> to vector<32x128xf32>
    %111 = arith.mulf %106, %110 : vector<32x128xf32>
    %112 = vector.broadcast %6 : vector<32x1xf32> to vector<32x128xf32>
    %113 = arith.mulf %111, %112 : vector<32x128xf32>
    %114 = vector.broadcast %7 : vector<32x1xf32> to vector<32x128xf32>
    %115 = arith.addf %113, %114 : vector<32x128xf32>
    %cst_40 = arith.constant dense<0.000000e+00> : vector<128x128xf32>
    %116 = tpu.matmul %3, %93, %cst_40 {dimension_numbers = #tpu.dot_dimension_numbers<[1], [0], [0], [1], [0, 0, 1, 1], [], []>} : vector<128x32xf32>, vector<32x128xf32>, vector<128x128xf32> -> vector<128x128xf32>
    %117 = vector.broadcast %8 : vector<128x1xf32> to vector<128x128xf32>
    %118 = arith.addf %116, %117 : vector<128x128xf32>
    %cst_41 = arith.constant dense<0.000000e+00> : vector<128x128xf32>
    %119 = tpu.matmul %3, %115, %cst_41 {dimension_numbers = #tpu.dot_dimension_numbers<[1], [0], [0], [1], [0, 0, 1, 1], [], []>} : vector<128x32xf32>, vector<32x128xf32>, vector<128x128xf32> -> vector<128x128xf32>
    %120 = vector.broadcast %8 : vector<128x1xf32> to vector<128x128xf32>
    %121 = arith.addf %119, %120 : vector<128x128xf32>
    %cst_42 = arith.constant dense<0.000000e+00> : vector<32x128xf32>
    %122 = tpu.matmul %4, %118, %cst_42 {dimension_numbers = #tpu.dot_dimension_numbers<[1], [0], [0], [1], [0, 0, 1, 1], [], []>} : vector<32x128xf32>, vector<128x128xf32>, vector<32x128xf32> -> vector<32x128xf32>
    %123 = vector.broadcast %9 : vector<32x1xf32> to vector<32x128xf32>
    %124 = arith.addf %122, %123 : vector<32x128xf32>
    %cst_43 = arith.constant dense<0.000000e+00> : vector<32x128xf32>
    %125 = tpu.matmul %4, %121, %cst_43 {dimension_numbers = #tpu.dot_dimension_numbers<[1], [0], [0], [1], [0, 0, 1, 1], [], []>} : vector<32x128xf32>, vector<128x128xf32>, vector<32x128xf32> -> vector<32x128xf32>
    %126 = vector.broadcast %9 : vector<32x1xf32> to vector<32x128xf32>
    %127 = arith.addf %125, %126 : vector<32x128xf32>
    %cst_44 = arith.constant dense<0.000000e+00> : vector<128xf32>
    %128 = vector.multi_reduction <add>, %124, %cst_44 [0] : vector<32x128xf32> to vector<128xf32>
    %129 = vector.shape_cast %128 : vector<128xf32> to vector<1x128xf32>
    %cst_45 = arith.constant 3.200000e+01 : f32
    %130 = vector.broadcast %cst_45 : f32 to vector<1x128xf32>
    %131 = arith.divf %129, %130 : vector<1x128xf32>
    %132 = vector.broadcast %131 : vector<1x128xf32> to vector<32x128xf32>
    %133 = arith.subf %124, %132 : vector<32x128xf32>
    %134 = arith.mulf %133, %133 : vector<32x128xf32>
    %cst_46 = arith.constant dense<0.000000e+00> : vector<128xf32>
    %135 = vector.multi_reduction <add>, %134, %cst_46 [0] : vector<32x128xf32> to vector<128xf32>
    %136 = vector.shape_cast %135 : vector<128xf32> to vector<1x128xf32>
    %cst_47 = arith.constant 3.200000e+01 : f32
    %137 = vector.broadcast %cst_47 : f32 to vector<1x128xf32>
    %138 = arith.divf %136, %137 : vector<1x128xf32>
    %139 = vector.broadcast %131 : vector<1x128xf32> to vector<32x128xf32>
    %140 = arith.subf %124, %139 : vector<32x128xf32>
    %cst_48 = arith.constant 9.99999974E-6 : f32
    %141 = vector.broadcast %cst_48 : f32 to vector<1x128xf32>
    %142 = arith.addf %138, %141 : vector<1x128xf32>
    %143 = math.rsqrt %142 : vector<1x128xf32>
    %144 = vector.broadcast %143 : vector<1x128xf32> to vector<32x128xf32>
    %145 = arith.mulf %140, %144 : vector<32x128xf32>
    %146 = vector.broadcast %10 : vector<32x1xf32> to vector<32x128xf32>
    %147 = arith.mulf %145, %146 : vector<32x128xf32>
    %148 = vector.broadcast %11 : vector<32x1xf32> to vector<32x128xf32>
    %149 = arith.addf %147, %148 : vector<32x128xf32>
    %cst_49 = arith.constant dense<0.000000e+00> : vector<128xf32>
    %150 = vector.multi_reduction <add>, %127, %cst_49 [0] : vector<32x128xf32> to vector<128xf32>
    %151 = vector.shape_cast %150 : vector<128xf32> to vector<1x128xf32>
    %cst_50 = arith.constant 3.200000e+01 : f32
    %152 = vector.broadcast %cst_50 : f32 to vector<1x128xf32>
    %153 = arith.divf %151, %152 : vector<1x128xf32>
    %154 = vector.broadcast %153 : vector<1x128xf32> to vector<32x128xf32>
    %155 = arith.subf %127, %154 : vector<32x128xf32>
    %156 = arith.mulf %155, %155 : vector<32x128xf32>
    %cst_51 = arith.constant dense<0.000000e+00> : vector<128xf32>
    %157 = vector.multi_reduction <add>, %156, %cst_51 [0] : vector<32x128xf32> to vector<128xf32>
    %158 = vector.shape_cast %157 : vector<128xf32> to vector<1x128xf32>
    %cst_52 = arith.constant 3.200000e+01 : f32
    %159 = vector.broadcast %cst_52 : f32 to vector<1x128xf32>
    %160 = arith.divf %158, %159 : vector<1x128xf32>
    %161 = vector.broadcast %153 : vector<1x128xf32> to vector<32x128xf32>
    %162 = arith.subf %127, %161 : vector<32x128xf32>
    %cst_53 = arith.constant 9.99999974E-6 : f32
    %163 = vector.broadcast %cst_53 : f32 to vector<1x128xf32>
    %164 = arith.addf %160, %163 : vector<1x128xf32>
    %165 = math.rsqrt %164 : vector<1x128xf32>
    %166 = vector.broadcast %165 : vector<1x128xf32> to vector<32x128xf32>
    %167 = arith.mulf %162, %166 : vector<32x128xf32>
    %168 = vector.broadcast %10 : vector<32x1xf32> to vector<32x128xf32>
    %169 = arith.mulf %167, %168 : vector<32x128xf32>
    %170 = vector.broadcast %11 : vector<32x1xf32> to vector<32x128xf32>
    %171 = arith.addf %169, %170 : vector<32x128xf32>
    %c224 = arith.constant 224 : index
    %c0_54 = arith.constant 0 : index
    %172 = vector.load %arg3[%c224, %c0_54] : memref<512x32xf32, #tpu.memory_space<vmem>>, vector<96x32xf32>
    %c320_55 = arith.constant 320 : index
    %c0_56 = arith.constant 0 : index
    %173 = vector.load %arg3[%c320_55, %c0_56] : memref<512x32xf32, #tpu.memory_space<vmem>>, vector<128x32xf32>
    %c32 = arith.constant 32 : index
    %c0_57 = arith.constant 0 : index
    %174 = vector.load %arg4[%c32, %c0_57] : memref<64x128xf32, #tpu.memory_space<vmem>>, vector<32x128xf32>
    %c384 = arith.constant 384 : index
    %c0_58 = arith.constant 0 : index
    %175 = vector.load %arg5[%c384, %c0_58] : memref<840x1xf32, #tpu.memory_space<vmem>>, vector<96x1xf32>
    %c480 = arith.constant 480 : index
    %c0_59 = arith.constant 0 : index
    %176 = vector.load %arg5[%c480, %c0_59] : memref<840x1xf32, #tpu.memory_space<vmem>>, vector<32x1xf32>
    %c512 = arith.constant 512 : index
    %c0_60 = arith.constant 0 : index
    %177 = vector.load %arg5[%c512, %c0_60] : memref<840x1xf32, #tpu.memory_space<vmem>>, vector<32x1xf32>
    %c544 = arith.constant 544 : index
    %c0_61 = arith.constant 0 : index
    %178 = vector.load %arg5[%c544, %c0_61] : memref<840x1xf32, #tpu.memory_space<vmem>>, vector<128x1xf32>
    %c672 = arith.constant 672 : index
    %c0_62 = arith.constant 0 : index
    %179 = vector.load %arg5[%c672, %c0_62] : memref<840x1xf32, #tpu.memory_space<vmem>>, vector<32x1xf32>
    %c704 = arith.constant 704 : index
    %c0_63 = arith.constant 0 : index
    %180 = vector.load %arg5[%c704, %c0_63] : memref<840x1xf32, #tpu.memory_space<vmem>>, vector<32x1xf32>
    %c736 = arith.constant 736 : index
    %c0_64 = arith.constant 0 : index
    %181 = vector.load %arg5[%c736, %c0_64] : memref<840x1xf32, #tpu.memory_space<vmem>>, vector<32x1xf32>
    %cst_65 = arith.constant dense<0.000000e+00> : vector<96x128xf32>
    %182 = tpu.matmul %172, %149, %cst_65 {dimension_numbers = #tpu.dot_dimension_numbers<[1], [0], [0], [1], [0, 0, 1, 1], [], []>} : vector<96x32xf32>, vector<32x128xf32>, vector<96x128xf32> -> vector<96x128xf32>
    %183 = vector.broadcast %175 : vector<96x1xf32> to vector<96x128xf32>
    %184 = arith.addf %182, %183 : vector<96x128xf32>
    %cst_66 = arith.constant dense<0.000000e+00> : vector<96x128xf32>
    %185 = tpu.matmul %172, %171, %cst_66 {dimension_numbers = #tpu.dot_dimension_numbers<[1], [0], [0], [1], [0, 0, 1, 1], [], []>} : vector<96x32xf32>, vector<32x128xf32>, vector<96x128xf32> -> vector<96x128xf32>
    %186 = vector.broadcast %175 : vector<96x1xf32> to vector<96x128xf32>
    %187 = arith.addf %185, %186 : vector<96x128xf32>
    %188 = vector.extract_strided_slice %184 {offsets = [0, 0], sizes = [32, 128], strides = [1, 1]} : vector<96x128xf32> to vector<32x128xf32>
    %189 = vector.extract_strided_slice %184 {offsets = [32, 0], sizes = [32, 128], strides = [1, 1]} : vector<96x128xf32> to vector<32x128xf32>
    %190 = vector.extract_strided_slice %184 {offsets = [64, 0], sizes = [32, 128], strides = [1, 1]} : vector<96x128xf32> to vector<32x128xf32>
    %191 = vector.extract_strided_slice %187 {offsets = [0, 0], sizes = [32, 128], strides = [1, 1]} : vector<96x128xf32> to vector<32x128xf32>
    %192 = vector.extract_strided_slice %187 {offsets = [32, 0], sizes = [32, 128], strides = [1, 1]} : vector<96x128xf32> to vector<32x128xf32>
    %193 = vector.extract_strided_slice %187 {offsets = [64, 0], sizes = [32, 128], strides = [1, 1]} : vector<96x128xf32> to vector<32x128xf32>
    %194 = arith.mulf %188, %189 : vector<32x128xf32>
    %cst_67 = arith.constant dense<0.000000e+00> : vector<128xf32>
    %195 = vector.multi_reduction <add>, %194, %cst_67 [0] : vector<32x128xf32> to vector<128xf32>
    %196 = vector.shape_cast %195 : vector<128xf32> to vector<1x128xf32>
    %cst_68 = arith.constant 0.176776692 : f32
    %197 = vector.broadcast %cst_68 : f32 to vector<1x128xf32>
    %198 = arith.mulf %196, %197 : vector<1x128xf32>
    %199 = arith.mulf %188, %192 : vector<32x128xf32>
    %cst_69 = arith.constant dense<0.000000e+00> : vector<128xf32>
    %200 = vector.multi_reduction <add>, %199, %cst_69 [0] : vector<32x128xf32> to vector<128xf32>
    %201 = vector.shape_cast %200 : vector<128xf32> to vector<1x128xf32>
    %cst_70 = arith.constant 0.176776692 : f32
    %202 = vector.broadcast %cst_70 : f32 to vector<1x128xf32>
    %203 = arith.mulf %201, %202 : vector<1x128xf32>
    %204 = arith.mulf %191, %189 : vector<32x128xf32>
    %cst_71 = arith.constant dense<0.000000e+00> : vector<128xf32>
    %205 = vector.multi_reduction <add>, %204, %cst_71 [0] : vector<32x128xf32> to vector<128xf32>
    %206 = vector.shape_cast %205 : vector<128xf32> to vector<1x128xf32>
    %cst_72 = arith.constant 0.176776692 : f32
    %207 = vector.broadcast %cst_72 : f32 to vector<1x128xf32>
    %208 = arith.mulf %206, %207 : vector<1x128xf32>
    %209 = arith.mulf %191, %192 : vector<32x128xf32>
    %cst_73 = arith.constant dense<0.000000e+00> : vector<128xf32>
    %210 = vector.multi_reduction <add>, %209, %cst_73 [0] : vector<32x128xf32> to vector<128xf32>
    %211 = vector.shape_cast %210 : vector<128xf32> to vector<1x128xf32>
    %cst_74 = arith.constant 0.176776692 : f32
    %212 = vector.broadcast %cst_74 : f32 to vector<1x128xf32>
    %213 = arith.mulf %211, %212 : vector<1x128xf32>
    %214 = arith.subf %198, %203 : vector<1x128xf32>
    %215 = arith.negf %214 : vector<1x128xf32>
    %216 = math.exp %215 : vector<1x128xf32>
    %cst_75 = arith.constant 1.000000e+00 : f32
    %217 = vector.broadcast %cst_75 : f32 to vector<1x128xf32>
    %218 = arith.addf %217, %216 : vector<1x128xf32>
    %219 = arith.divf %217, %218 : vector<1x128xf32>
    %220 = arith.subf %208, %213 : vector<1x128xf32>
    %221 = arith.negf %220 : vector<1x128xf32>
    %222 = math.exp %221 : vector<1x128xf32>
    %cst_76 = arith.constant 1.000000e+00 : f32
    %223 = vector.broadcast %cst_76 : f32 to vector<1x128xf32>
    %224 = arith.addf %223, %222 : vector<1x128xf32>
    %225 = arith.divf %223, %224 : vector<1x128xf32>
    %226 = vector.broadcast %219 : vector<1x128xf32> to vector<32x128xf32>
    %227 = arith.mulf %226, %190 : vector<32x128xf32>
    %cst_77 = arith.constant 1.000000e+00 : f32
    %228 = vector.broadcast %cst_77 : f32 to vector<1x128xf32>
    %229 = arith.subf %228, %219 : vector<1x128xf32>
    %230 = vector.broadcast %229 : vector<1x128xf32> to vector<32x128xf32>
    %231 = arith.mulf %230, %193 : vector<32x128xf32>
    %232 = arith.addf %227, %231 : vector<32x128xf32>
    %233 = vector.broadcast %225 : vector<1x128xf32> to vector<32x128xf32>
    %234 = arith.mulf %233, %190 : vector<32x128xf32>
    %cst_78 = arith.constant 1.000000e+00 : f32
    %235 = vector.broadcast %cst_78 : f32 to vector<1x128xf32>
    %236 = arith.subf %235, %225 : vector<1x128xf32>
    %237 = vector.broadcast %236 : vector<1x128xf32> to vector<32x128xf32>
    %238 = arith.mulf %237, %193 : vector<32x128xf32>
    %239 = arith.addf %234, %238 : vector<32x128xf32>
    %240 = arith.addf %149, %232 : vector<32x128xf32>
    %241 = arith.addf %171, %239 : vector<32x128xf32>
    %cst_79 = arith.constant dense<0.000000e+00> : vector<128xf32>
    %242 = vector.multi_reduction <add>, %240, %cst_79 [0] : vector<32x128xf32> to vector<128xf32>
    %243 = vector.shape_cast %242 : vector<128xf32> to vector<1x128xf32>
    %cst_80 = arith.constant 3.200000e+01 : f32
    %244 = vector.broadcast %cst_80 : f32 to vector<1x128xf32>
    %245 = arith.divf %243, %244 : vector<1x128xf32>
    %246 = vector.broadcast %245 : vector<1x128xf32> to vector<32x128xf32>
    %247 = arith.subf %240, %246 : vector<32x128xf32>
    %248 = arith.mulf %247, %247 : vector<32x128xf32>
    %cst_81 = arith.constant dense<0.000000e+00> : vector<128xf32>
    %249 = vector.multi_reduction <add>, %248, %cst_81 [0] : vector<32x128xf32> to vector<128xf32>
    %250 = vector.shape_cast %249 : vector<128xf32> to vector<1x128xf32>
    %cst_82 = arith.constant 3.200000e+01 : f32
    %251 = vector.broadcast %cst_82 : f32 to vector<1x128xf32>
    %252 = arith.divf %250, %251 : vector<1x128xf32>
    %253 = vector.broadcast %245 : vector<1x128xf32> to vector<32x128xf32>
    %254 = arith.subf %240, %253 : vector<32x128xf32>
    %cst_83 = arith.constant 9.99999974E-6 : f32
    %255 = vector.broadcast %cst_83 : f32 to vector<1x128xf32>
    %256 = arith.addf %252, %255 : vector<1x128xf32>
    %257 = math.rsqrt %256 : vector<1x128xf32>
    %258 = vector.broadcast %257 : vector<1x128xf32> to vector<32x128xf32>
    %259 = arith.mulf %254, %258 : vector<32x128xf32>
    %260 = vector.broadcast %176 : vector<32x1xf32> to vector<32x128xf32>
    %261 = arith.mulf %259, %260 : vector<32x128xf32>
    %262 = vector.broadcast %177 : vector<32x1xf32> to vector<32x128xf32>
    %263 = arith.addf %261, %262 : vector<32x128xf32>
    %cst_84 = arith.constant dense<0.000000e+00> : vector<128xf32>
    %264 = vector.multi_reduction <add>, %241, %cst_84 [0] : vector<32x128xf32> to vector<128xf32>
    %265 = vector.shape_cast %264 : vector<128xf32> to vector<1x128xf32>
    %cst_85 = arith.constant 3.200000e+01 : f32
    %266 = vector.broadcast %cst_85 : f32 to vector<1x128xf32>
    %267 = arith.divf %265, %266 : vector<1x128xf32>
    %268 = vector.broadcast %267 : vector<1x128xf32> to vector<32x128xf32>
    %269 = arith.subf %241, %268 : vector<32x128xf32>
    %270 = arith.mulf %269, %269 : vector<32x128xf32>
    %cst_86 = arith.constant dense<0.000000e+00> : vector<128xf32>
    %271 = vector.multi_reduction <add>, %270, %cst_86 [0] : vector<32x128xf32> to vector<128xf32>
    %272 = vector.shape_cast %271 : vector<128xf32> to vector<1x128xf32>
    %cst_87 = arith.constant 3.200000e+01 : f32
    %273 = vector.broadcast %cst_87 : f32 to vector<1x128xf32>
    %274 = arith.divf %272, %273 : vector<1x128xf32>
    %275 = vector.broadcast %267 : vector<1x128xf32> to vector<32x128xf32>
    %276 = arith.subf %241, %275 : vector<32x128xf32>
    %cst_88 = arith.constant 9.99999974E-6 : f32
    %277 = vector.broadcast %cst_88 : f32 to vector<1x128xf32>
    %278 = arith.addf %274, %277 : vector<1x128xf32>
    %279 = math.rsqrt %278 : vector<1x128xf32>
    %280 = vector.broadcast %279 : vector<1x128xf32> to vector<32x128xf32>
    %281 = arith.mulf %276, %280 : vector<32x128xf32>
    %282 = vector.broadcast %176 : vector<32x1xf32> to vector<32x128xf32>
    %283 = arith.mulf %281, %282 : vector<32x128xf32>
    %284 = vector.broadcast %177 : vector<32x1xf32> to vector<32x128xf32>
    %285 = arith.addf %283, %284 : vector<32x128xf32>
    %cst_89 = arith.constant dense<0.000000e+00> : vector<128x128xf32>
    %286 = tpu.matmul %173, %263, %cst_89 {dimension_numbers = #tpu.dot_dimension_numbers<[1], [0], [0], [1], [0, 0, 1, 1], [], []>} : vector<128x32xf32>, vector<32x128xf32>, vector<128x128xf32> -> vector<128x128xf32>
    %287 = vector.broadcast %178 : vector<128x1xf32> to vector<128x128xf32>
    %288 = arith.addf %286, %287 : vector<128x128xf32>
    %cst_90 = arith.constant dense<0.000000e+00> : vector<128x128xf32>
    %289 = tpu.matmul %173, %285, %cst_90 {dimension_numbers = #tpu.dot_dimension_numbers<[1], [0], [0], [1], [0, 0, 1, 1], [], []>} : vector<128x32xf32>, vector<32x128xf32>, vector<128x128xf32> -> vector<128x128xf32>
    %290 = vector.broadcast %178 : vector<128x1xf32> to vector<128x128xf32>
    %291 = arith.addf %289, %290 : vector<128x128xf32>
    %cst_91 = arith.constant dense<0.000000e+00> : vector<32x128xf32>
    %292 = tpu.matmul %174, %288, %cst_91 {dimension_numbers = #tpu.dot_dimension_numbers<[1], [0], [0], [1], [0, 0, 1, 1], [], []>} : vector<32x128xf32>, vector<128x128xf32>, vector<32x128xf32> -> vector<32x128xf32>
    %293 = vector.broadcast %179 : vector<32x1xf32> to vector<32x128xf32>
    %294 = arith.addf %292, %293 : vector<32x128xf32>
    %cst_92 = arith.constant dense<0.000000e+00> : vector<32x128xf32>
    %295 = tpu.matmul %174, %291, %cst_92 {dimension_numbers = #tpu.dot_dimension_numbers<[1], [0], [0], [1], [0, 0, 1, 1], [], []>} : vector<32x128xf32>, vector<128x128xf32>, vector<32x128xf32> -> vector<32x128xf32>
    %296 = vector.broadcast %179 : vector<32x1xf32> to vector<32x128xf32>
    %297 = arith.addf %295, %296 : vector<32x128xf32>
    %cst_93 = arith.constant dense<0.000000e+00> : vector<128xf32>
    %298 = vector.multi_reduction <add>, %294, %cst_93 [0] : vector<32x128xf32> to vector<128xf32>
    %299 = vector.shape_cast %298 : vector<128xf32> to vector<1x128xf32>
    %cst_94 = arith.constant 3.200000e+01 : f32
    %300 = vector.broadcast %cst_94 : f32 to vector<1x128xf32>
    %301 = arith.divf %299, %300 : vector<1x128xf32>
    %302 = vector.broadcast %301 : vector<1x128xf32> to vector<32x128xf32>
    %303 = arith.subf %294, %302 : vector<32x128xf32>
    %304 = arith.mulf %303, %303 : vector<32x128xf32>
    %cst_95 = arith.constant dense<0.000000e+00> : vector<128xf32>
    %305 = vector.multi_reduction <add>, %304, %cst_95 [0] : vector<32x128xf32> to vector<128xf32>
    %306 = vector.shape_cast %305 : vector<128xf32> to vector<1x128xf32>
    %cst_96 = arith.constant 3.200000e+01 : f32
    %307 = vector.broadcast %cst_96 : f32 to vector<1x128xf32>
    %308 = arith.divf %306, %307 : vector<1x128xf32>
    %309 = vector.broadcast %301 : vector<1x128xf32> to vector<32x128xf32>
    %310 = arith.subf %294, %309 : vector<32x128xf32>
    %cst_97 = arith.constant 9.99999974E-6 : f32
    %311 = vector.broadcast %cst_97 : f32 to vector<1x128xf32>
    %312 = arith.addf %308, %311 : vector<1x128xf32>
    %313 = math.rsqrt %312 : vector<1x128xf32>
    %314 = vector.broadcast %313 : vector<1x128xf32> to vector<32x128xf32>
    %315 = arith.mulf %310, %314 : vector<32x128xf32>
    %316 = vector.broadcast %180 : vector<32x1xf32> to vector<32x128xf32>
    %317 = arith.mulf %315, %316 : vector<32x128xf32>
    %318 = vector.broadcast %181 : vector<32x1xf32> to vector<32x128xf32>
    %319 = arith.addf %317, %318 : vector<32x128xf32>
    %cst_98 = arith.constant dense<0.000000e+00> : vector<128xf32>
    %320 = vector.multi_reduction <add>, %297, %cst_98 [0] : vector<32x128xf32> to vector<128xf32>
    %321 = vector.shape_cast %320 : vector<128xf32> to vector<1x128xf32>
    %cst_99 = arith.constant 3.200000e+01 : f32
    %322 = vector.broadcast %cst_99 : f32 to vector<1x128xf32>
    %323 = arith.divf %321, %322 : vector<1x128xf32>
    %324 = vector.broadcast %323 : vector<1x128xf32> to vector<32x128xf32>
    %325 = arith.subf %297, %324 : vector<32x128xf32>
    %326 = arith.mulf %325, %325 : vector<32x128xf32>
    %cst_100 = arith.constant dense<0.000000e+00> : vector<128xf32>
    %327 = vector.multi_reduction <add>, %326, %cst_100 [0] : vector<32x128xf32> to vector<128xf32>
    %328 = vector.shape_cast %327 : vector<128xf32> to vector<1x128xf32>
    %cst_101 = arith.constant 3.200000e+01 : f32
    %329 = vector.broadcast %cst_101 : f32 to vector<1x128xf32>
    %330 = arith.divf %328, %329 : vector<1x128xf32>
    %331 = vector.broadcast %323 : vector<1x128xf32> to vector<32x128xf32>
    %332 = arith.subf %297, %331 : vector<32x128xf32>
    %cst_102 = arith.constant 9.99999974E-6 : f32
    %333 = vector.broadcast %cst_102 : f32 to vector<1x128xf32>
    %334 = arith.addf %330, %333 : vector<1x128xf32>
    %335 = math.rsqrt %334 : vector<1x128xf32>
    %336 = vector.broadcast %335 : vector<1x128xf32> to vector<32x128xf32>
    %337 = arith.mulf %332, %336 : vector<32x128xf32>
    %338 = vector.broadcast %180 : vector<32x1xf32> to vector<32x128xf32>
    %339 = arith.mulf %337, %338 : vector<32x128xf32>
    %340 = vector.broadcast %181 : vector<32x1xf32> to vector<32x128xf32>
    %341 = arith.addf %339, %340 : vector<32x128xf32>
    %c448 = arith.constant 448 : index
    %c0_103 = arith.constant 0 : index
    %342 = vector.load %arg3[%c448, %c0_103] : memref<512x32xf32, #tpu.memory_space<vmem>>, vector<32x32xf32>
    %c480_104 = arith.constant 480 : index
    %c0_105 = arith.constant 0 : index
    %343 = vector.load %arg3[%c480_104, %c0_105] : memref<512x32xf32, #tpu.memory_space<vmem>>, vector<32x32xf32>
    %c768 = arith.constant 768 : index
    %c0_106 = arith.constant 0 : index
    %344 = vector.load %arg5[%c768, %c0_106] : memref<840x1xf32, #tpu.memory_space<vmem>>, vector<32x1xf32>
    %cst_107 = arith.constant dense<0.000000e+00> : vector<32x128xf32>
    %345 = tpu.matmul %342, %319, %cst_107 {dimension_numbers = #tpu.dot_dimension_numbers<[1], [0], [0], [1], [0, 0, 1, 1], [], []>} : vector<32x32xf32>, vector<32x128xf32>, vector<32x128xf32> -> vector<32x128xf32>
    %cst_108 = arith.constant dense<0.000000e+00> : vector<32x128xf32>
    %346 = tpu.matmul %343, %341, %cst_108 {dimension_numbers = #tpu.dot_dimension_numbers<[1], [0], [0], [1], [0, 0, 1, 1], [], []>} : vector<32x32xf32>, vector<32x128xf32>, vector<32x128xf32> -> vector<32x128xf32>
    %347 = arith.addf %345, %346 : vector<32x128xf32>
    %348 = vector.broadcast %344 : vector<32x1xf32> to vector<32x128xf32>
    %349 = arith.addf %347, %348 : vector<32x128xf32>
    %cst_109 = arith.constant 0.000000e+00 : f32
    %350 = vector.broadcast %cst_109 : f32 to vector<32x128xf32>
    %351 = arith.cmpf oge, %349, %350 : vector<32x128xf32>
    %cst_110 = arith.constant 0.00999999977 : f32
    %352 = vector.broadcast %cst_110 : f32 to vector<32x128xf32>
    %353 = arith.mulf %352, %349 : vector<32x128xf32>
    %354 = arith.select %351, %349, %353 : vector<32x128xi1>, vector<32x128xf32>
    %c800 = arith.constant 800 : index
    %c0_111 = arith.constant 0 : index
    %355 = vector.load %arg5[%c800, %c0_111] : memref<840x1xf32, #tpu.memory_space<vmem>>, vector<32x1xf32>
    %c832 = arith.constant 832 : index
    %c0_112 = arith.constant 0 : index
    %356 = vector.load %arg5[%c832, %c0_112] : memref<840x1xf32, #tpu.memory_space<vmem>>, vector<1x1xf32>
    %357 = vector.broadcast %355 : vector<32x1xf32> to vector<32x128xf32>
    %358 = arith.mulf %354, %357 : vector<32x128xf32>
    %cst_113 = arith.constant dense<0.000000e+00> : vector<128xf32>
    %359 = vector.multi_reduction <add>, %358, %cst_113 [0] : vector<32x128xf32> to vector<128xf32>
    %360 = vector.shape_cast %359 : vector<128xf32> to vector<1x128xf32>
    %361 = vector.broadcast %356 : vector<1x1xf32> to vector<1x128xf32>
    %362 = arith.addf %360, %361 : vector<1x128xf32>
    %363 = vector.shape_cast %362 : vector<1x128xf32> to vector<1x128xf32>
    %364 = vector.broadcast %363 : vector<1x128xf32> to vector<8x128xf32>
    %c0_114 = arith.constant 0 : index
    %c0_115 = arith.constant 0 : index
    %365 = vector.load %arg6[%c0_114, %c0_115] : memref<8x128xf32, #tpu.memory_space<vmem>>, vector<8x128xf32>
    tpu.vector_store %arg6[%c0_114, %c0_115], %364 {strides = array<i32>} : memref<8x128xf32, #tpu.memory_space<vmem>>, vector<8x128xf32>,
    return
  }
  func.func @transform_0(%arg0: i32) -> (i32, i32) {
    %c0_i32 = arith.constant 0 : i32
    %c0_i32_0 = arith.constant 0 : i32
    return %c0_i32, %arg0 : i32, i32
  }
  func.func @transform_1(%arg0: i32) -> (i32, i32) {
    %c0_i32 = arith.constant 0 : i32
    %c0_i32_0 = arith.constant 0 : i32
    return %c0_i32, %arg0 : i32, i32
  }
  func.func @transform_2(%arg0: i32) -> (i32, i32) {
    %c0_i32 = arith.constant 0 : i32
    %c0_i32_0 = arith.constant 0 : i32
    %c0_i32_1 = arith.constant 0 : i32
    return %c0_i32, %c0_i32_0 : i32, i32
  }
  func.func @transform_3(%arg0: i32) -> (i32, i32) {
    %c0_i32 = arith.constant 0 : i32
    %c0_i32_0 = arith.constant 0 : i32
    %c0_i32_1 = arith.constant 0 : i32
    return %c0_i32, %c0_i32_0 : i32, i32
  }
  func.func @transform_4(%arg0: i32) -> (i32, i32) {
    %c0_i32 = arith.constant 0 : i32
    %c0_i32_0 = arith.constant 0 : i32
    %c0_i32_1 = arith.constant 0 : i32
    return %c0_i32, %c0_i32_0 : i32, i32
  }
  func.func @transform_5(%arg0: i32) -> (i32, i32) {
    %c0_i32 = arith.constant 0 : i32
    %c0_i32_0 = arith.constant 0 : i32
    return %c0_i32, %arg0 : i32, i32
  }
}

</mosaic_0001>

<llo_original>
// kernel: tpu_custom_call.1
$region0: #{tpu_custom_call.1}
  #allocation0 [shape = 'u32[]', space=smem, size = 0x4, offset = 0x4, fixed_abs, tag = 'smem constant byte address 0x4 - core index']
  #allocation1 [shape = 'u32[144,128]{1,0:T(1,128)}', space=vmem, size = 0x12000, scoped, tag = 'internal scratch']
  %s0 = inlined_call_operand.vmem [shape: f32[32,128], index: 0, kind: input, shape index: {}]
  %s1 = inlined_call_operand.vmem [shape: f32[32,128], index: 1, kind: input, shape index: {}]
  %s2 = inlined_call_operand.vmem [shape: f32[512,32], index: 2, kind: input, shape index: {}]
  %s3 = inlined_call_operand.vmem [shape: f32[64,128], index: 3, kind: input, shape index: {}]
  %s4 = inlined_call_operand.vmem [shape: f32[840,1], index: 4, kind: input, shape index: {}]
  %s5 = inlined_call_operand.hbm [shape: f32[8,128], index: 5, kind: output, shape index: {}]
  %s6 = sld [smem:[#allocation0]]
  $region30: #{tpu_custom_call.1} parent=0
    _
  %s8 = ssub.s32 1, %s6
  %s9 = scalar_select 0, %s8, %s6
  $region1: #{tpu_custom_call.1} parent=0
    #allocation2 [shape = 'u8[4096]{0}', space=vmem, size = 0x1000, scoped, tag = 'output window, operand 0, single buffered']
    #allocation3 [shape = 's32[1]{0}', space=sflag, size = 0x4, scoped, tag = 'scoped memory for tpu_custom_call.1']
    %10 = vsyncpa [#allocation3], 0
    // Predicated region
    $region2: #{tpu_custom_call.1} parent=1 // pred_check
      _
    $region3: #{tpu_custom_call.1} parent=1 // pred_check_branch
      %12 = sbr.rel (0) target = $region5
    $region4: #{tpu_custom_call.1} parent=1 // pred_region
      _
    $region5: #{tpu_custom_call.1} parent=1 // pred_fallthru
      _
    // Predicated region
    $region6: #{tpu_custom_call.1} parent=1 // pred_check
      _
    $region7: #{tpu_custom_call.1} parent=1 // pred_check_branch
      %14 = sbr.rel (0) target = $region9
    $region8: #{tpu_custom_call.1} parent=1 // pred_region
      _
    $region9: #{tpu_custom_call.1} parent=1 // pred_fallthru
      _
    // Predicated region
    $region10: #{tpu_custom_call.1} parent=1 // pred_check
      _
    $region11: #{tpu_custom_call.1} parent=1 // pred_check_branch
      %16 = sbr.rel (0) target = $region13
    $region12: #{tpu_custom_call.1} parent=1 // pred_region
      _
    $region13: #{tpu_custom_call.1} parent=1 // pred_fallthru
      _
    // Predicated region
    $region14: #{tpu_custom_call.1} parent=1 // pred_check
      _
    $region15: #{tpu_custom_call.1} parent=1 // pred_check_branch
      %18 = sbr.rel (0) target = $region17
    $region16: #{tpu_custom_call.1} parent=1 // pred_region
      _
    $region17: #{tpu_custom_call.1} parent=1 // pred_fallthru
      _
    // Predicated region
    $region18: #{tpu_custom_call.1} parent=1 // pred_check
      _
    $region19: #{tpu_custom_call.1} parent=1 // pred_check_branch
      %20 = sbr.rel (0) target = $region21
    $region20: #{tpu_custom_call.1} parent=1 // pred_region
      _
    $region21: #{tpu_custom_call.1} parent=1 // pred_fallthru
      _
    %v21 = vld [vmem:[%s0] sm:$0xff]
    %v22 = vld [vmem:[%s0 + $0x8] sm:$0xff]
    %v23 = vld [vmem:[%s0 + $0x10] sm:$0xff]
    %v24 = vld [vmem:[%s0 + $0x18] sm:$0xff]
    %v25 = vld [vmem:[%s1] sm:$0xff]
    %v26 = vld [vmem:[%s1 + $0x8] sm:$0xff]
    %v27 = vld [vmem:[%s1 + $0x10] sm:$0xff]
    %v28 = vld [vmem:[%s1 + $0x18] sm:$0xff]
    %v29 = vld [vmem:[%s2] sm:$0xff]
    %v30 = vld [vmem:[%s2 + $0x8] sm:$0xff]
    %v31 = vld [vmem:[%s2 + $0x10] sm:$0xff]
    %v32 = vld [vmem:[%s2 + $0x18] sm:$0xff]
    %v33 = vld [vmem:[%s2 + $0x20] sm:$0xff]
    %v34 = vld [vmem:[%s2 + $0x28] sm:$0xff]
    %v35 = vld [vmem:[%s2 + $0x30] sm:$0xff]
    %v36 = vld [vmem:[%s2 + $0x38] sm:$0xff]
    %v37 = vld [vmem:[%s2 + $0x40] sm:$0xff]
    %v38 = vld [vmem:[%s2 + $0x48] sm:$0xff]
    %v39 = vld [vmem:[%s2 + $0x50] sm:$0xff]
    %v40 = vld [vmem:[%s2 + $0x58] sm:$0xff]
    %v41 = vld [vmem:[%s2 + $0x60] sm:$0xff]
    %v42 = vld [vmem:[%s2 + $0x68] sm:$0xff]
    %v43 = vld [vmem:[%s2 + $0x70] sm:$0xff]
    %v44 = vld [vmem:[%s2 + $0x78] sm:$0xff]
    %v45 = vld [vmem:[%s2 + $0x80] sm:$0xff]
    %v46 = vld [vmem:[%s2 + $0x88] sm:$0xff]
    %v47 = vld [vmem:[%s2 + $0x90] sm:$0xff]
    %v48 = vld [vmem:[%s2 + $0x98] sm:$0xff]
    %v49 = vld [vmem:[%s2 + $0xa0] sm:$0xff]
    %v50 = vld [vmem:[%s2 + $0xa8] sm:$0xff]
    %v51 = vld [vmem:[%s2 + $0xb0] sm:$0xff]
    %v52 = vld [vmem:[%s2 + $0xb8] sm:$0xff]
    %v53 = vld [vmem:[%s2 + $0xc0] sm:$0xff]
    %v54 = vld [vmem:[%s2 + $0xc8] sm:$0xff]
    %v55 = vld [vmem:[%s2 + $0xd0] sm:$0xff]
    %v56 = vld [vmem:[%s2 + $0xd8] sm:$0xff]
    %v57 = vld [vmem:[%s3] sm:$0xff]
    %v58 = vld [vmem:[%s3 + $0x8] sm:$0xff]
    %v59 = vld [vmem:[%s3 + $0x10] sm:$0xff]
    %v60 = vld [vmem:[%s3 + $0x18] sm:$0xff]
    %v61 = vld [vmem:[%s4] sm:$0xff]
    %v62 = vld [vmem:[%s4 + $0x8] sm:$0xff]
    %v63 = vld [vmem:[%s4 + $0x10] sm:$0xff]
    %v64 = vld [vmem:[%s4 + $0x18] sm:$0xff]
    %v65 = vld [vmem:[%s4 + $0x20] sm:$0xff]
    %v66 = vld [vmem:[%s4 + $0x28] sm:$0xff]
    %v67 = vld [vmem:[%s4 + $0x30] sm:$0xff]
    %v68 = vld [vmem:[%s4 + $0x38] sm:$0xff]
    %v69 = vld [vmem:[%s4 + $0x40] sm:$0xff]
    %v70 = vld [vmem:[%s4 + $0x48] sm:$0xff]
    %v71 = vld [vmem:[%s4 + $0x50] sm:$0xff]
    %v72 = vld [vmem:[%s4 + $0x58] sm:$0xff]
    %v73 = vld [vmem:[%s4 + $0x60] sm:$0xff]
    %v74 = vld [vmem:[%s4 + $0x68] sm:$0xff]
    %v75 = vld [vmem:[%s4 + $0x70] sm:$0xff]
    %v76 = vld [vmem:[%s4 + $0x78] sm:$0xff]
    %v77 = vld [vmem:[%s4 + $0x80] sm:$0xff]
    %v78 = vld [vmem:[%s4 + $0x88] sm:$0xff]
    %v79 = vld [vmem:[%s4 + $0x90] sm:$0xff]
    %v80 = vld [vmem:[%s4 + $0x98] sm:$0xff]
    %v81 = vld [vmem:[%s4 + $0xa0] sm:$0xff]
    %v82 = vld [vmem:[%s4 + $0xa8] sm:$0xff]
    %v83 = vld [vmem:[%s4 + $0xb0] sm:$0xff]
    %v84 = vld [vmem:[%s4 + $0xb8] sm:$0xff]
    %v85 = vld [vmem:[%s4 + $0xc0] sm:$0xff]
    %v86 = vld [vmem:[%s4 + $0xc8] sm:$0xff]
    %v87 = vld [vmem:[%s4 + $0xd0] sm:$0xff]
    %v88 = vld [vmem:[%s4 + $0xd8] sm:$0xff]
    %v89 = vld [vmem:[%s4 + $0xe0] sm:$0xff]
    %v90 = vld [vmem:[%s4 + $0xe8] sm:$0xff]
    %v91 = vld [vmem:[%s4 + $0xf0] sm:$0xff]
    %v92 = vld [vmem:[%s4 + $0xf8] sm:$0xff]
    %v93 = vld [vmem:[%s4 + $0x100] sm:$0xff]
    %v94 = vld [vmem:[%s4 + $0x108] sm:$0xff]
    %v95 = vld [vmem:[%s4 + $0x110] sm:$0xff]
    %v96 = vld [vmem:[%s4 + $0x118] sm:$0xff]
    %v97 = vld [vmem:[%s4 + $0x120] sm:$0xff]
    %v98 = vld [vmem:[%s4 + $0x128] sm:$0xff]
    %v99 = vld [vmem:[%s4 + $0x130] sm:$0xff]
    %v100 = vld [vmem:[%s4 + $0x138] sm:$0xff]
    %v101 = vld [vmem:[%s4 + $0x140] sm:$0xff]
    %v102 = vld [vmem:[%s4 + $0x148] sm:$0xff]
    %v103 = vld [vmem:[%s4 + $0x150] sm:$0xff]
    %v104 = vld [vmem:[%s4 + $0x158] sm:$0xff]
    %v105 = vld [vmem:[%s4 + $0x160] sm:$0xff]
    %v106 = vld [vmem:[%s4 + $0x168] sm:$0xff]
    %v107 = vld [vmem:[%s4 + $0x170] sm:$0xff]
    %v108 = vld [vmem:[%s4 + $0x178] sm:$0xff]
    %110 = vset.pattern.permute.xlu0 0
    %111 = vperm.xlu0 %110, %v61
    %v112 = vpop.permute.xlu0 %111
    %115 = vset.pattern.permute.xlu0 0
    %116 = vperm.xlu0 %115, %v62
    %v117 = vpop.permute.xlu0 %116
    %120 = vset.pattern.permute.xlu0 0
    %121 = vperm.xlu0 %120, %v63
    %v122 = vpop.permute.xlu0 %121
    %125 = vset.pattern.permute.xlu0 0
    %126 = vperm.xlu0 %125, %v64
    %v127 = vpop.permute.xlu0 %126
    %130 = vset.pattern.permute.xlu0 0
    %131 = vperm.xlu0 %130, %v65
    %v132 = vpop.permute.xlu0 %131
    %135 = vset.pattern.permute.xlu0 0
    %136 = vperm.xlu0 %135, %v66
    %v137 = vpop.permute.xlu0 %136
    %140 = vset.pattern.permute.xlu0 0
    %141 = vperm.xlu0 %140, %v67
    %v142 = vpop.permute.xlu0 %141
    %145 = vset.pattern.permute.xlu0 0
    %146 = vperm.xlu0 %145, %v68
    %v147 = vpop.permute.xlu0 %146
    %150 = vset.pattern.permute.xlu0 0
    %151 = vperm.xlu0 %150, %v69
    %v152 = vpop.permute.xlu0 %151
    %155 = vset.pattern.permute.xlu0 0
    %156 = vperm.xlu0 %155, %v70
    %v157 = vpop.permute.xlu0 %156
    %160 = vset.pattern.permute.xlu0 0
    %161 = vperm.xlu0 %160, %v71
    %v162 = vpop.permute.xlu0 %161
    %165 = vset.pattern.permute.xlu0 0
    %166 = vperm.xlu0 %165, %v72
    %v167 = vpop.permute.xlu0 %166
    %vm169 = vcmask 261120
    %v171 = vsel %vm169, %v29, 0
    %v174 = vsel %vm169, %v30, 0
    %v177 = vsel %vm169, %v31, 0
    %v180 = vsel %vm169, %v32, 0
    %v183 = vsel %vm169, %v33, 0
    %v186 = vsel %vm169, %v34, 0
    %v189 = vsel %vm169, %v35, 0
    %v192 = vsel %vm169, %v36, 0
    %v195 = vsel %vm169, %v37, 0
    %v198 = vsel %vm169, %v38, 0
    %v201 = vsel %vm169, %v39, 0
    %v204 = vsel %vm169, %v40, 0
    %206 = vmatprep.subr.mxu0 0.0
    %207 = vmatpush1.msra.mxu0 0.0
    %208 = vmatprep.subr.mxu0 0.0
    %209 = vmatpush1.msra.mxu0 0.0
    %210 = vmatprep.subr.mxu0 0.0
    %211 = vmatpush1.msra.mxu0 0.0
    %212 = vmatprep.subr.mxu0 0.0
    %213 = vmatpush1.msra.mxu0 0.0
    %214 = vmatprep.subr.mxu0 0.0
    %215 = vmatpush1.msra.mxu0 0.0
    %216 = vmatprep.subr.mxu0 0.0
    %217 = vmatpush1.msra.mxu0 0.0
    %218 = vmatprep.subr.mxu0 0.0
    %219 = vmatpush1.msra.mxu0 0.0
    %220 = vmatprep.subr.mxu0 0.0
    %221 = vmatpush1.msra.mxu0 0.0
    %222 = vmatprep.subr.mxu0 0.0
    %223 = vmatpush1.msra.mxu0 0.0
    %224 = vmatprep.subr.mxu0 0.0
    %225 = vmatpush1.msra.mxu0 0.0
    %226 = vmatprep.subr.mxu0 0.0
    %227 = vmatpush1.msra.mxu0 0.0
    %228 = vmatprep.subr.mxu0 0.0
    %229 = vmatpush1.msra.mxu0 0.0
    %230 = vmatprep.subr.mxu0 0.0
    %231 = vmatpush1.msra.mxu0 %v24
    %232 = vmatprep.subr.mxu0 0.0
    %233 = vmatpush1.msra.mxu0 %v23
    %234 = vmatprep.subr.mxu0 0.0
    %235 = vmatpush1.msra.mxu0 %v22
    %236 = vmatprep.subr.mxu0 0.0
    %237 = vmatpush1.msra.mxu0 %v21
    %238 = vmatprep.subr.mxu0 0.0
    %239 = vmatpush2.msra.mxu0 0.0
    %240 = vmatprep.subr.mxu0 0.0
    %241 = vmatpush2.msra.mxu0 0.0
    %242 = vmatprep.subr.mxu0 0.0
    %243 = vmatpush2.msra.mxu0 0.0
    %244 = vmatprep.subr.mxu0 0.0
    %245 = vmatpush2.msra.mxu0 0.0
    %246 = vmatprep.subr.mxu0 0.0
    %247 = vmatpush2.msra.mxu0 0.0
    %248 = vmatprep.subr.mxu0 0.0
    %249 = vmatpush2.msra.mxu0 0.0
    %250 = vmatprep.subr.mxu0 0.0
    %251 = vmatpush2.msra.mxu0 0.0
    %252 = vmatprep.subr.mxu0 0.0
    %253 = vmatpush2.msra.mxu0 0.0
    %254 = vmatprep.subr.mxu0 0.0
    %255 = vmatpush2.msra.mxu0 0.0
    %256 = vmatprep.subr.mxu0 0.0
    %257 = vmatpush2.msra.mxu0 0.0
    %258 = vmatprep.subr.mxu0 0.0
    %259 = vmatpush2.msra.mxu0 0.0
    %260 = vmatprep.subr.mxu0 0.0
    %261 = vmatpush2.msra.mxu0 0.0
    %262 = vmatprep.subr.mxu0 0.0
    %263 = vmatpush2.msra.mxu0 0.0
    %264 = vmatprep.subr.mxu0 0.0
    %265 = vmatpush2.msra.mxu0 0.0
    %266 = vmatprep.subr.mxu0 0.0
    %267 = vmatpush2.msra.mxu0 0.0
    %268 = vmatprep.subr.mxu0 0.0
    %269 = vmatpush2.msra.mxu0 0.0
    %270 = vmatprep.mubr.f32.mxu0 0.0
    %271 = vmatmul.mubr.f32.gmra.mxu0 %v171
    %v272 = vpop.f32.mrf.mxu0
    %v273 = vadd.f32 %v112, %v272
    %v274 = vpop.f32.mrf.mxu0
    %275 = vmatprep.mubr.f32.mxu0 0.0
    %276 = vmatmul.mubr.f32.gmra.mxu0 %v174
    %v277 = vpop.f32.mrf.mxu0
    %v278 = vadd.f32 %v117, %v277
    %v279 = vpop.f32.mrf.mxu0
    %280 = vmatprep.mubr.f32.mxu0 0.0
    %281 = vmatmul.mubr.f32.gmra.mxu0 %v177
    %v282 = vpop.f32.mrf.mxu0
    %v283 = vadd.f32 %v122, %v282
    %v284 = vpop.f32.mrf.mxu0
    %285 = vmatprep.mubr.f32.mxu0 0.0
    %286 = vmatmul.mubr.f32.gmra.mxu0 %v180
    %v287 = vpop.f32.mrf.mxu0
    %v288 = vadd.f32 %v127, %v287
    %v289 = vpop.f32.mrf.mxu0
    %290 = vmatprep.mubr.f32.mxu0 0.0
    %291 = vmatmul.mubr.f32.gmra.mxu0 %v183
    %v292 = vpop.f32.mrf.mxu0
    %v293 = vadd.f32 %v132, %v292
    %v294 = vpop.f32.mrf.mxu0
    %295 = vmatprep.mubr.f32.mxu0 0.0
    %296 = vmatmul.mubr.f32.gmra.mxu0 %v186
    %v297 = vpop.f32.mrf.mxu0
    %v298 = vadd.f32 %v137, %v297
    %v299 = vpop.f32.mrf.mxu0
    %300 = vmatprep.mubr.f32.mxu0 0.0
    %301 = vmatmul.mubr.f32.gmra.mxu0 %v189
    %v302 = vpop.f32.mrf.mxu0
    %v303 = vadd.f32 %v142, %v302
    %v304 = vpop.f32.mrf.mxu0
    %305 = vmatprep.mubr.f32.mxu0 0.0
    %306 = vmatmul.mubr.f32.gmra.mxu0 %v192
    %v307 = vpop.f32.mrf.mxu0
    %v308 = vadd.f32 %v147, %v307
    %v309 = vpop.f32.mrf.mxu0
    %310 = vmatprep.mubr.f32.mxu0 0.0
    %311 = vmatmul.mubr.f32.gmra.mxu0 %v195
    %v312 = vpop.f32.mrf.mxu0
    %v313 = vadd.f32 %v152, %v312
    %v314 = vpop.f32.mrf.mxu0
    %315 = vmatprep.mubr.f32.mxu0 0.0
    %316 = vmatmul.mubr.f32.gmra.mxu0 %v198
    %v317 = vpop.f32.mrf.mxu0
    %v318 = vadd.f32 %v157, %v317
    %v319 = vpop.f32.mrf.mxu0
    %320 = vmatprep.mubr.f32.mxu0 0.0
    %321 = vmatmul.mubr.f32.gmra.mxu0 %v201
    %v322 = vpop.f32.mrf.mxu0
    %v323 = vadd.f32 %v162, %v322
    %v324 = vpop.f32.mrf.mxu0
    %325 = vmatprep.mubr.f32.mxu0 0.0
    %326 = vmatmul.mubr.f32.gmra.mxu0 %v204
    %v327 = vpop.f32.mrf.mxu0
    %v328 = vadd.f32 %v167, %v327
    %v329 = vpop.f32.mrf.mxu0
    %330 = vdwg.mxu0
    %331 = vmatprep.subr.mxu0 0.0
    %332 = vmatpush1.msra.mxu0 0.0
    %333 = vmatprep.subr.mxu0 0.0
    %334 = vmatpush1.msra.mxu0 0.0
    %335 = vmatprep.subr.mxu0 0.0
    %336 = vmatpush1.msra.mxu0 0.0
    %337 = vmatprep.subr.mxu0 0.0
    %338 = vmatpush1.msra.mxu0 0.0
    %339 = vmatprep.subr.mxu0 0.0
    %340 = vmatpush1.msra.mxu0 0.0
    %341 = vmatprep.subr.mxu0 0.0
    %342 = vmatpush1.msra.mxu0 0.0
    %343 = vmatprep.subr.mxu0 0.0
    %344 = vmatpush1.msra.mxu0 0.0
    %345 = vmatprep.subr.mxu0 0.0
    %346 = vmatpush1.msra.mxu0 0.0
    %347 = vmatprep.subr.mxu0 0.0
    %348 = vmatpush1.msra.mxu0 0.0
    %349 = vmatprep.subr.mxu0 0.0
    %350 = vmatpush1.msra.mxu0 0.0
    %351 = vmatprep.subr.mxu0 0.0
    %352 = vmatpush1.msra.mxu0 0.0
    %353 = vmatprep.subr.mxu0 0.0
    %354 = vmatpush1.msra.mxu0 0.0
    %355 = vmatprep.subr.mxu0 0.0
    %356 = vmatpush1.msra.mxu0 %v28
    %357 = vmatprep.subr.mxu0 0.0
    %358 = vmatpush1.msra.mxu0 %v27
    %359 = vmatprep.subr.mxu0 0.0
    %360 = vmatpush1.msra.mxu0 %v26
    %361 = vmatprep.subr.mxu0 0.0
    %362 = vmatpush1.msra.mxu0 %v25
    %363 = vmatprep.subr.mxu0 0.0
    %364 = vmatpush2.msra.mxu0 0.0
    %365 = vmatprep.subr.mxu0 0.0
    %366 = vmatpush2.msra.mxu0 0.0
    %367 = vmatprep.subr.mxu0 0.0
    %368 = vmatpush2.msra.mxu0 0.0
    %369 = vmatprep.subr.mxu0 0.0
    %370 = vmatpush2.msra.mxu0 0.0
    %371 = vmatprep.subr.mxu0 0.0
    %372 = vmatpush2.msra.mxu0 0.0
    %373 = vmatprep.subr.mxu0 0.0
    %374 = vmatpush2.msra.mxu0 0.0
    %375 = vmatprep.subr.mxu0 0.0
    %376 = vmatpush2.msra.mxu0 0.0
    %377 = vmatprep.subr.mxu0 0.0
    %378 = vmatpush2.msra.mxu0 0.0
    %379 = vmatprep.subr.mxu0 0.0
    %380 = vmatpush2.msra.mxu0 0.0
    %381 = vmatprep.subr.mxu0 0.0
    %382 = vmatpush2.msra.mxu0 0.0
    %383 = vmatprep.subr.mxu0 0.0
    %384 = vmatpush2.msra.mxu0 0.0
    %385 = vmatprep.subr.mxu0 0.0
    %386 = vmatpush2.msra.mxu0 0.0
    %387 = vmatprep.subr.mxu0 0.0
    %388 = vmatpush2.msra.mxu0 0.0
    %389 = vmatprep.subr.mxu0 0.0
    %390 = vmatpush2.msra.mxu0 0.0
    %391 = vmatprep.subr.mxu0 0.0
    %392 = vmatpush2.msra.mxu0 0.0
    %393 = vmatprep.subr.mxu0 0.0
    %394 = vmatpush2.msra.mxu0 0.0
    %395 = vmatprep.mubr.f32.mxu0 0.0
    %396 = vmatmul.mubr.f32.gmra.mxu0 %v171
    %v397 = vpop.f32.mrf.mxu0
    %v398 = vadd.f32 %v112, %v397
    %v399 = vpop.f32.mrf.mxu0
    %400 = vmatprep.mubr.f32.mxu0 0.0
    %401 = vmatmul.mubr.f32.gmra.mxu0 %v174
    %v402 = vpop.f32.mrf.mxu0
    %v403 = vadd.f32 %v117, %v402
    %v404 = vpop.f32.mrf.mxu0
    %405 = vmatprep.mubr.f32.mxu0 0.0
    %406 = vmatmul.mubr.f32.gmra.mxu0 %v177
    %v407 = vpop.f32.mrf.mxu0
    %v408 = vadd.f32 %v122, %v407
    %v409 = vpop.f32.mrf.mxu0
    %410 = vmatprep.mubr.f32.mxu0 0.0
    %411 = vmatmul.mubr.f32.gmra.mxu0 %v180
    %v412 = vpop.f32.mrf.mxu0
    %v413 = vadd.f32 %v127, %v412
    %v414 = vpop.f32.mrf.mxu0
    %415 = vmatprep.mubr.f32.mxu0 0.0
    %416 = vmatmul.mubr.f32.gmra.mxu0 %v183
    %v417 = vpop.f32.mrf.mxu0
    %v418 = vadd.f32 %v132, %v417
    %v419 = vpop.f32.mrf.mxu0
    %420 = vmatprep.mubr.f32.mxu0 0.0
    %421 = vmatmul.mubr.f32.gmra.mxu0 %v186
    %v422 = vpop.f32.mrf.mxu0
    %v423 = vadd.f32 %v137, %v422
    %v424 = vpop.f32.mrf.mxu0
    %425 = vmatprep.mubr.f32.mxu0 0.0
    %426 = vmatmul.mubr.f32.gmra.mxu0 %v189
    %v427 = vpop.f32.mrf.mxu0
    %v428 = vadd.f32 %v142, %v427
    %v429 = vpop.f32.mrf.mxu0
    %430 = vmatprep.mubr.f32.mxu0 0.0
    %431 = vmatmul.mubr.f32.gmra.mxu0 %v192
    %v432 = vpop.f32.mrf.mxu0
    %v433 = vadd.f32 %v147, %v432
    %v434 = vpop.f32.mrf.mxu0
    %435 = vmatprep.mubr.f32.mxu0 0.0
    %436 = vmatmul.mubr.f32.gmra.mxu0 %v195
    %v437 = vpop.f32.mrf.mxu0
    %v438 = vadd.f32 %v152, %v437
    %v439 = vpop.f32.mrf.mxu0
    %440 = vmatprep.mubr.f32.mxu0 0.0
    %441 = vmatmul.mubr.f32.gmra.mxu0 %v198
    %v442 = vpop.f32.mrf.mxu0
    %v443 = vadd.f32 %v157, %v442
    %v444 = vpop.f32.mrf.mxu0
    %445 = vmatprep.mubr.f32.mxu0 0.0
    %446 = vmatmul.mubr.f32.gmra.mxu0 %v201
    %v447 = vpop.f32.mrf.mxu0
    %v448 = vadd.f32 %v162, %v447
    %v449 = vpop.f32.mrf.mxu0
    %450 = vmatprep.mubr.f32.mxu0 0.0
    %451 = vmatmul.mubr.f32.gmra.mxu0 %v204
    %v452 = vpop.f32.mrf.mxu0
    %v453 = vadd.f32 %v167, %v452
    %v454 = vpop.f32.mrf.mxu0
    %455 = vdwg.mxu0
    %v456 = vmul.f32 %v273, %v293
    %v457 = vmul.f32 %v278, %v298
    %v458 = vmul.f32 %v283, %v303
    %v459 = vmul.f32 %v288, %v308
    %v460 = vadd.f32 %v456, %v457
    %v461 = vadd.f32 %v460, %v458
    %v462 = vadd.f32 %v461, %v459
    %v463 = vrot.slane %v462, 4
    %v464 = vadd.f32 %v462, %v463
    %v465 = vrot.slane %v464, 2
    %v466 = vadd.f32 %v464, %v465
    %v467 = vrot.slane %v466, 1
    %v468 = vadd.f32 %v466, %v467
    %v469 = vmul.f32 %v468, 0.17677669
    %v470 = vmul.f32 %v273, %v418
    %v471 = vmul.f32 %v278, %v423
    %v472 = vmul.f32 %v283, %v428
    %v473 = vmul.f32 %v288, %v433
    %v474 = vadd.f32 %v470, %v471
    %v475 = vadd.f32 %v474, %v472
    %v476 = vadd.f32 %v475, %v473
    %v477 = vrot.slane %v476, 4
    %v478 = vadd.f32 %v476, %v477
    %v479 = vrot.slane %v478, 2
    %v480 = vadd.f32 %v478, %v479
    %v481 = vrot.slane %v480, 1
    %v482 = vadd.f32 %v480, %v481
    %v483 = vmul.f32 %v482, 0.17677669
    %v484 = vmul.f32 %v398, %v293
    %v485 = vmul.f32 %v403, %v298
    %v486 = vmul.f32 %v408, %v303
    %v487 = vmul.f32 %v413, %v308
    %v488 = vadd.f32 %v484, %v485
    %v489 = vadd.f32 %v488, %v486
    %v490 = vadd.f32 %v489, %v487
    %v491 = vrot.slane %v490, 4
    %v492 = vadd.f32 %v490, %v491
    %v493 = vrot.slane %v492, 2
    %v494 = vadd.f32 %v492, %v493
    %v495 = vrot.slane %v494, 1
    %v496 = vadd.f32 %v494, %v495
    %v497 = vmul.f32 %v496, 0.17677669
    %v498 = vmul.f32 %v398, %v418
    %v499 = vmul.f32 %v403, %v423
    %v500 = vmul.f32 %v408, %v428
    %v501 = vmul.f32 %v413, %v433
    %v502 = vadd.f32 %v498, %v499
    %v503 = vadd.f32 %v502, %v500
    %v504 = vadd.f32 %v503, %v501
    %v505 = vrot.slane %v504, 4
    %v506 = vadd.f32 %v504, %v505
    %v507 = vrot.slane %v506, 2
    %v508 = vadd.f32 %v506, %v507
    %v509 = vrot.slane %v508, 1
    %v510 = vadd.f32 %v508, %v509
    %v511 = vmul.f32 %v510, 0.17677669
    %v512 = vsub.f32 %v469, %v483
    %v513 = vxor.u32 %v512, 2147483648
    %v514 = vmul.f32 %v513, 1.442695
    %v515 = vpow.pop %v514
    %v516 = vadd.f32 %v515, 1.0
    %v517 = vrcp.pop %v516
    %v518 = vmul.f32 1.0, %v517
    %v519 = vsub.f32 %v497, %v511
    %v520 = vxor.u32 %v519, 2147483648
    %v521 = vmul.f32 %v520, 1.442695
    %v522 = vpow.pop %v521
    %v523 = vadd.f32 %v522, 1.0
    %v524 = vrcp.pop %v523
    %v525 = vmul.f32 1.0, %v524
    %v526 = vmul.f32 %v518, %v313
    %v527 = vmul.f32 %v518, %v318
    %v528 = vmul.f32 %v518, %v323
    %v529 = vmul.f32 %v518, %v328
    %v530 = vsub.f32 1.0, %v518
    %v531 = vmul.f32 %v530, %v438
    %v532 = vmul.f32 %v530, %v443
    %v533 = vmul.f32 %v530, %v448
    %v534 = vmul.f32 %v530, %v453
    %v535 = vadd.f32 %v526, %v531
    %v536 = vadd.f32 %v527, %v532
    %v537 = vadd.f32 %v528, %v533
    %v538 = vadd.f32 %v529, %v534
    %v539 = vmul.f32 %v525, %v313
    %v540 = vmul.f32 %v525, %v318
    %v541 = vmul.f32 %v525, %v323
    %v542 = vmul.f32 %v525, %v328
    %v543 = vsub.f32 1.0, %v525
    %v544 = vmul.f32 %v543, %v438
    %v545 = vmul.f32 %v543, %v443
    %v546 = vmul.f32 %v543, %v448
    %v547 = vmul.f32 %v543, %v453
    %v548 = vadd.f32 %v539, %v544
    %v549 = vadd.f32 %v540, %v545
    %v550 = vadd.f32 %v541, %v546
    %v551 = vadd.f32 %v542, %v547
    %v552 = vadd.f32 %v21, %v535
    %v553 = vadd.f32 %v22, %v536
    %v554 = vadd.f32 %v23, %v537
    %v555 = vadd.f32 %v24, %v538
    %v556 = vadd.f32 %v25, %v548
    %v557 = vadd.f32 %v26, %v549
    %v558 = vadd.f32 %v27, %v550
    %v559 = vadd.f32 %v28, %v551
    %v560 = vadd.f32 %v552, %v553
    %v561 = vadd.f32 %v560, %v554
    %v562 = vadd.f32 %v561, %v555
    %v563 = vrot.slane %v562, 4
    %v564 = vadd.f32 %v562, %v563
    %v565 = vrot.slane %v564, 2
    %v566 = vadd.f32 %v564, %v565
    %v567 = vrot.slane %v566, 1
    %v568 = vadd.f32 %v566, %v567
    %v569 = vrcp.pop 32.0
    %v570 = vmul.f32 %v568, %v569
    %v571 = vsub.f32 %v552, %v570
    %v572 = vsub.f32 %v553, %v570
    %v573 = vsub.f32 %v554, %v570
    %v574 = vsub.f32 %v555, %v570
    %v575 = vmul.f32 %v571, %v571
    %v576 = vmul.f32 %v572, %v572
    %v577 = vmul.f32 %v573, %v573
    %v578 = vmul.f32 %v574, %v574
    %v579 = vadd.f32 %v575, %v576
    %v580 = vadd.f32 %v579, %v577
    %v581 = vadd.f32 %v580, %v578
    %v582 = vrot.slane %v581, 4
    %v583 = vadd.f32 %v581, %v582
    %v584 = vrot.slane %v583, 2
    %v585 = vadd.f32 %v583, %v584
    %v586 = vrot.slane %v585, 1
    %v587 = vadd.f32 %v585, %v586
    %v588 = vmul.f32 %v587, %v569
    %v589 = vadd.f32 %v588, 1e-05
    %v590 = vrsqrt.pop %v589
    %v591 = vmul.f32 %v571, %v590
    %v592 = vmul.f32 %v572, %v590
    %v593 = vmul.f32 %v573, %v590
    %v594 = vmul.f32 %v574, %v590
    %596 = vset.pattern.permute.xlu0 0
    %597 = vperm.xlu0 %596, %v73
    %v598 = vpop.permute.xlu0 %597
    %601 = vset.pattern.permute.xlu0 0
    %602 = vperm.xlu0 %601, %v74
    %v603 = vpop.permute.xlu0 %602
    %606 = vset.pattern.permute.xlu0 0
    %607 = vperm.xlu0 %606, %v75
    %v608 = vpop.permute.xlu0 %607
    %611 = vset.pattern.permute.xlu0 0
    %612 = vperm.xlu0 %611, %v76
    %v613 = vpop.permute.xlu0 %612
    %v615 = vmul.f32 %v591, %v598
    %v616 = vmul.f32 %v592, %v603
    %v617 = vmul.f32 %v593, %v608
    %v618 = vmul.f32 %v594, %v613
    %620 = vset.pattern.permute.xlu0 0
    %621 = vperm.xlu0 %620, %v77
    %v622 = vpop.permute.xlu0 %621
    %625 = vset.pattern.permute.xlu0 0
    %626 = vperm.xlu0 %625, %v78
    %v627 = vpop.permute.xlu0 %626
    %630 = vset.pattern.permute.xlu0 0
    %631 = vperm.xlu0 %630, %v79
    %v632 = vpop.permute.xlu0 %631
    %635 = vset.pattern.permute.xlu0 0
    %636 = vperm.xlu0 %635, %v80
    %v637 = vpop.permute.xlu0 %636
    %v639 = vadd.f32 %v615, %v622
    %v640 = vadd.f32 %v616, %v627
    %v641 = vadd.f32 %v617, %v632
    %v642 = vadd.f32 %v618, %v637
    %v643 = vadd.f32 %v556, %v557
    %v644 = vadd.f32 %v643, %v558
    %v645 = vadd.f32 %v644, %v559
    %v646 = vrot.slane %v645, 4
    %v647 = vadd.f32 %v645, %v646
    %v648 = vrot.slane %v647, 2
    %v649 = vadd.f32 %v647, %v648
    %v650 = vrot.slane %v649, 1
    %v651 = vadd.f32 %v649, %v650
    %v652 = vmul.f32 %v651, %v569
    %v653 = vsub.f32 %v556, %v652
    %v654 = vsub.f32 %v557, %v652
    %v655 = vsub.f32 %v558, %v652
    %v656 = vsub.f32 %v559, %v652
    %v657 = vmul.f32 %v653, %v653
    %v658 = vmul.f32 %v654, %v654
    %v659 = vmul.f32 %v655, %v655
    %v660 = vmul.f32 %v656, %v656
    %v661 = vadd.f32 %v657, %v658
    %v662 = vadd.f32 %v661, %v659
    %v663 = vadd.f32 %v662, %v660
    %v664 = vrot.slane %v663, 4
    %v665 = vadd.f32 %v663, %v664
    %v666 = vrot.slane %v665, 2
    %v667 = vadd.f32 %v665, %v666
    %v668 = vrot.slane %v667, 1
    %v669 = vadd.f32 %v667, %v668
    %v670 = vmul.f32 %v669, %v569
    %v671 = vadd.f32 %v670, 1e-05
    %v672 = vrsqrt.pop %v671
    %v673 = vmul.f32 %v653, %v672
    %v674 = vmul.f32 %v654, %v672
    %v675 = vmul.f32 %v655, %v672
    %v676 = vmul.f32 %v656, %v672
    %v677 = vmul.f32 %v673, %v598
    %v678 = vmul.f32 %v674, %v603
    %v679 = vmul.f32 %v675, %v608
    %v680 = vmul.f32 %v676, %v613
    %v681 = vadd.f32 %v677, %v622
    %v682 = vadd.f32 %v678, %v627
    %v683 = vadd.f32 %v679, %v632
    %v684 = vadd.f32 %v680, %v637
    %686 = vset.pattern.permute.xlu0 0
    %687 = vperm.xlu0 %686, %v81
    %v688 = vpop.permute.xlu0 %687
    %691 = vset.pattern.permute.xlu0 0
    %692 = vperm.xlu0 %691, %v82
    %v693 = vpop.permute.xlu0 %692
    %696 = vset.pattern.permute.xlu0 0
    %697 = vperm.xlu0 %696, %v83
    %v698 = vpop.permute.xlu0 %697
    %701 = vset.pattern.permute.xlu0 0
    %702 = vperm.xlu0 %701, %v84
    %v703 = vpop.permute.xlu0 %702
    %706 = vset.pattern.permute.xlu0 0
    %707 = vperm.xlu0 %706, %v85
    %v708 = vpop.permute.xlu0 %707
    %711 = vset.pattern.permute.xlu0 0
    %712 = vperm.xlu0 %711, %v86
    %v713 = vpop.permute.xlu0 %712
    %716 = vset.pattern.permute.xlu0 0
    %717 = vperm.xlu0 %716, %v87
    %v718 = vpop.permute.xlu0 %717
    %721 = vset.pattern.permute.xlu0 0
    %722 = vperm.xlu0 %721, %v88
    %v723 = vpop.permute.xlu0 %722
    %726 = vset.pattern.permute.xlu0 0
    %727 = vperm.xlu0 %726, %v89
    %v728 = vpop.permute.xlu0 %727
    %731 = vset.pattern.permute.xlu0 0
    %732 = vperm.xlu0 %731, %v90
    %v733 = vpop.permute.xlu0 %732
    %736 = vset.pattern.permute.xlu0 0
    %737 = vperm.xlu0 %736, %v91
    %v738 = vpop.permute.xlu0 %737
    %741 = vset.pattern.permute.xlu0 0
    %742 = vperm.xlu0 %741, %v92
    %v743 = vpop.permute.xlu0 %742
    %746 = vset.pattern.permute.xlu0 0
    %747 = vperm.xlu0 %746, %v93
    %v748 = vpop.permute.xlu0 %747
    %751 = vset.pattern.permute.xlu0 0
    %752 = vperm.xlu0 %751, %v94
    %v753 = vpop.permute.xlu0 %752
    %756 = vset.pattern.permute.xlu0 0
    %757 = vperm.xlu0 %756, %v95
    %v758 = vpop.permute.xlu0 %757
    %761 = vset.pattern.permute.xlu0 0
    %762 = vperm.xlu0 %761, %v96
    %v763 = vpop.permute.xlu0 %762
    %v766 = vsel %vm169, %v41, 0
    %v769 = vsel %vm169, %v42, 0
    %v772 = vsel %vm169, %v43, 0
    %v775 = vsel %vm169, %v44, 0
    %v778 = vsel %vm169, %v45, 0
    %v781 = vsel %vm169, %v46, 0
    %v784 = vsel %vm169, %v47, 0
    %v787 = vsel %vm169, %v48, 0
    %v790 = vsel %vm169, %v49, 0
    %v793 = vsel %vm169, %v50, 0
    %v796 = vsel %vm169, %v51, 0
    %v799 = vsel %vm169, %v52, 0
    %v802 = vsel %vm169, %v53, 0
    %v805 = vsel %vm169, %v54, 0
    %v808 = vsel %vm169, %v55, 0
    %v811 = vsel %vm169, %v56, 0
    %813 = vmatprep.subr.mxu0 0.0
    %814 = vmatpush1.msra.mxu0 0.0
    %815 = vmatprep.subr.mxu0 0.0
    %816 = vmatpush1.msra.mxu0 0.0
    %817 = vmatprep.subr.mxu0 0.0
    %818 = vmatpush1.msra.mxu0 0.0
    %819 = vmatprep.subr.mxu0 0.0
    %820 = vmatpush1.msra.mxu0 0.0
    %821 = vmatprep.subr.mxu0 0.0
    %822 = vmatpush1.msra.mxu0 0.0
    %823 = vmatprep.subr.mxu0 0.0
    %824 = vmatpush1.msra.mxu0 0.0
    %825 = vmatprep.subr.mxu0 0.0
    %826 = vmatpush1.msra.mxu0 0.0
    %827 = vmatprep.subr.mxu0 0.0
    %828 = vmatpush1.msra.mxu0 0.0
    %829 = vmatprep.subr.mxu0 0.0
    %830 = vmatpush1.msra.mxu0 0.0
    %831 = vmatprep.subr.mxu0 0.0
    %832 = vmatpush1.msra.mxu0 0.0
    %833 = vmatprep.subr.mxu0 0.0
    %834 = vmatpush1.msra.mxu0 0.0
    %835 = vmatprep.subr.mxu0 0.0
    %836 = vmatpush1.msra.mxu0 0.0
    %837 = vmatprep.subr.mxu0 0.0
    %838 = vmatpush1.msra.mxu0 %v642
    %839 = vmatprep.subr.mxu0 0.0
    %840 = vmatpush1.msra.mxu0 %v641
    %841 = vmatprep.subr.mxu0 0.0
    %842 = vmatpush1.msra.mxu0 %v640
    %843 = vmatprep.subr.mxu0 0.0
    %844 = vmatpush1.msra.mxu0 %v639
    %845 = vmatprep.subr.mxu0 0.0
    %846 = vmatpush2.msra.mxu0 0.0
    %847 = vmatprep.subr.mxu0 0.0
    %848 = vmatpush2.msra.mxu0 0.0
    %849 = vmatprep.subr.mxu0 0.0
    %850 = vmatpush2.msra.mxu0 0.0
    %851 = vmatprep.subr.mxu0 0.0
    %852 = vmatpush2.msra.mxu0 0.0
    %853 = vmatprep.subr.mxu0 0.0
    %854 = vmatpush2.msra.mxu0 0.0
    %855 = vmatprep.subr.mxu0 0.0
    %856 = vmatpush2.msra.mxu0 0.0
    %857 = vmatprep.subr.mxu0 0.0
    %858 = vmatpush2.msra.mxu0 0.0
    %859 = vmatprep.subr.mxu0 0.0
    %860 = vmatpush2.msra.mxu0 0.0
    %861 = vmatprep.subr.mxu0 0.0
    %862 = vmatpush2.msra.mxu0 0.0
    %863 = vmatprep.subr.mxu0 0.0
    %864 = vmatpush2.msra.mxu0 0.0
    %865 = vmatprep.subr.mxu0 0.0
    %866 = vmatpush2.msra.mxu0 0.0
    %867 = vmatprep.subr.mxu0 0.0
    %868 = vmatpush2.msra.mxu0 0.0
    %869 = vmatprep.subr.mxu0 0.0
    %870 = vmatpush2.msra.mxu0 0.0
    %871 = vmatprep.subr.mxu0 0.0
    %872 = vmatpush2.msra.mxu0 0.0
    %873 = vmatprep.subr.mxu0 0.0
    %874 = vmatpush2.msra.mxu0 0.0
    %875 = vmatprep.subr.mxu0 0.0
    %876 = vmatpush2.msra.mxu0 0.0
    %877 = vmatprep.mubr.f32.mxu0 0.0
    %878 = vmatmul.mubr.f32.gmra.mxu0 %v766
    %v879 = vpop.f32.mrf.mxu0
    %v880 = vadd.f32 %v688, %v879
    %v881 = vpop.f32.mrf.mxu0
    %882 = vmatprep.mubr.f32.mxu0 0.0
    %883 = vmatmul.mubr.f32.gmra.mxu0 %v769
    %v884 = vpop.f32.mrf.mxu0
    %v885 = vadd.f32 %v693, %v884
    %v886 = vpop.f32.mrf.mxu0
    %887 = vmatprep.mubr.f32.mxu0 0.0
    %888 = vmatmul.mubr.f32.gmra.mxu0 %v772
    %v889 = vpop.f32.mrf.mxu0
    %v890 = vadd.f32 %v698, %v889
    %v891 = vpop.f32.mrf.mxu0
    %892 = vmatprep.mubr.f32.mxu0 0.0
    %893 = vmatmul.mubr.f32.gmra.mxu0 %v775
    %v894 = vpop.f32.mrf.mxu0
    %v895 = vadd.f32 %v703, %v894
    %v896 = vpop.f32.mrf.mxu0
    %897 = vmatprep.mubr.f32.mxu0 0.0
    %898 = vmatmul.mubr.f32.gmra.mxu0 %v778
    %v899 = vpop.f32.mrf.mxu0
    %v900 = vadd.f32 %v708, %v899
    %v901 = vpop.f32.mrf.mxu0
    %902 = vmatprep.mubr.f32.mxu0 0.0
    %903 = vmatmul.mubr.f32.gmra.mxu0 %v781
    %v904 = vpop.f32.mrf.mxu0
    %v905 = vadd.f32 %v713, %v904
    %v906 = vpop.f32.mrf.mxu0
    %907 = vmatprep.mubr.f32.mxu0 0.0
    %908 = vmatmul.mubr.f32.gmra.mxu0 %v784
    %v909 = vpop.f32.mrf.mxu0
    %v910 = vadd.f32 %v718, %v909
    %v911 = vpop.f32.mrf.mxu0
    %912 = vmatprep.mubr.f32.mxu0 0.0
    %913 = vmatmul.mubr.f32.gmra.mxu0 %v787
    %v914 = vpop.f32.mrf.mxu0
    %v915 = vadd.f32 %v723, %v914
    %v916 = vpop.f32.mrf.mxu0
    %917 = vmatprep.mubr.f32.mxu0 0.0
    %918 = vmatmul.mubr.f32.gmra.mxu0 %v790
    %v919 = vpop.f32.mrf.mxu0
    %v920 = vadd.f32 %v728, %v919
    %v921 = vpop.f32.mrf.mxu0
    %922 = vmatprep.mubr.f32.mxu0 0.0
    %923 = vmatmul.mubr.f32.gmra.mxu0 %v793
    %v924 = vpop.f32.mrf.mxu0
    %v925 = vadd.f32 %v733, %v924
    %v926 = vpop.f32.mrf.mxu0
    %927 = vmatprep.mubr.f32.mxu0 0.0
    %928 = vmatmul.mubr.f32.gmra.mxu0 %v796
    %v929 = vpop.f32.mrf.mxu0
    %v930 = vadd.f32 %v738, %v929
    %v931 = vpop.f32.mrf.mxu0
    %932 = vmatprep.mubr.f32.mxu0 0.0
    %933 = vmatmul.mubr.f32.gmra.mxu0 %v799
    %v934 = vpop.f32.mrf.mxu0
    %v935 = vadd.f32 %v743, %v934
    %v936 = vpop.f32.mrf.mxu0
    %937 = vmatprep.mubr.f32.mxu0 0.0
    %938 = vmatmul.mubr.f32.gmra.mxu0 %v802
    %v939 = vpop.f32.mrf.mxu0
    %v940 = vadd.f32 %v748, %v939
    %v941 = vpop.f32.mrf.mxu0
    %942 = vmatprep.mubr.f32.mxu0 0.0
    %943 = vmatmul.mubr.f32.gmra.mxu0 %v805
    %v944 = vpop.f32.mrf.mxu0
    %v945 = vadd.f32 %v753, %v944
    %v946 = vpop.f32.mrf.mxu0
    %947 = vmatprep.mubr.f32.mxu0 0.0
    %948 = vmatmul.mubr.f32.gmra.mxu0 %v808
    %v949 = vpop.f32.mrf.mxu0
    %v950 = vadd.f32 %v758, %v949
    %v951 = vpop.f32.mrf.mxu0
    %952 = vmatprep.mubr.f32.mxu0 0.0
    %953 = vmatmul.mubr.f32.gmra.mxu0 %v811
    %v954 = vpop.f32.mrf.mxu0
    %v955 = vadd.f32 %v763, %v954
    %v956 = vpop.f32.mrf.mxu0
    %957 = vdwg.mxu0
    %958 = vmatprep.subr.mxu0 0.0
    %959 = vmatpush1.msra.mxu0 0.0
    %960 = vmatprep.subr.mxu0 0.0
    %961 = vmatpush1.msra.mxu0 0.0
    %962 = vmatprep.subr.mxu0 0.0
    %963 = vmatpush1.msra.mxu0 0.0
    %964 = vmatprep.subr.mxu0 0.0
    %965 = vmatpush1.msra.mxu0 0.0
    %966 = vmatprep.subr.mxu0 0.0
    %967 = vmatpush1.msra.mxu0 0.0
    %968 = vmatprep.subr.mxu0 0.0
    %969 = vmatpush1.msra.mxu0 0.0
    %970 = vmatprep.subr.mxu0 0.0
    %971 = vmatpush1.msra.mxu0 0.0
    %972 = vmatprep.subr.mxu0 0.0
    %973 = vmatpush1.msra.mxu0 0.0
    %974 = vmatprep.subr.mxu0 0.0
    %975 = vmatpush1.msra.mxu0 0.0
    %976 = vmatprep.subr.mxu0 0.0
    %977 = vmatpush1.msra.mxu0 0.0
    %978 = vmatprep.subr.mxu0 0.0
    %979 = vmatpush1.msra.mxu0 0.0
    %980 = vmatprep.subr.mxu0 0.0
    %981 = vmatpush1.msra.mxu0 0.0
    %982 = vmatprep.subr.mxu0 0.0
    %983 = vmatpush1.msra.mxu0 %v684
    %984 = vmatprep.subr.mxu0 0.0
    %985 = vmatpush1.msra.mxu0 %v683
    %986 = vmatprep.subr.mxu0 0.0
    %987 = vmatpush1.msra.mxu0 %v682
    %988 = vmatprep.subr.mxu0 0.0
    %989 = vmatpush1.msra.mxu0 %v681
    %990 = vmatprep.subr.mxu0 0.0
    %991 = vmatpush2.msra.mxu0 0.0
    %992 = vmatprep.subr.mxu0 0.0
    %993 = vmatpush2.msra.mxu0 0.0
    %994 = vmatprep.subr.mxu0 0.0
    %995 = vmatpush2.msra.mxu0 0.0
    %996 = vmatprep.subr.mxu0 0.0
    %997 = vmatpush2.msra.mxu0 0.0
    %998 = vmatprep.subr.mxu0 0.0
    %999 = vmatpush2.msra.mxu0 0.0
    %1000 = vmatprep.subr.mxu0 0.0
    %1001 = vmatpush2.msra.mxu0 0.0
    %1002 = vmatprep.subr.mxu0 0.0
    %1003 = vmatpush2.msra.mxu0 0.0
    %1004 = vmatprep.subr.mxu0 0.0
    %1005 = vmatpush2.msra.mxu0 0.0
    %1006 = vmatprep.subr.mxu0 0.0
    %1007 = vmatpush2.msra.mxu0 0.0
    %1008 = vmatprep.subr.mxu0 0.0
    %1009 = vmatpush2.msra.mxu0 0.0
    %1010 = vmatprep.subr.mxu0 0.0
    %1011 = vmatpush2.msra.mxu0 0.0
    %1012 = vmatprep.subr.mxu0 0.0
    %1013 = vmatpush2.msra.mxu0 0.0
    %1014 = vmatprep.subr.mxu0 0.0
    %1015 = vmatpush2.msra.mxu0 0.0
    %1016 = vmatprep.subr.mxu0 0.0
    %1017 = vmatpush2.msra.mxu0 0.0
    %1018 = vmatprep.subr.mxu0 0.0
    %1019 = vmatpush2.msra.mxu0 0.0
    %1020 = vmatprep.subr.mxu0 0.0
    %1021 = vmatpush2.msra.mxu0 0.0
    %1022 = vmatprep.mubr.f32.mxu0 0.0
    %1023 = vmatmul.mubr.f32.gmra.mxu0 %v766
    %v1024 = vpop.f32.mrf.mxu0
    %v1025 = vadd.f32 %v688, %v1024
    %v1026 = vpop.f32.mrf.mxu0
    %1027 = vmatprep.mubr.f32.mxu0 0.0
    %1028 = vmatmul.mubr.f32.gmra.mxu0 %v769
    %v1029 = vpop.f32.mrf.mxu0
    %v1030 = vadd.f32 %v693, %v1029
    %v1031 = vpop.f32.mrf.mxu0
    %1032 = vmatprep.mubr.f32.mxu0 0.0
    %1033 = vmatmul.mubr.f32.gmra.mxu0 %v772
    %v1034 = vpop.f32.mrf.mxu0
    %v1035 = vadd.f32 %v698, %v1034
    %v1036 = vpop.f32.mrf.mxu0
    %1037 = vmatprep.mubr.f32.mxu0 0.0
    %1038 = vmatmul.mubr.f32.gmra.mxu0 %v775
    %v1039 = vpop.f32.mrf.mxu0
    %v1040 = vadd.f32 %v703, %v1039
    %v1041 = vpop.f32.mrf.mxu0
    %1042 = vmatprep.mubr.f32.mxu0 0.0
    %1043 = vmatmul.mubr.f32.gmra.mxu0 %v778
    %v1044 = vpop.f32.mrf.mxu0
    %v1045 = vadd.f32 %v708, %v1044
    %v1046 = vpop.f32.mrf.mxu0
    %1047 = vmatprep.mubr.f32.mxu0 0.0
    %1048 = vmatmul.mubr.f32.gmra.mxu0 %v781
    %v1049 = vpop.f32.mrf.mxu0
    %v1050 = vadd.f32 %v713, %v1049
    %v1051 = vpop.f32.mrf.mxu0
    %1052 = vmatprep.mubr.f32.mxu0 0.0
    %1053 = vmatmul.mubr.f32.gmra.mxu0 %v784
    %v1054 = vpop.f32.mrf.mxu0
    %v1055 = vadd.f32 %v718, %v1054
    %v1056 = vpop.f32.mrf.mxu0
    %1057 = vmatprep.mubr.f32.mxu0 0.0
    %1058 = vmatmul.mubr.f32.gmra.mxu0 %v787
    %v1059 = vpop.f32.mrf.mxu0
    %v1060 = vadd.f32 %v723, %v1059
    %v1061 = vpop.f32.mrf.mxu0
    %1062 = vmatprep.mubr.f32.mxu0 0.0
    %1063 = vmatmul.mubr.f32.gmra.mxu0 %v790
    %v1064 = vpop.f32.mrf.mxu0
    %v1065 = vadd.f32 %v728, %v1064
    %v1066 = vpop.f32.mrf.mxu0
    %1067 = vmatprep.mubr.f32.mxu0 0.0
    %1068 = vmatmul.mubr.f32.gmra.mxu0 %v793
    %v1069 = vpop.f32.mrf.mxu0
    %v1070 = vadd.f32 %v733, %v1069
    %v1071 = vpop.f32.mrf.mxu0
    %1072 = vmatprep.mubr.f32.mxu0 0.0
    %1073 = vmatmul.mubr.f32.gmra.mxu0 %v796
    %v1074 = vpop.f32.mrf.mxu0
    %v1075 = vadd.f32 %v738, %v1074
    %v1076 = vpop.f32.mrf.mxu0
    %1077 = vmatprep.mubr.f32.mxu0 0.0
    %1078 = vmatmul.mubr.f32.gmra.mxu0 %v799
    %v1079 = vpop.f32.mrf.mxu0
    %v1080 = vadd.f32 %v743, %v1079
    %v1081 = vpop.f32.mrf.mxu0
    %1082 = vmatprep.mubr.f32.mxu0 0.0
    %1083 = vmatmul.mubr.f32.gmra.mxu0 %v802
    %v1084 = vpop.f32.mrf.mxu0
    %v1085 = vadd.f32 %v748, %v1084
    %v1086 = vpop.f32.mrf.mxu0
    %1087 = vmatprep.mubr.f32.mxu0 0.0
    %1088 = vmatmul.mubr.f32.gmra.mxu0 %v805
    %v1089 = vpop.f32.mrf.mxu0
    %v1090 = vadd.f32 %v753, %v1089
    %v1091 = vpop.f32.mrf.mxu0
    %1092 = vmatprep.mubr.f32.mxu0 0.0
    %1093 = vmatmul.mubr.f32.gmra.mxu0 %v808
    %v1094 = vpop.f32.mrf.mxu0
    %v1095 = vadd.f32 %v758, %v1094
    %v1096 = vpop.f32.mrf.mxu0
    %1097 = vmatprep.mubr.f32.mxu0 0.0
    %1098 = vmatmul.mubr.f32.gmra.mxu0 %v811
    %v1099 = vpop.f32.mrf.mxu0
    %v1100 = vadd.f32 %v763, %v1099
    %v1101 = vpop.f32.mrf.mxu0
    %1102 = vdwg.mxu0
    %1104 = vset.pattern.permute.xlu0 0
    %1105 = vperm.xlu0 %1104, %v97
    %v1106 = vpop.permute.xlu0 %1105
    %1109 = vset.pattern.permute.xlu0 0
    %1110 = vperm.xlu0 %1109, %v98
    %v1111 = vpop.permute.xlu0 %1110
    %1114 = vset.pattern.permute.xlu0 0
    %1115 = vperm.xlu0 %1114, %v99
    %v1116 = vpop.permute.xlu0 %1115
    %1119 = vset.pattern.permute.xlu0 0
    %1120 = vperm.xlu0 %1119, %v100
    %v1121 = vpop.permute.xlu0 %1120
    %1123 = vmatprep.subr.mxu0 0.0
    %1124 = vmatpush1.msra.mxu0 %v955
    %1125 = vmatprep.subr.mxu0 0.0
    %1126 = vmatpush1.msra.mxu0 %v950
    %1127 = vmatprep.subr.mxu0 0.0
    %1128 = vmatpush1.msra.mxu0 %v945
    %1129 = vmatprep.subr.mxu0 0.0
    %1130 = vmatpush1.msra.mxu0 %v940
    %1131 = vmatprep.subr.mxu0 0.0
    %1132 = vmatpush1.msra.mxu0 %v935
    %1133 = vmatprep.subr.mxu0 0.0
    %1134 = vmatpush1.msra.mxu0 %v930
    %1135 = vmatprep.subr.mxu0 0.0
    %1136 = vmatpush1.msra.mxu0 %v925
    %1137 = vmatprep.subr.mxu0 0.0
    %1138 = vmatpush1.msra.mxu0 %v920
    %1139 = vmatprep.subr.mxu0 0.0
    %1140 = vmatpush1.msra.mxu0 %v915
    %1141 = vmatprep.subr.mxu0 0.0
    %1142 = vmatpush1.msra.mxu0 %v910
    %1143 = vmatprep.subr.mxu0 0.0
    %1144 = vmatpush1.msra.mxu0 %v905
    %1145 = vmatprep.subr.mxu0 0.0
    %1146 = vmatpush1.msra.mxu0 %v900
    %1147 = vmatprep.subr.mxu0 0.0
    %1148 = vmatpush1.msra.mxu0 %v895
    %1149 = vmatprep.subr.mxu0 0.0
    %1150 = vmatpush1.msra.mxu0 %v890
    %1151 = vmatprep.subr.mxu0 0.0
    %1152 = vmatpush1.msra.mxu0 %v885
    %1153 = vmatprep.subr.mxu0 0.0
    %1154 = vmatpush1.msra.mxu0 %v880
    %1155 = vmatprep.subr.mxu0 0.0
    %1156 = vmatpush2.msra.mxu0 0.0
    %1157 = vmatprep.subr.mxu0 0.0
    %1158 = vmatpush2.msra.mxu0 0.0
    %1159 = vmatprep.subr.mxu0 0.0
    %1160 = vmatpush2.msra.mxu0 0.0
    %1161 = vmatprep.subr.mxu0 0.0
    %1162 = vmatpush2.msra.mxu0 0.0
    %1163 = vmatprep.subr.mxu0 0.0
    %1164 = vmatpush2.msra.mxu0 0.0
    %1165 = vmatprep.subr.mxu0 0.0
    %1166 = vmatpush2.msra.mxu0 0.0
    %1167 = vmatprep.subr.mxu0 0.0
    %1168 = vmatpush2.msra.mxu0 0.0
    %1169 = vmatprep.subr.mxu0 0.0
    %1170 = vmatpush2.msra.mxu0 0.0
    %1171 = vmatprep.subr.mxu0 0.0
    %1172 = vmatpush2.msra.mxu0 0.0
    %1173 = vmatprep.subr.mxu0 0.0
    %1174 = vmatpush2.msra.mxu0 0.0
    %1175 = vmatprep.subr.mxu0 0.0
    %1176 = vmatpush2.msra.mxu0 0.0
    %1177 = vmatprep.subr.mxu0 0.0
    %1178 = vmatpush2.msra.mxu0 0.0
    %1179 = vmatprep.subr.mxu0 0.0
    %1180 = vmatpush2.msra.mxu0 0.0
    %1181 = vmatprep.subr.mxu0 0.0
    %1182 = vmatpush2.msra.mxu0 0.0
    %1183 = vmatprep.subr.mxu0 0.0
    %1184 = vmatpush2.msra.mxu0 0.0
    %1185 = vmatprep.subr.mxu0 0.0
    %1186 = vmatpush2.msra.mxu0 0.0
    %1187 = vmatprep.mubr.f32.mxu0 0.0
    %1188 = vmatmul.mubr.f32.gmra.mxu0 %v57
    %v1189 = vpop.f32.mrf.mxu0
    %v1190 = vadd.f32 %v1106, %v1189
    %v1191 = vpop.f32.mrf.mxu0
    %1192 = vmatprep.mubr.f32.mxu0 0.0
    %1193 = vmatmul.mubr.f32.gmra.mxu0 %v58
    %v1194 = vpop.f32.mrf.mxu0
    %v1195 = vadd.f32 %v1111, %v1194
    %v1196 = vpop.f32.mrf.mxu0
    %1197 = vmatprep.mubr.f32.mxu0 0.0
    %1198 = vmatmul.mubr.f32.gmra.mxu0 %v59
    %v1199 = vpop.f32.mrf.mxu0
    %v1200 = vadd.f32 %v1116, %v1199
    %v1201 = vpop.f32.mrf.mxu0
    %1202 = vmatprep.mubr.f32.mxu0 0.0
    %1203 = vmatmul.mubr.f32.gmra.mxu0 %v60
    %v1204 = vpop.f32.mrf.mxu0
    %v1205 = vadd.f32 %v1121, %v1204
    %v1206 = vpop.f32.mrf.mxu0
    %1207 = vdwg.mxu0
    %1208 = vmatprep.subr.mxu0 0.0
    %1209 = vmatpush1.msra.mxu0 %v1100
    %1210 = vmatprep.subr.mxu0 0.0
    %1211 = vmatpush1.msra.mxu0 %v1095
    %1212 = vmatprep.subr.mxu0 0.0
    %1213 = vmatpush1.msra.mxu0 %v1090
    %1214 = vmatprep.subr.mxu0 0.0
    %1215 = vmatpush1.msra.mxu0 %v1085
    %1216 = vmatprep.subr.mxu0 0.0
    %1217 = vmatpush1.msra.mxu0 %v1080
    %1218 = vmatprep.subr.mxu0 0.0
    %1219 = vmatpush1.msra.mxu0 %v1075
    %1220 = vmatprep.subr.mxu0 0.0
    %1221 = vmatpush1.msra.mxu0 %v1070
    %1222 = vmatprep.subr.mxu0 0.0
    %1223 = vmatpush1.msra.mxu0 %v1065
    %1224 = vmatprep.subr.mxu0 0.0
    %1225 = vmatpush1.msra.mxu0 %v1060
    %1226 = vmatprep.subr.mxu0 0.0
    %1227 = vmatpush1.msra.mxu0 %v1055
    %1228 = vmatprep.subr.mxu0 0.0
    %1229 = vmatpush1.msra.mxu0 %v1050
    %1230 = vmatprep.subr.mxu0 0.0
    %1231 = vmatpush1.msra.mxu0 %v1045
    %1232 = vmatprep.subr.mxu0 0.0
    %1233 = vmatpush1.msra.mxu0 %v1040
    %1234 = vmatprep.subr.mxu0 0.0
    %1235 = vmatpush1.msra.mxu0 %v1035
    %1236 = vmatprep.subr.mxu0 0.0
    %1237 = vmatpush1.msra.mxu0 %v1030
    %1238 = vmatprep.subr.mxu0 0.0
    %1239 = vmatpush1.msra.mxu0 %v1025
    %1240 = vmatprep.subr.mxu0 0.0
    %1241 = vmatpush2.msra.mxu0 0.0
    %1242 = vmatprep.subr.mxu0 0.0
    %1243 = vmatpush2.msra.mxu0 0.0
    %1244 = vmatprep.subr.mxu0 0.0
    %1245 = vmatpush2.msra.mxu0 0.0
    %1246 = vmatprep.subr.mxu0 0.0
    %1247 = vmatpush2.msra.mxu0 0.0
    %1248 = vmatprep.subr.mxu0 0.0
    %1249 = vmatpush2.msra.mxu0 0.0
    %1250 = vmatprep.subr.mxu0 0.0
    %1251 = vmatpush2.msra.mxu0 0.0
    %1252 = vmatprep.subr.mxu0 0.0
    %1253 = vmatpush2.msra.mxu0 0.0
    %1254 = vmatprep.subr.mxu0 0.0
    %1255 = vmatpush2.msra.mxu0 0.0
    %1256 = vmatprep.subr.mxu0 0.0
    %1257 = vmatpush2.msra.mxu0 0.0
    %1258 = vmatprep.subr.mxu0 0.0
    %1259 = vmatpush2.msra.mxu0 0.0
    %1260 = vmatprep.subr.mxu0 0.0
    %1261 = vmatpush2.msra.mxu0 0.0
    %1262 = vmatprep.subr.mxu0 0.0
    %1263 = vmatpush2.msra.mxu0 0.0
    %1264 = vmatprep.subr.mxu0 0.0
    %1265 = vmatpush2.msra.mxu0 0.0
    %1266 = vmatprep.subr.mxu0 0.0
    %1267 = vmatpush2.msra.mxu0 0.0
    %1268 = vmatprep.subr.mxu0 0.0
    %1269 = vmatpush2.msra.mxu0 0.0
    %1270 = vmatprep.subr.mxu0 0.0
    %1271 = vmatpush2.msra.mxu0 0.0
    %1272 = vmatprep.mubr.f32.mxu0 0.0
    %1273 = vmatmul.mubr.f32.gmra.mxu0 %v57
    %v1274 = vpop.f32.mrf.mxu0
    %v1275 = vadd.f32 %v1106, %v1274
    %v1276 = vpop.f32.mrf.mxu0
    %1277 = vmatprep.mubr.f32.mxu0 0.0
    %1278 = vmatmul.mubr.f32.gmra.mxu0 %v58
    %v1279 = vpop.f32.mrf.mxu0
    %v1280 = vadd.f32 %v1111, %v1279
    %v1281 = vpop.f32.mrf.mxu0
    %1282 = vmatprep.mubr.f32.mxu0 0.0
    %1283 = vmatmul.mubr.f32.gmra.mxu0 %v59
    %v1284 = vpop.f32.mrf.mxu0
    %v1285 = vadd.f32 %v1116, %v1284
    %v1286 = vpop.f32.mrf.mxu0
    %1287 = vmatprep.mubr.f32.mxu0 0.0
    %1288 = vmatmul.mubr.f32.gmra.mxu0 %v60
    %v1289 = vpop.f32.mrf.mxu0
    %v1290 = vadd.f32 %v1121, %v1289
    %v1291 = vpop.f32.mrf.mxu0
    %1292 = vdwg.mxu0
    %v1293 = vadd.f32 %v1190, %v1195
    %v1294 = vadd.f32 %v1293, %v1200
    %v1295 = vadd.f32 %v1294, %v1205
    %v1296 = vrot.slane %v1295, 4
    %v1297 = vadd.f32 %v1295, %v1296
    %v1298 = vrot.slane %v1297, 2
    %v1299 = vadd.f32 %v1297, %v1298
    %v1300 = vrot.slane %v1299, 1
    %v1301 = vadd.f32 %v1299, %v1300
    %v1302 = vmul.f32 %v1301, %v569
    %v1303 = vsub.f32 %v1190, %v1302
    %v1304 = vsub.f32 %v1195, %v1302
    %v1305 = vsub.f32 %v1200, %v1302
    %v1306 = vsub.f32 %v1205, %v1302
    %v1307 = vmul.f32 %v1303, %v1303
    %v1308 = vmul.f32 %v1304, %v1304
    %v1309 = vmul.f32 %v1305, %v1305
    %v1310 = vmul.f32 %v1306, %v1306
    %v1311 = vadd.f32 %v1307, %v1308
    %v1312 = vadd.f32 %v1311, %v1309
    %v1313 = vadd.f32 %v1312, %v1310
    %v1314 = vrot.slane %v1313, 4
    %v1315 = vadd.f32 %v1313, %v1314
    %v1316 = vrot.slane %v1315, 2
    %v1317 = vadd.f32 %v1315, %v1316
    %v1318 = vrot.slane %v1317, 1
    %v1319 = vadd.f32 %v1317, %v1318
    %v1320 = vmul.f32 %v1319, %v569
    %v1321 = vadd.f32 %v1320, 1e-05
    %v1322 = vrsqrt.pop %v1321
    %v1323 = vmul.f32 %v1303, %v1322
    %v1324 = vmul.f32 %v1304, %v1322
    %v1325 = vmul.f32 %v1305, %v1322
    %v1326 = vmul.f32 %v1306, %v1322
    %1328 = vset.pattern.permute.xlu0 0
    %1329 = vperm.xlu0 %1328, %v101
    %v1330 = vpop.permute.xlu0 %1329
    %1333 = vset.pattern.permute.xlu0 0
    %1334 = vperm.xlu0 %1333, %v102
    %v1335 = vpop.permute.xlu0 %1334
    %1338 = vset.pattern.permute.xlu0 0
    %1339 = vperm.xlu0 %1338, %v103
    %v1340 = vpop.permute.xlu0 %1339
    %1343 = vset.pattern.permute.xlu0 0
    %1344 = vperm.xlu0 %1343, %v104
    %v1345 = vpop.permute.xlu0 %1344
    %v1347 = vmul.f32 %v1323, %v1330
    %v1348 = vmul.f32 %v1324, %v1335
    %v1349 = vmul.f32 %v1325, %v1340
    %v1350 = vmul.f32 %v1326, %v1345
    %1352 = vset.pattern.permute.xlu0 0
    %1353 = vperm.xlu0 %1352, %v105
    %v1354 = vpop.permute.xlu0 %1353
    %1357 = vset.pattern.permute.xlu0 0
    %1358 = vperm.xlu0 %1357, %v106
    %v1359 = vpop.permute.xlu0 %1358
    %1362 = vset.pattern.permute.xlu0 0
    %1363 = vperm.xlu0 %1362, %v107
    %v1364 = vpop.permute.xlu0 %1363
    %1367 = vset.pattern.permute.xlu0 0
    %1368 = vperm.xlu0 %1367, %v108
    %v1369 = vpop.permute.xlu0 %1368
    %v1371 = vadd.f32 %v1347, %v1354
    %v1372 = vadd.f32 %v1348, %v1359
    %v1373 = vadd.f32 %v1349, %v1364
    %v1374 = vadd.f32 %v1350, %v1369
    %v1375 = vadd.f32 %v1275, %v1280
    %v1376 = vadd.f32 %v1375, %v1285
    %v1377 = vadd.f32 %v1376, %v1290
    %v1378 = vrot.slane %v1377, 4
    %v1379 = vadd.f32 %v1377, %v1378
    %v1380 = vrot.slane %v1379, 2
    %v1381 = vadd.f32 %v1379, %v1380
    %v1382 = vrot.slane %v1381, 1
    %v1383 = vadd.f32 %v1381, %v1382
    %v1384 = vmul.f32 %v1383, %v569
    %v1385 = vsub.f32 %v1275, %v1384
    %v1386 = vsub.f32 %v1280, %v1384
    %v1387 = vsub.f32 %v1285, %v1384
    %v1388 = vsub.f32 %v1290, %v1384
    %v1389 = vmul.f32 %v1385, %v1385
    %v1390 = vmul.f32 %v1386, %v1386
    %v1391 = vmul.f32 %v1387, %v1387
    %v1392 = vmul.f32 %v1388, %v1388
    %v1393 = vadd.f32 %v1389, %v1390
    %v1394 = vadd.f32 %v1393, %v1391
    %v1395 = vadd.f32 %v1394, %v1392
    %v1396 = vrot.slane %v1395, 4
    %v1397 = vadd.f32 %v1395, %v1396
    %v1398 = vrot.slane %v1397, 2
    %v1399 = vadd.f32 %v1397, %v1398
    %v1400 = vrot.slane %v1399, 1
    %v1401 = vadd.f32 %v1399, %v1400
    %v1402 = vmul.f32 %v1401, %v569
    %v1403 = vadd.f32 %v1402, 1e-05
    %v1404 = vrsqrt.pop %v1403
    %v1405 = vmul.f32 %v1385, %v1404
    %v1406 = vmul.f32 %v1386, %v1404
    %v1407 = vmul.f32 %v1387, %v1404
    %v1408 = vmul.f32 %v1388, %v1404
    %v1409 = vmul.f32 %v1405, %v1330
    %v1410 = vmul.f32 %v1406, %v1335
    %v1411 = vmul.f32 %v1407, %v1340
    %v1412 = vmul.f32 %v1408, %v1345
    %v1413 = vadd.f32 %v1409, %v1354
    %v1414 = vadd.f32 %v1410, %v1359
    %v1415 = vadd.f32 %v1411, %v1364
    %v1416 = vadd.f32 %v1412, %v1369
    %v1417 = vld [vmem:[%s2 + $0xe0] sm:$0xff]
    %v1418 = vld [vmem:[%s2 + $0xe8] sm:$0xff]
    %v1419 = vld [vmem:[%s2 + $0xf0] sm:$0xff]
    %v1420 = vld [vmem:[%s2 + $0xf8] sm:$0xff]
    %v1421 = vld [vmem:[%s2 + $0x100] sm:$0xff]
    %v1422 = vld [vmem:[%s2 + $0x108] sm:$0xff]
    %v1423 = vld [vmem:[%s2 + $0x110] sm:$0xff]
    %v1424 = vld [vmem:[%s2 + $0x118] sm:$0xff]
    %v1425 = vld [vmem:[%s2 + $0x120] sm:$0xff]
    %v1426 = vld [vmem:[%s2 + $0x128] sm:$0xff]
    %v1427 = vld [vmem:[%s2 + $0x130] sm:$0xff]
    %v1428 = vld [vmem:[%s2 + $0x138] sm:$0xff]
    %v1429 = vld [vmem:[%s2 + $0x140] sm:$0xff]
    %v1430 = vld [vmem:[%s2 + $0x148] sm:$0xff]
    %v1431 = vld [vmem:[%s2 + $0x150] sm:$0xff]
    %v1432 = vld [vmem:[%s2 + $0x158] sm:$0xff]
    %v1433 = vld [vmem:[%s2 + $0x160] sm:$0xff]
    %v1434 = vld [vmem:[%s2 + $0x168] sm:$0xff]
    %v1435 = vld [vmem:[%s2 + $0x170] sm:$0xff]
    %v1436 = vld [vmem:[%s2 + $0x178] sm:$0xff]
    %v1437 = vld [vmem:[%s2 + $0x180] sm:$0xff]
    %v1438 = vld [vmem:[%s2 + $0x188] sm:$0xff]
    %v1439 = vld [vmem:[%s2 + $0x190] sm:$0xff]
    %v1440 = vld [vmem:[%s2 + $0x198] sm:$0xff]
    %v1441 = vld [vmem:[%s2 + $0x1a0] sm:$0xff]
    %v1442 = vld [vmem:[%s2 + $0x1a8] sm:$0xff]
    %v1443 = vld [vmem:[%s2 + $0x1b0] sm:$0xff]
    %v1444 = vld [vmem:[%s2 + $0x1b8] sm:$0xff]
    %v1445 = vld [vmem:[%s3 + $0x20] sm:$0xff]
    %v1446 = vld [vmem:[%s3 + $0x28] sm:$0xff]
    %v1447 = vld [vmem:[%s3 + $0x30] sm:$0xff]
    %v1448 = vld [vmem:[%s3 + $0x38] sm:$0xff]
    %v1449 = vld [vmem:[%s4 + $0x180] sm:$0xff]
    %v1450 = vld [vmem:[%s4 + $0x188] sm:$0xff]
    %v1451 = vld [vmem:[%s4 + $0x190] sm:$0xff]
    %v1452 = vld [vmem:[%s4 + $0x198] sm:$0xff]
    %v1453 = vld [vmem:[%s4 + $0x1a0] sm:$0xff]
    %v1454 = vld [vmem:[%s4 + $0x1a8] sm:$0xff]
    %v1455 = vld [vmem:[%s4 + $0x1b0] sm:$0xff]
    %v1456 = vld [vmem:[%s4 + $0x1b8] sm:$0xff]
    %v1457 = vld [vmem:[%s4 + $0x1c0] sm:$0xff]
    %v1458 = vld [vmem:[%s4 + $0x1c8] sm:$0xff]
    %v1459 = vld [vmem:[%s4 + $0x1d0] sm:$0xff]
    %v1460 = vld [vmem:[%s4 + $0x1d8] sm:$0xff]
    %v1461 = vld [vmem:[%s4 + $0x1e0] sm:$0xff]
    %v1462 = vld [vmem:[%s4 + $0x1e8] sm:$0xff]
    %v1463 = vld [vmem:[%s4 + $0x1f0] sm:$0xff]
    %v1464 = vld [vmem:[%s4 + $0x1f8] sm:$0xff]
    %v1465 = vld [vmem:[%s4 + $0x200] sm:$0xff]
    %v1466 = vld [vmem:[%s4 + $0x208] sm:$0xff]
    %v1467 = vld [vmem:[%s4 + $0x210] sm:$0xff]
    %v1468 = vld [vmem:[%s4 + $0x218] sm:$0xff]
    %v1469 = vld [vmem:[%s4 + $0x220] sm:$0xff]
    %v1470 = vld [vmem:[%s4 + $0x228] sm:$0xff]
    %v1471 = vld [vmem:[%s4 + $0x230] sm:$0xff]
    %v1472 = vld [vmem:[%s4 + $0x238] sm:$0xff]
    %v1473 = vld [vmem:[%s4 + $0x240] sm:$0xff]
    %v1474 = vld [vmem:[%s4 + $0x248] sm:$0xff]
    %v1475 = vld [vmem:[%s4 + $0x250] sm:$0xff]
    %v1476 = vld [vmem:[%s4 + $0x258] sm:$0xff]
    %v1477 = vld [vmem:[%s4 + $0x260] sm:$0xff]
    %v1478 = vld [vmem:[%s4 + $0x268] sm:$0xff]
    %v1479 = vld [vmem:[%s4 + $0x270] sm:$0xff]
    %v1480 = vld [vmem:[%s4 + $0x278] sm:$0xff]
    %v1481 = vld [vmem:[%s4 + $0x280] sm:$0xff]
    %v1482 = vld [vmem:[%s4 + $0x288] sm:$0xff]
    %v1483 = vld [vmem:[%s4 + $0x290] sm:$0xff]
    %v1484 = vld [vmem:[%s4 + $0x298] sm:$0xff]
    %v1485 = vld [vmem:[%s4 + $0x2a0] sm:$0xff]
    %v1486 = vld [vmem:[%s4 + $0x2a8] sm:$0xff]
    %v1487 = vld [vmem:[%s4 + $0x2b0] sm:$0xff]
    %v1488 = vld [vmem:[%s4 + $0x2b8] sm:$0xff]
    %v1489 = vld [vmem:[%s4 + $0x2c0] sm:$0xff]
    %v1490 = vld [vmem:[%s4 + $0x2c8] sm:$0xff]
    %v1491 = vld [vmem:[%s4 + $0x2d0] sm:$0xff]
    %v1492 = vld [vmem:[%s4 + $0x2d8] sm:$0xff]
    %v1493 = vld [vmem:[%s4 + $0x2e0] sm:$0xff]
    %v1494 = vld [vmem:[%s4 + $0x2e8] sm:$0xff]
    %v1495 = vld [vmem:[%s4 + $0x2f0] sm:$0xff]
    %v1496 = vld [vmem:[%s4 + $0x2f8] sm:$0xff]
    %1498 = vset.pattern.permute.xlu0 0
    %1499 = vperm.xlu0 %1498, %v1449
    %v1500 = vpop.permute.xlu0 %1499
    %1503 = vset.pattern.permute.xlu0 0
    %1504 = vperm.xlu0 %1503, %v1450
    %v1505 = vpop.permute.xlu0 %1504
    %1508 = vset.pattern.permute.xlu0 0
    %1509 = vperm.xlu0 %1508, %v1451
    %v1510 = vpop.permute.xlu0 %1509
    %1513 = vset.pattern.permute.xlu0 0
    %1514 = vperm.xlu0 %1513, %v1452
    %v1515 = vpop.permute.xlu0 %1514
    %1518 = vset.pattern.permute.xlu0 0
    %1519 = vperm.xlu0 %1518, %v1453
    %v1520 = vpop.permute.xlu0 %1519
    %1523 = vset.pattern.permute.xlu0 0
    %1524 = vperm.xlu0 %1523, %v1454
    %v1525 = vpop.permute.xlu0 %1524
    %1528 = vset.pattern.permute.xlu0 0
    %1529 = vperm.xlu0 %1528, %v1455
    %v1530 = vpop.permute.xlu0 %1529
    %1533 = vset.pattern.permute.xlu0 0
    %1534 = vperm.xlu0 %1533, %v1456
    %v1535 = vpop.permute.xlu0 %1534
    %1538 = vset.pattern.permute.xlu0 0
    %1539 = vperm.xlu0 %1538, %v1457
    %v1540 = vpop.permute.xlu0 %1539
    %1543 = vset.pattern.permute.xlu0 0
    %1544 = vperm.xlu0 %1543, %v1458
    %v1545 = vpop.permute.xlu0 %1544
    %1548 = vset.pattern.permute.xlu0 0
    %1549 = vperm.xlu0 %1548, %v1459
    %v1550 = vpop.permute.xlu0 %1549
    %1553 = vset.pattern.permute.xlu0 0
    %1554 = vperm.xlu0 %1553, %v1460
    %v1555 = vpop.permute.xlu0 %1554
    %v1558 = vsel %vm169, %v1417, 0
    %v1561 = vsel %vm169, %v1418, 0
    %v1564 = vsel %vm169, %v1419, 0
    %v1567 = vsel %vm169, %v1420, 0
    %v1570 = vsel %vm169, %v1421, 0
    %v1573 = vsel %vm169, %v1422, 0
    %v1576 = vsel %vm169, %v1423, 0
    %v1579 = vsel %vm169, %v1424, 0
    %v1582 = vsel %vm169, %v1425, 0
    %v1585 = vsel %vm169, %v1426, 0
    %v1588 = vsel %vm169, %v1427, 0
    %v1591 = vsel %vm169, %v1428, 0
    %1593 = vmatprep.subr.mxu0 0.0
    %1594 = vmatpush1.msra.mxu0 0.0
    %1595 = vmatprep.subr.mxu0 0.0
    %1596 = vmatpush1.msra.mxu0 0.0
    %1597 = vmatprep.subr.mxu0 0.0
    %1598 = vmatpush1.msra.mxu0 0.0
    %1599 = vmatprep.subr.mxu0 0.0
    %1600 = vmatpush1.msra.mxu0 0.0
    %1601 = vmatprep.subr.mxu0 0.0
    %1602 = vmatpush1.msra.mxu0 0.0
    %1603 = vmatprep.subr.mxu0 0.0
    %1604 = vmatpush1.msra.mxu0 0.0
    %1605 = vmatprep.subr.mxu0 0.0
    %1606 = vmatpush1.msra.mxu0 0.0
    %1607 = vmatprep.subr.mxu0 0.0
    %1608 = vmatpush1.msra.mxu0 0.0
    %1609 = vmatprep.subr.mxu0 0.0
    %1610 = vmatpush1.msra.mxu0 0.0
    %1611 = vmatprep.subr.mxu0 0.0
    %1612 = vmatpush1.msra.mxu0 0.0
    %1613 = vmatprep.subr.mxu0 0.0
    %1614 = vmatpush1.msra.mxu0 0.0
    %1615 = vmatprep.subr.mxu0 0.0
    %1616 = vmatpush1.msra.mxu0 0.0
    %1617 = vmatprep.subr.mxu0 0.0
    %1618 = vmatpush1.msra.mxu0 %v1374
    %1619 = vmatprep.subr.mxu0 0.0
    %1620 = vmatpush1.msra.mxu0 %v1373
    %1621 = vmatprep.subr.mxu0 0.0
    %1622 = vmatpush1.msra.mxu0 %v1372
    %1623 = vmatprep.subr.mxu0 0.0
    %1624 = vmatpush1.msra.mxu0 %v1371
    %1625 = vmatprep.subr.mxu0 0.0
    %1626 = vmatpush2.msra.mxu0 0.0
    %1627 = vmatprep.subr.mxu0 0.0
    %1628 = vmatpush2.msra.mxu0 0.0
    %1629 = vmatprep.subr.mxu0 0.0
    %1630 = vmatpush2.msra.mxu0 0.0
    %1631 = vmatprep.subr.mxu0 0.0
    %1632 = vmatpush2.msra.mxu0 0.0
    %1633 = vmatprep.subr.mxu0 0.0
    %1634 = vmatpush2.msra.mxu0 0.0
    %1635 = vmatprep.subr.mxu0 0.0
    %1636 = vmatpush2.msra.mxu0 0.0
    %1637 = vmatprep.subr.mxu0 0.0
    %1638 = vmatpush2.msra.mxu0 0.0
    %1639 = vmatprep.subr.mxu0 0.0
    %1640 = vmatpush2.msra.mxu0 0.0
    %1641 = vmatprep.subr.mxu0 0.0
    %1642 = vmatpush2.msra.mxu0 0.0
    %1643 = vmatprep.subr.mxu0 0.0
    %1644 = vmatpush2.msra.mxu0 0.0
    %1645 = vmatprep.subr.mxu0 0.0
    %1646 = vmatpush2.msra.mxu0 0.0
    %1647 = vmatprep.subr.mxu0 0.0
    %1648 = vmatpush2.msra.mxu0 0.0
    %1649 = vmatprep.subr.mxu0 0.0
    %1650 = vmatpush2.msra.mxu0 0.0
    %1651 = vmatprep.subr.mxu0 0.0
    %1652 = vmatpush2.msra.mxu0 0.0
    %1653 = vmatprep.subr.mxu0 0.0
    %1654 = vmatpush2.msra.mxu0 0.0
    %1655 = vmatprep.subr.mxu0 0.0
    %1656 = vmatpush2.msra.mxu0 0.0
    %1657 = vmatprep.mubr.f32.mxu0 0.0
    %1658 = vmatmul.mubr.f32.gmra.mxu0 %v1558
    %v1659 = vpop.f32.mrf.mxu0
    %v1660 = vadd.f32 %v1500, %v1659
    %v1661 = vpop.f32.mrf.mxu0
    %1662 = vmatprep.mubr.f32.mxu0 0.0
    %1663 = vmatmul.mubr.f32.gmra.mxu0 %v1561
    %v1664 = vpop.f32.mrf.mxu0
    %v1665 = vadd.f32 %v1505, %v1664
    %v1666 = vpop.f32.mrf.mxu0
    %1667 = vmatprep.mubr.f32.mxu0 0.0
    %1668 = vmatmul.mubr.f32.gmra.mxu0 %v1564
    %v1669 = vpop.f32.mrf.mxu0
    %v1670 = vadd.f32 %v1510, %v1669
    %v1671 = vpop.f32.mrf.mxu0
    %1672 = vmatprep.mubr.f32.mxu0 0.0
    %1673 = vmatmul.mubr.f32.gmra.mxu0 %v1567
    %v1674 = vpop.f32.mrf.mxu0
    %v1675 = vadd.f32 %v1515, %v1674
    %v1676 = vpop.f32.mrf.mxu0
    %1677 = vmatprep.mubr.f32.mxu0 0.0
    %1678 = vmatmul.mubr.f32.gmra.mxu0 %v1570
    %v1679 = vpop.f32.mrf.mxu0
    %v1680 = vadd.f32 %v1520, %v1679
    %v1681 = vpop.f32.mrf.mxu0
    %1682 = vmatprep.mubr.f32.mxu0 0.0
    %1683 = vmatmul.mubr.f32.gmra.mxu0 %v1573
    %v1684 = vpop.f32.mrf.mxu0
    %v1685 = vadd.f32 %v1525, %v1684
    %v1686 = vpop.f32.mrf.mxu0
    %1687 = vmatprep.mubr.f32.mxu0 0.0
    %1688 = vmatmul.mubr.f32.gmra.mxu0 %v1576
    %v1689 = vpop.f32.mrf.mxu0
    %v1690 = vadd.f32 %v1530, %v1689
    %v1691 = vpop.f32.mrf.mxu0
    %1692 = vmatprep.mubr.f32.mxu0 0.0
    %1693 = vmatmul.mubr.f32.gmra.mxu0 %v1579
    %v1694 = vpop.f32.mrf.mxu0
    %v1695 = vadd.f32 %v1535, %v1694
    %v1696 = vpop.f32.mrf.mxu0
    %1697 = vmatprep.mubr.f32.mxu0 0.0
    %1698 = vmatmul.mubr.f32.gmra.mxu0 %v1582
    %v1699 = vpop.f32.mrf.mxu0
    %v1700 = vadd.f32 %v1540, %v1699
    %v1701 = vpop.f32.mrf.mxu0
    %1702 = vmatprep.mubr.f32.mxu0 0.0
    %1703 = vmatmul.mubr.f32.gmra.mxu0 %v1585
    %v1704 = vpop.f32.mrf.mxu0
    %v1705 = vadd.f32 %v1545, %v1704
    %v1706 = vpop.f32.mrf.mxu0
    %1707 = vmatprep.mubr.f32.mxu0 0.0
    %1708 = vmatmul.mubr.f32.gmra.mxu0 %v1588
    %v1709 = vpop.f32.mrf.mxu0
    %v1710 = vadd.f32 %v1550, %v1709
    %v1711 = vpop.f32.mrf.mxu0
    %1712 = vmatprep.mubr.f32.mxu0 0.0
    %1713 = vmatmul.mubr.f32.gmra.mxu0 %v1591
    %v1714 = vpop.f32.mrf.mxu0
    %v1715 = vadd.f32 %v1555, %v1714
    %v1716 = vpop.f32.mrf.mxu0
    %1717 = vdwg.mxu0
    %1718 = vmatprep.subr.mxu0 0.0
    %1719 = vmatpush1.msra.mxu0 0.0
    %1720 = vmatprep.subr.mxu0 0.0
    %1721 = vmatpush1.msra.mxu0 0.0
    %1722 = vmatprep.subr.mxu0 0.0
    %1723 = vmatpush1.msra.mxu0 0.0
    %1724 = vmatprep.subr.mxu0 0.0
    %1725 = vmatpush1.msra.mxu0 0.0
    %1726 = vmatprep.subr.mxu0 0.0
    %1727 = vmatpush1.msra.mxu0 0.0
    %1728 = vmatprep.subr.mxu0 0.0
    %1729 = vmatpush1.msra.mxu0 0.0
    %1730 = vmatprep.subr.mxu0 0.0
    %1731 = vmatpush1.msra.mxu0 0.0
    %1732 = vmatprep.subr.mxu0 0.0
    %1733 = vmatpush1.msra.mxu0 0.0
    %1734 = vmatprep.subr.mxu0 0.0
    %1735 = vmatpush1.msra.mxu0 0.0
    %1736 = vmatprep.subr.mxu0 0.0
    %1737 = vmatpush1.msra.mxu0 0.0
    %1738 = vmatprep.subr.mxu0 0.0
    %1739 = vmatpush1.msra.mxu0 0.0
    %1740 = vmatprep.subr.mxu0 0.0
    %1741 = vmatpush1.msra.mxu0 0.0
    %1742 = vmatprep.subr.mxu0 0.0
    %1743 = vmatpush1.msra.mxu0 %v1416
    %1744 = vmatprep.subr.mxu0 0.0
    %1745 = vmatpush1.msra.mxu0 %v1415
    %1746 = vmatprep.subr.mxu0 0.0
    %1747 = vmatpush1.msra.mxu0 %v1414
    %1748 = vmatprep.subr.mxu0 0.0
    %1749 = vmatpush1.msra.mxu0 %v1413
    %1750 = vmatprep.subr.mxu0 0.0
    %1751 = vmatpush2.msra.mxu0 0.0
    %1752 = vmatprep.subr.mxu0 0.0
    %1753 = vmatpush2.msra.mxu0 0.0
    %1754 = vmatprep.subr.mxu0 0.0
    %1755 = vmatpush2.msra.mxu0 0.0
    %1756 = vmatprep.subr.mxu0 0.0
    %1757 = vmatpush2.msra.mxu0 0.0
    %1758 = vmatprep.subr.mxu0 0.0
    %1759 = vmatpush2.msra.mxu0 0.0
    %1760 = vmatprep.subr.mxu0 0.0
    %1761 = vmatpush2.msra.mxu0 0.0
    %1762 = vmatprep.subr.mxu0 0.0
    %1763 = vmatpush2.msra.mxu0 0.0
    %1764 = vmatprep.subr.mxu0 0.0
    %1765 = vmatpush2.msra.mxu0 0.0
    %1766 = vmatprep.subr.mxu0 0.0
    %1767 = vmatpush2.msra.mxu0 0.0
    %1768 = vmatprep.subr.mxu0 0.0
    %1769 = vmatpush2.msra.mxu0 0.0
    %1770 = vmatprep.subr.mxu0 0.0
    %1771 = vmatpush2.msra.mxu0 0.0
    %1772 = vmatprep.subr.mxu0 0.0
    %1773 = vmatpush2.msra.mxu0 0.0
    %1774 = vmatprep.subr.mxu0 0.0
    %1775 = vmatpush2.msra.mxu0 0.0
    %1776 = vmatprep.subr.mxu0 0.0
    %1777 = vmatpush2.msra.mxu0 0.0
    %1778 = vmatprep.subr.mxu0 0.0
    %1779 = vmatpush2.msra.mxu0 0.0
    %1780 = vmatprep.subr.mxu0 0.0
    %1781 = vmatpush2.msra.mxu0 0.0
    %1782 = vmatprep.mubr.f32.mxu0 0.0
    %1783 = vmatmul.mubr.f32.gmra.mxu0 %v1558
    %v1784 = vpop.f32.mrf.mxu0
    %v1785 = vadd.f32 %v1500, %v1784
    %v1786 = vpop.f32.mrf.mxu0
    %1787 = vmatprep.mubr.f32.mxu0 0.0
    %1788 = vmatmul.mubr.f32.gmra.mxu0 %v1561
    %v1789 = vpop.f32.mrf.mxu0
    %v1790 = vadd.f32 %v1505, %v1789
    %v1791 = vpop.f32.mrf.mxu0
    %1792 = vmatprep.mubr.f32.mxu0 0.0
    %1793 = vmatmul.mubr.f32.gmra.mxu0 %v1564
    %v1794 = vpop.f32.mrf.mxu0
    %v1795 = vadd.f32 %v1510, %v1794
    %v1796 = vpop.f32.mrf.mxu0
    %1797 = vmatprep.mubr.f32.mxu0 0.0
    %1798 = vmatmul.mubr.f32.gmra.mxu0 %v1567
    %v1799 = vpop.f32.mrf.mxu0
    %v1800 = vadd.f32 %v1515, %v1799
    %v1801 = vpop.f32.mrf.mxu0
    %1802 = vmatprep.mubr.f32.mxu0 0.0
    %1803 = vmatmul.mubr.f32.gmra.mxu0 %v1570
    %v1804 = vpop.f32.mrf.mxu0
    %v1805 = vadd.f32 %v1520, %v1804
    %v1806 = vpop.f32.mrf.mxu0
    %1807 = vmatprep.mubr.f32.mxu0 0.0
    %1808 = vmatmul.mubr.f32.gmra.mxu0 %v1573
    %v1809 = vpop.f32.mrf.mxu0
    %v1810 = vadd.f32 %v1525, %v1809
    %v1811 = vpop.f32.mrf.mxu0
    %1812 = vmatprep.mubr.f32.mxu0 0.0
    %1813 = vmatmul.mubr.f32.gmra.mxu0 %v1576
    %v1814 = vpop.f32.mrf.mxu0
    %v1815 = vadd.f32 %v1530, %v1814
    %v1816 = vpop.f32.mrf.mxu0
    %1817 = vmatprep.mubr.f32.mxu0 0.0
    %1818 = vmatmul.mubr.f32.gmra.mxu0 %v1579
    %v1819 = vpop.f32.mrf.mxu0
    %v1820 = vadd.f32 %v1535, %v1819
    %v1821 = vpop.f32.mrf.mxu0
    %1822 = vmatprep.mubr.f32.mxu0 0.0
    %1823 = vmatmul.mubr.f32.gmra.mxu0 %v1582
    %v1824 = vpop.f32.mrf.mxu0
    %v1825 = vadd.f32 %v1540, %v1824
    %v1826 = vpop.f32.mrf.mxu0
    %1827 = vmatprep.mubr.f32.mxu0 0.0
    %1828 = vmatmul.mubr.f32.gmra.mxu0 %v1585
    %v1829 = vpop.f32.mrf.mxu0
    %v1830 = vadd.f32 %v1545, %v1829
    %v1831 = vpop.f32.mrf.mxu0
    %1832 = vmatprep.mubr.f32.mxu0 0.0
    %1833 = vmatmul.mubr.f32.gmra.mxu0 %v1588
    %v1834 = vpop.f32.mrf.mxu0
    %v1835 = vadd.f32 %v1550, %v1834
    %v1836 = vpop.f32.mrf.mxu0
    %1837 = vmatprep.mubr.f32.mxu0 0.0
    %1838 = vmatmul.mubr.f32.gmra.mxu0 %v1591
    %v1839 = vpop.f32.mrf.mxu0
    %v1840 = vadd.f32 %v1555, %v1839
    %v1841 = vpop.f32.mrf.mxu0
    %1842 = vdwg.mxu0
    %v1843 = vmul.f32 %v1660, %v1680
    %v1844 = vmul.f32 %v1665, %v1685
    %v1845 = vmul.f32 %v1670, %v1690
    %v1846 = vmul.f32 %v1675, %v1695
    %v1847 = vadd.f32 %v1843, %v1844
    %v1848 = vadd.f32 %v1847, %v1845
    %v1849 = vadd.f32 %v1848, %v1846
    %v1850 = vrot.slane %v1849, 4
    %v1851 = vadd.f32 %v1849, %v1850
    %v1852 = vrot.slane %v1851, 2
    %v1853 = vadd.f32 %v1851, %v1852
    %v1854 = vrot.slane %v1853, 1
    %v1855 = vadd.f32 %v1853, %v1854
    %v1856 = vmul.f32 %v1855, 0.17677669
    %v1857 = vmul.f32 %v1660, %v1805
    %v1858 = vmul.f32 %v1665, %v1810
    %v1859 = vmul.f32 %v1670, %v1815
    %v1860 = vmul.f32 %v1675, %v1820
    %v1861 = vadd.f32 %v1857, %v1858
    %v1862 = vadd.f32 %v1861, %v1859
    %v1863 = vadd.f32 %v1862, %v1860
    %v1864 = vrot.slane %v1863, 4
    %v1865 = vadd.f32 %v1863, %v1864
    %v1866 = vrot.slane %v1865, 2
    %v1867 = vadd.f32 %v1865, %v1866
    %v1868 = vrot.slane %v1867, 1
    %v1869 = vadd.f32 %v1867, %v1868
    %v1870 = vmul.f32 %v1869, 0.17677669
    %v1871 = vmul.f32 %v1785, %v1680
    %v1872 = vmul.f32 %v1790, %v1685
    %v1873 = vmul.f32 %v1795, %v1690
    %v1874 = vmul.f32 %v1800, %v1695
    %v1875 = vadd.f32 %v1871, %v1872
    %v1876 = vadd.f32 %v1875, %v1873
    %v1877 = vadd.f32 %v1876, %v1874
    %v1878 = vrot.slane %v1877, 4
    %v1879 = vadd.f32 %v1877, %v1878
    %v1880 = vrot.slane %v1879, 2
    %v1881 = vadd.f32 %v1879, %v1880
    %v1882 = vrot.slane %v1881, 1
    %v1883 = vadd.f32 %v1881, %v1882
    %v1884 = vmul.f32 %v1883, 0.17677669
    %v1885 = vmul.f32 %v1785, %v1805
    %v1886 = vmul.f32 %v1790, %v1810
    %v1887 = vmul.f32 %v1795, %v1815
    %v1888 = vmul.f32 %v1800, %v1820
    %v1889 = vadd.f32 %v1885, %v1886
    %v1890 = vadd.f32 %v1889, %v1887
    %v1891 = vadd.f32 %v1890, %v1888
    %v1892 = vrot.slane %v1891, 4
    %v1893 = vadd.f32 %v1891, %v1892
    %v1894 = vrot.slane %v1893, 2
    %v1895 = vadd.f32 %v1893, %v1894
    %v1896 = vrot.slane %v1895, 1
    %v1897 = vadd.f32 %v1895, %v1896
    %v1898 = vmul.f32 %v1897, 0.17677669
    %v1899 = vsub.f32 %v1856, %v1870
    %v1900 = vxor.u32 %v1899, 2147483648
    %v1901 = vmul.f32 %v1900, 1.442695
    %v1902 = vpow.pop %v1901
    %v1903 = vadd.f32 %v1902, 1.0
    %v1904 = vrcp.pop %v1903
    %v1905 = vmul.f32 1.0, %v1904
    %v1906 = vsub.f32 %v1884, %v1898
    %v1907 = vxor.u32 %v1906, 2147483648
    %v1908 = vmul.f32 %v1907, 1.442695
    %v1909 = vpow.pop %v1908
    %v1910 = vadd.f32 %v1909, 1.0
    %v1911 = vrcp.pop %v1910
    %v1912 = vmul.f32 1.0, %v1911
    %v1913 = vmul.f32 %v1905, %v1700
    %v1914 = vmul.f32 %v1905, %v1705
    %v1915 = vmul.f32 %v1905, %v1710
    %v1916 = vmul.f32 %v1905, %v1715
    %v1917 = vsub.f32 1.0, %v1905
    %v1918 = vmul.f32 %v1917, %v1825
    %v1919 = vmul.f32 %v1917, %v1830
    %v1920 = vmul.f32 %v1917, %v1835
    %v1921 = vmul.f32 %v1917, %v1840
    %v1922 = vadd.f32 %v1913, %v1918
    %v1923 = vadd.f32 %v1914, %v1919
    %v1924 = vadd.f32 %v1915, %v1920
    %v1925 = vadd.f32 %v1916, %v1921
    %v1926 = vmul.f32 %v1912, %v1700
    %v1927 = vmul.f32 %v1912, %v1705
    %v1928 = vmul.f32 %v1912, %v1710
    %v1929 = vmul.f32 %v1912, %v1715
    %v1930 = vsub.f32 1.0, %v1912
    %v1931 = vmul.f32 %v1930, %v1825
    %v1932 = vmul.f32 %v1930, %v1830
    %v1933 = vmul.f32 %v1930, %v1835
    %v1934 = vmul.f32 %v1930, %v1840
    %v1935 = vadd.f32 %v1926, %v1931
    %v1936 = vadd.f32 %v1927, %v1932
    %v1937 = vadd.f32 %v1928, %v1933
    %v1938 = vadd.f32 %v1929, %v1934
    %v1939 = vadd.f32 %v1371, %v1922
    %v1940 = vadd.f32 %v1372, %v1923
    %v1941 = vadd.f32 %v1373, %v1924
    %v1942 = vadd.f32 %v1374, %v1925
    %v1943 = vadd.f32 %v1413, %v1935
    %v1944 = vadd.f32 %v1414, %v1936
    %v1945 = vadd.f32 %v1415, %v1937
    %v1946 = vadd.f32 %v1416, %v1938
    %v1947 = vadd.f32 %v1939, %v1940
    %v1948 = vadd.f32 %v1947, %v1941
    %v1949 = vadd.f32 %v1948, %v1942
    %v1950 = vrot.slane %v1949, 4
    %v1951 = vadd.f32 %v1949, %v1950
    %v1952 = vrot.slane %v1951, 2
    %v1953 = vadd.f32 %v1951, %v1952
    %v1954 = vrot.slane %v1953, 1
    %v1955 = vadd.f32 %v1953, %v1954
    %v1956 = vmul.f32 %v1955, %v569
    %v1957 = vsub.f32 %v1939, %v1956
    %v1958 = vsub.f32 %v1940, %v1956
    %v1959 = vsub.f32 %v1941, %v1956
    %v1960 = vsub.f32 %v1942, %v1956
    %v1961 = vmul.f32 %v1957, %v1957
    %v1962 = vmul.f32 %v1958, %v1958
    %v1963 = vmul.f32 %v1959, %v1959
    %v1964 = vmul.f32 %v1960, %v1960
    %v1965 = vadd.f32 %v1961, %v1962
    %v1966 = vadd.f32 %v1965, %v1963
    %v1967 = vadd.f32 %v1966, %v1964
    %v1968 = vrot.slane %v1967, 4
    %v1969 = vadd.f32 %v1967, %v1968
    %v1970 = vrot.slane %v1969, 2
    %v1971 = vadd.f32 %v1969, %v1970
    %v1972 = vrot.slane %v1971, 1
    %v1973 = vadd.f32 %v1971, %v1972
    %v1974 = vmul.f32 %v1973, %v569
    %v1975 = vadd.f32 %v1974, 1e-05
    %v1976 = vrsqrt.pop %v1975
    %v1977 = vmul.f32 %v1957, %v1976
    %v1978 = vmul.f32 %v1958, %v1976
    %v1979 = vmul.f32 %v1959, %v1976
    %v1980 = vmul.f32 %v1960, %v1976
    %1982 = vset.pattern.permute.xlu0 0
    %1983 = vperm.xlu0 %1982, %v1461
    %v1984 = vpop.permute.xlu0 %1983
    %1987 = vset.pattern.permute.xlu0 0
    %1988 = vperm.xlu0 %1987, %v1462
    %v1989 = vpop.permute.xlu0 %1988
    %1992 = vset.pattern.permute.xlu0 0
    %1993 = vperm.xlu0 %1992, %v1463
    %v1994 = vpop.permute.xlu0 %1993
    %1997 = vset.pattern.permute.xlu0 0
    %1998 = vperm.xlu0 %1997, %v1464
    %v1999 = vpop.permute.xlu0 %1998
    %v2001 = vmul.f32 %v1977, %v1984
    %v2002 = vmul.f32 %v1978, %v1989
    %v2003 = vmul.f32 %v1979, %v1994
    %v2004 = vmul.f32 %v1980, %v1999
    %2006 = vset.pattern.permute.xlu0 0
    %2007 = vperm.xlu0 %2006, %v1465
    %v2008 = vpop.permute.xlu0 %2007
    %2011 = vset.pattern.permute.xlu0 0
    %2012 = vperm.xlu0 %2011, %v1466
    %v2013 = vpop.permute.xlu0 %2012
    %2016 = vset.pattern.permute.xlu0 0
    %2017 = vperm.xlu0 %2016, %v1467
    %v2018 = vpop.permute.xlu0 %2017
    %2021 = vset.pattern.permute.xlu0 0
    %2022 = vperm.xlu0 %2021, %v1468
    %v2023 = vpop.permute.xlu0 %2022
    %v2025 = vadd.f32 %v2001, %v2008
    %v2026 = vadd.f32 %v2002, %v2013
    %v2027 = vadd.f32 %v2003, %v2018
    %v2028 = vadd.f32 %v2004, %v2023
    %v2029 = vadd.f32 %v1943, %v1944
    %v2030 = vadd.f32 %v2029, %v1945
    %v2031 = vadd.f32 %v2030, %v1946
    %v2032 = vrot.slane %v2031, 4
    %v2033 = vadd.f32 %v2031, %v2032
    %v2034 = vrot.slane %v2033, 2
    %v2035 = vadd.f32 %v2033, %v2034
    %v2036 = vrot.slane %v2035, 1
    %v2037 = vadd.f32 %v2035, %v2036
    %v2038 = vmul.f32 %v2037, %v569
    %v2039 = vsub.f32 %v1943, %v2038
    %v2040 = vsub.f32 %v1944, %v2038
    %v2041 = vsub.f32 %v1945, %v2038
    %v2042 = vsub.f32 %v1946, %v2038
    %v2043 = vmul.f32 %v2039, %v2039
    %v2044 = vmul.f32 %v2040, %v2040
    %v2045 = vmul.f32 %v2041, %v2041
    %v2046 = vmul.f32 %v2042, %v2042
    %v2047 = vadd.f32 %v2043, %v2044
    %v2048 = vadd.f32 %v2047, %v2045
    %v2049 = vadd.f32 %v2048, %v2046
    %v2050 = vrot.slane %v2049, 4
    %v2051 = vadd.f32 %v2049, %v2050
    %v2052 = vrot.slane %v2051, 2
    %v2053 = vadd.f32 %v2051, %v2052
    %v2054 = vrot.slane %v2053, 1
    %v2055 = vadd.f32 %v2053, %v2054
    %v2056 = vmul.f32 %v2055, %v569
    %v2057 = vadd.f32 %v2056, 1e-05
    %v2058 = vrsqrt.pop %v2057
    %v2059 = vmul.f32 %v2039, %v2058
    %v2060 = vmul.f32 %v2040, %v2058
    %v2061 = vmul.f32 %v2041, %v2058
    %v2062 = vmul.f32 %v2042, %v2058
    %v2063 = vmul.f32 %v2059, %v1984
    %v2064 = vmul.f32 %v2060, %v1989
    %v2065 = vmul.f32 %v2061, %v1994
    %v2066 = vmul.f32 %v2062, %v1999
    %v2067 = vadd.f32 %v2063, %v2008
    %v2068 = vadd.f32 %v2064, %v2013
    %v2069 = vadd.f32 %v2065, %v2018
    %v2070 = vadd.f32 %v2066, %v2023
    %2072 = vset.pattern.permute.xlu0 0
    %2073 = vperm.xlu0 %2072, %v1469
    %v2074 = vpop.permute.xlu0 %2073
    %2077 = vset.pattern.permute.xlu0 0
    %2078 = vperm.xlu0 %2077, %v1470
    %v2079 = vpop.permute.xlu0 %2078
    %2082 = vset.pattern.permute.xlu0 0
    %2083 = vperm.xlu0 %2082, %v1471
    %v2084 = vpop.permute.xlu0 %2083
    %2087 = vset.pattern.permute.xlu0 0
    %2088 = vperm.xlu0 %2087, %v1472
    %v2089 = vpop.permute.xlu0 %2088
    %2092 = vset.pattern.permute.xlu0 0
    %2093 = vperm.xlu0 %2092, %v1473
    %v2094 = vpop.permute.xlu0 %2093
    %2097 = vset.pattern.permute.xlu0 0
    %2098 = vperm.xlu0 %2097, %v1474
    %v2099 = vpop.permute.xlu0 %2098
    %2102 = vset.pattern.permute.xlu0 0
    %2103 = vperm.xlu0 %2102, %v1475
    %v2104 = vpop.permute.xlu0 %2103
    %2107 = vset.pattern.permute.xlu0 0
    %2108 = vperm.xlu0 %2107, %v1476
    %v2109 = vpop.permute.xlu0 %2108
    %2112 = vset.pattern.permute.xlu0 0
    %2113 = vperm.xlu0 %2112, %v1477
    %v2114 = vpop.permute.xlu0 %2113
    %2117 = vset.pattern.permute.xlu0 0
    %2118 = vperm.xlu0 %2117, %v1478
    %v2119 = vpop.permute.xlu0 %2118
    %2122 = vset.pattern.permute.xlu0 0
    %2123 = vperm.xlu0 %2122, %v1479
    %v2124 = vpop.permute.xlu0 %2123
    %2127 = vset.pattern.permute.xlu0 0
    %2128 = vperm.xlu0 %2127, %v1480
    %v2129 = vpop.permute.xlu0 %2128
    %2132 = vset.pattern.permute.xlu0 0
    %2133 = vperm.xlu0 %2132, %v1481
    %v2134 = vpop.permute.xlu0 %2133
    %2137 = vset.pattern.permute.xlu0 0
    %2138 = vperm.xlu0 %2137, %v1482
    %v2139 = vpop.permute.xlu0 %2138
    %2142 = vset.pattern.permute.xlu0 0
    %2143 = vperm.xlu0 %2142, %v1483
    %v2144 = vpop.permute.xlu0 %2143
    %2147 = vset.pattern.permute.xlu0 0
    %2148 = vperm.xlu0 %2147, %v1484
    %v2149 = vpop.permute.xlu0 %2148
    %v2152 = vsel %vm169, %v1429, 0
    %v2155 = vsel %vm169, %v1430, 0
    %v2158 = vsel %vm169, %v1431, 0
    %v2161 = vsel %vm169, %v1432, 0
    %v2164 = vsel %vm169, %v1433, 0
    %v2167 = vsel %vm169, %v1434, 0
    %v2170 = vsel %vm169, %v1435, 0
    %v2173 = vsel %vm169, %v1436, 0
    %v2176 = vsel %vm169, %v1437, 0
    %v2179 = vsel %vm169, %v1438, 0
    %v2182 = vsel %vm169, %v1439, 0
    %v2185 = vsel %vm169, %v1440, 0
    %v2188 = vsel %vm169, %v1441, 0
    %v2191 = vsel %vm169, %v1442, 0
    %v2194 = vsel %vm169, %v1443, 0
    %v2197 = vsel %vm169, %v1444, 0
    %2199 = vmatprep.subr.mxu0 0.0
    %2200 = vmatpush1.msra.mxu0 0.0
    %2201 = vmatprep.subr.mxu0 0.0
    %2202 = vmatpush1.msra.mxu0 0.0
    %2203 = vmatprep.subr.mxu0 0.0
    %2204 = vmatpush1.msra.mxu0 0.0
    %2205 = vmatprep.subr.mxu0 0.0
    %2206 = vmatpush1.msra.mxu0 0.0
    %2207 = vmatprep.subr.mxu0 0.0
    %2208 = vmatpush1.msra.mxu0 0.0
    %2209 = vmatprep.subr.mxu0 0.0
    %2210 = vmatpush1.msra.mxu0 0.0
    %2211 = vmatprep.subr.mxu0 0.0
    %2212 = vmatpush1.msra.mxu0 0.0
    %2213 = vmatprep.subr.mxu0 0.0
    %2214 = vmatpush1.msra.mxu0 0.0
    %2215 = vmatprep.subr.mxu0 0.0
    %2216 = vmatpush1.msra.mxu0 0.0
    %2217 = vmatprep.subr.mxu0 0.0
    %2218 = vmatpush1.msra.mxu0 0.0
    %2219 = vmatprep.subr.mxu0 0.0
    %2220 = vmatpush1.msra.mxu0 0.0
    %2221 = vmatprep.subr.mxu0 0.0
    %2222 = vmatpush1.msra.mxu0 0.0
    %2223 = vmatprep.subr.mxu0 0.0
    %2224 = vmatpush1.msra.mxu0 %v2028
    %2225 = vmatprep.subr.mxu0 0.0
    %2226 = vmatpush1.msra.mxu0 %v2027
    %2227 = vmatprep.subr.mxu0 0.0
    %2228 = vmatpush1.msra.mxu0 %v2026
    %2229 = vmatprep.subr.mxu0 0.0
    %2230 = vmatpush1.msra.mxu0 %v2025
    %2231 = vmatprep.subr.mxu0 0.0
    %2232 = vmatpush2.msra.mxu0 0.0
    %2233 = vmatprep.subr.mxu0 0.0
    %2234 = vmatpush2.msra.mxu0 0.0
    %2235 = vmatprep.subr.mxu0 0.0
    %2236 = vmatpush2.msra.mxu0 0.0
    %2237 = vmatprep.subr.mxu0 0.0
    %2238 = vmatpush2.msra.mxu0 0.0
    %2239 = vmatprep.subr.mxu0 0.0
    %2240 = vmatpush2.msra.mxu0 0.0
    %2241 = vmatprep.subr.mxu0 0.0
    %2242 = vmatpush2.msra.mxu0 0.0
    %2243 = vmatprep.subr.mxu0 0.0
    %2244 = vmatpush2.msra.mxu0 0.0
    %2245 = vmatprep.subr.mxu0 0.0
    %2246 = vmatpush2.msra.mxu0 0.0
    %2247 = vmatprep.subr.mxu0 0.0
    %2248 = vmatpush2.msra.mxu0 0.0
    %2249 = vmatprep.subr.mxu0 0.0
    %2250 = vmatpush2.msra.mxu0 0.0
    %2251 = vmatprep.subr.mxu0 0.0
    %2252 = vmatpush2.msra.mxu0 0.0
    %2253 = vmatprep.subr.mxu0 0.0
    %2254 = vmatpush2.msra.mxu0 0.0
    %2255 = vmatprep.subr.mxu0 0.0
    %2256 = vmatpush2.msra.mxu0 0.0
    %2257 = vmatprep.subr.mxu0 0.0
    %2258 = vmatpush2.msra.mxu0 0.0
    %2259 = vmatprep.subr.mxu0 0.0
    %2260 = vmatpush2.msra.mxu0 0.0
    %2261 = vmatprep.subr.mxu0 0.0
    %2262 = vmatpush2.msra.mxu0 0.0
    %2263 = vmatprep.mubr.f32.mxu0 0.0
    %2264 = vmatmul.mubr.f32.gmra.mxu0 %v2152
    %v2265 = vpop.f32.mrf.mxu0
    %v2266 = vadd.f32 %v2074, %v2265
    %v2267 = vpop.f32.mrf.mxu0
    %2268 = vmatprep.mubr.f32.mxu0 0.0
    %2269 = vmatmul.mubr.f32.gmra.mxu0 %v2155
    %v2270 = vpop.f32.mrf.mxu0
    %v2271 = vadd.f32 %v2079, %v2270
    %v2272 = vpop.f32.mrf.mxu0
    %2273 = vmatprep.mubr.f32.mxu0 0.0
    %2274 = vmatmul.mubr.f32.gmra.mxu0 %v2158
    %v2275 = vpop.f32.mrf.mxu0
    %v2276 = vadd.f32 %v2084, %v2275
    %v2277 = vpop.f32.mrf.mxu0
    %2278 = vmatprep.mubr.f32.mxu0 0.0
    %2279 = vmatmul.mubr.f32.gmra.mxu0 %v2161
    %v2280 = vpop.f32.mrf.mxu0
    %v2281 = vadd.f32 %v2089, %v2280
    %v2282 = vpop.f32.mrf.mxu0
    %2283 = vmatprep.mubr.f32.mxu0 0.0
    %2284 = vmatmul.mubr.f32.gmra.mxu0 %v2164
    %v2285 = vpop.f32.mrf.mxu0
    %v2286 = vadd.f32 %v2094, %v2285
    %v2287 = vpop.f32.mrf.mxu0
    %2288 = vmatprep.mubr.f32.mxu0 0.0
    %2289 = vmatmul.mubr.f32.gmra.mxu0 %v2167
    %v2290 = vpop.f32.mrf.mxu0
    %v2291 = vadd.f32 %v2099, %v2290
    %v2292 = vpop.f32.mrf.mxu0
    %2293 = vmatprep.mubr.f32.mxu0 0.0
    %2294 = vmatmul.mubr.f32.gmra.mxu0 %v2170
    %v2295 = vpop.f32.mrf.mxu0
    %v2296 = vadd.f32 %v2104, %v2295
    %v2297 = vpop.f32.mrf.mxu0
    %2298 = vmatprep.mubr.f32.mxu0 0.0
    %2299 = vmatmul.mubr.f32.gmra.mxu0 %v2173
    %v2300 = vpop.f32.mrf.mxu0
    %v2301 = vadd.f32 %v2109, %v2300
    %v2302 = vpop.f32.mrf.mxu0
    %2303 = vmatprep.mubr.f32.mxu0 0.0
    %2304 = vmatmul.mubr.f32.gmra.mxu0 %v2176
    %v2305 = vpop.f32.mrf.mxu0
    %v2306 = vadd.f32 %v2114, %v2305
    %v2307 = vpop.f32.mrf.mxu0
    %2308 = vmatprep.mubr.f32.mxu0 0.0
    %2309 = vmatmul.mubr.f32.gmra.mxu0 %v2179
    %v2310 = vpop.f32.mrf.mxu0
    %v2311 = vadd.f32 %v2119, %v2310
    %v2312 = vpop.f32.mrf.mxu0
    %2313 = vmatprep.mubr.f32.mxu0 0.0
    %2314 = vmatmul.mubr.f32.gmra.mxu0 %v2182
    %v2315 = vpop.f32.mrf.mxu0
    %v2316 = vadd.f32 %v2124, %v2315
    %v2317 = vpop.f32.mrf.mxu0
    %2318 = vmatprep.mubr.f32.mxu0 0.0
    %2319 = vmatmul.mubr.f32.gmra.mxu0 %v2185
    %v2320 = vpop.f32.mrf.mxu0
    %v2321 = vadd.f32 %v2129, %v2320
    %v2322 = vpop.f32.mrf.mxu0
    %2323 = vmatprep.mubr.f32.mxu0 0.0
    %2324 = vmatmul.mubr.f32.gmra.mxu0 %v2188
    %v2325 = vpop.f32.mrf.mxu0
    %v2326 = vadd.f32 %v2134, %v2325
    %v2327 = vpop.f32.mrf.mxu0
    %2328 = vmatprep.mubr.f32.mxu0 0.0
    %2329 = vmatmul.mubr.f32.gmra.mxu0 %v2191
    %v2330 = vpop.f32.mrf.mxu0
    %v2331 = vadd.f32 %v2139, %v2330
    %v2332 = vpop.f32.mrf.mxu0
    %2333 = vmatprep.mubr.f32.mxu0 0.0
    %2334 = vmatmul.mubr.f32.gmra.mxu0 %v2194
    %v2335 = vpop.f32.mrf.mxu0
    %v2336 = vadd.f32 %v2144, %v2335
    %v2337 = vpop.f32.mrf.mxu0
    %2338 = vmatprep.mubr.f32.mxu0 0.0
    %2339 = vmatmul.mubr.f32.gmra.mxu0 %v2197
    %v2340 = vpop.f32.mrf.mxu0
    %v2341 = vadd.f32 %v2149, %v2340
    %v2342 = vpop.f32.mrf.mxu0
    %2343 = vdwg.mxu0
    %2344 = vmatprep.subr.mxu0 0.0
    %2345 = vmatpush1.msra.mxu0 0.0
    %2346 = vmatprep.subr.mxu0 0.0
    %2347 = vmatpush1.msra.mxu0 0.0
    %2348 = vmatprep.subr.mxu0 0.0
    %2349 = vmatpush1.msra.mxu0 0.0
    %2350 = vmatprep.subr.mxu0 0.0
    %2351 = vmatpush1.msra.mxu0 0.0
    %2352 = vmatprep.subr.mxu0 0.0
    %2353 = vmatpush1.msra.mxu0 0.0
    %2354 = vmatprep.subr.mxu0 0.0
    %2355 = vmatpush1.msra.mxu0 0.0
    %2356 = vmatprep.subr.mxu0 0.0
    %2357 = vmatpush1.msra.mxu0 0.0
    %2358 = vmatprep.subr.mxu0 0.0
    %2359 = vmatpush1.msra.mxu0 0.0
    %2360 = vmatprep.subr.mxu0 0.0
    %2361 = vmatpush1.msra.mxu0 0.0
    %2362 = vmatprep.subr.mxu0 0.0
    %2363 = vmatpush1.msra.mxu0 0.0
    %2364 = vmatprep.subr.mxu0 0.0
    %2365 = vmatpush1.msra.mxu0 0.0
    %2366 = vmatprep.subr.mxu0 0.0
    %2367 = vmatpush1.msra.mxu0 0.0
    %2368 = vmatprep.subr.mxu0 0.0
    %2369 = vmatpush1.msra.mxu0 %v2070
    %2370 = vmatprep.subr.mxu0 0.0
    %2371 = vmatpush1.msra.mxu0 %v2069
    %2372 = vmatprep.subr.mxu0 0.0
    %2373 = vmatpush1.msra.mxu0 %v2068
    %2374 = vmatprep.subr.mxu0 0.0
    %2375 = vmatpush1.msra.mxu0 %v2067
    %2376 = vmatprep.subr.mxu0 0.0
    %2377 = vmatpush2.msra.mxu0 0.0
    %2378 = vmatprep.subr.mxu0 0.0
    %2379 = vmatpush2.msra.mxu0 0.0
    %2380 = vmatprep.subr.mxu0 0.0
    %2381 = vmatpush2.msra.mxu0 0.0
    %2382 = vmatprep.subr.mxu0 0.0
    %2383 = vmatpush2.msra.mxu0 0.0
    %2384 = vmatprep.subr.mxu0 0.0
    %2385 = vmatpush2.msra.mxu0 0.0
    %2386 = vmatprep.subr.mxu0 0.0
    %2387 = vmatpush2.msra.mxu0 0.0
    %2388 = vmatprep.subr.mxu0 0.0
    %2389 = vmatpush2.msra.mxu0 0.0
    %2390 = vmatprep.subr.mxu0 0.0
    %2391 = vmatpush2.msra.mxu0 0.0
    %2392 = vmatprep.subr.mxu0 0.0
    %2393 = vmatpush2.msra.mxu0 0.0
    %2394 = vmatprep.subr.mxu0 0.0
    %2395 = vmatpush2.msra.mxu0 0.0
    %2396 = vmatprep.subr.mxu0 0.0
    %2397 = vmatpush2.msra.mxu0 0.0
    %2398 = vmatprep.subr.mxu0 0.0
    %2399 = vmatpush2.msra.mxu0 0.0
    %2400 = vmatprep.subr.mxu0 0.0
    %2401 = vmatpush2.msra.mxu0 0.0
    %2402 = vmatprep.subr.mxu0 0.0
    %2403 = vmatpush2.msra.mxu0 0.0
    %2404 = vmatprep.subr.mxu0 0.0
    %2405 = vmatpush2.msra.mxu0 0.0
    %2406 = vmatprep.subr.mxu0 0.0
    %2407 = vmatpush2.msra.mxu0 0.0
    %2408 = vmatprep.mubr.f32.mxu0 0.0
    %2409 = vmatmul.mubr.f32.gmra.mxu0 %v2152
    %v2410 = vpop.f32.mrf.mxu0
    %v2411 = vadd.f32 %v2074, %v2410
    %v2412 = vpop.f32.mrf.mxu0
    %2413 = vmatprep.mubr.f32.mxu0 0.0
    %2414 = vmatmul.mubr.f32.gmra.mxu0 %v2155
    %v2415 = vpop.f32.mrf.mxu0
    %v2416 = vadd.f32 %v2079, %v2415
    %v2417 = vpop.f32.mrf.mxu0
    %2418 = vmatprep.mubr.f32.mxu0 0.0
    %2419 = vmatmul.mubr.f32.gmra.mxu0 %v2158
    %v2420 = vpop.f32.mrf.mxu0
    %v2421 = vadd.f32 %v2084, %v2420
    %v2422 = vpop.f32.mrf.mxu0
    %2423 = vmatprep.mubr.f32.mxu0 0.0
    %2424 = vmatmul.mubr.f32.gmra.mxu0 %v2161
    %v2425 = vpop.f32.mrf.mxu0
    %v2426 = vadd.f32 %v2089, %v2425
    %v2427 = vpop.f32.mrf.mxu0
    %2428 = vmatprep.mubr.f32.mxu0 0.0
    %2429 = vmatmul.mubr.f32.gmra.mxu0 %v2164
    %v2430 = vpop.f32.mrf.mxu0
    %v2431 = vadd.f32 %v2094, %v2430
    %v2432 = vpop.f32.mrf.mxu0
    %2433 = vmatprep.mubr.f32.mxu0 0.0
    %2434 = vmatmul.mubr.f32.gmra.mxu0 %v2167
    %v2435 = vpop.f32.mrf.mxu0
    %v2436 = vadd.f32 %v2099, %v2435
    %v2437 = vpop.f32.mrf.mxu0
    %2438 = vmatprep.mubr.f32.mxu0 0.0
    %2439 = vmatmul.mubr.f32.gmra.mxu0 %v2170
    %v2440 = vpop.f32.mrf.mxu0
    %v2441 = vadd.f32 %v2104, %v2440
    %v2442 = vpop.f32.mrf.mxu0
    %2443 = vmatprep.mubr.f32.mxu0 0.0
    %2444 = vmatmul.mubr.f32.gmra.mxu0 %v2173
    %v2445 = vpop.f32.mrf.mxu0
    %v2446 = vadd.f32 %v2109, %v2445
    %v2447 = vpop.f32.mrf.mxu0
    %2448 = vmatprep.mubr.f32.mxu0 0.0
    %2449 = vmatmul.mubr.f32.gmra.mxu0 %v2176
    %v2450 = vpop.f32.mrf.mxu0
    %v2451 = vadd.f32 %v2114, %v2450
    %v2452 = vpop.f32.mrf.mxu0
    %2453 = vmatprep.mubr.f32.mxu0 0.0
    %2454 = vmatmul.mubr.f32.gmra.mxu0 %v2179
    %v2455 = vpop.f32.mrf.mxu0
    %v2456 = vadd.f32 %v2119, %v2455
    %v2457 = vpop.f32.mrf.mxu0
    %2458 = vmatprep.mubr.f32.mxu0 0.0
    %2459 = vmatmul.mubr.f32.gmra.mxu0 %v2182
    %v2460 = vpop.f32.mrf.mxu0
    %v2461 = vadd.f32 %v2124, %v2460
    %v2462 = vpop.f32.mrf.mxu0
    %2463 = vmatprep.mubr.f32.mxu0 0.0
    %2464 = vmatmul.mubr.f32.gmra.mxu0 %v2185
    %v2465 = vpop.f32.mrf.mxu0
    %v2466 = vadd.f32 %v2129, %v2465
    %v2467 = vpop.f32.mrf.mxu0
    %2468 = vmatprep.mubr.f32.mxu0 0.0
    %2469 = vmatmul.mubr.f32.gmra.mxu0 %v2188
    %v2470 = vpop.f32.mrf.mxu0
    %v2471 = vadd.f32 %v2134, %v2470
    %v2472 = vpop.f32.mrf.mxu0
    %2473 = vmatprep.mubr.f32.mxu0 0.0
    %2474 = vmatmul.mubr.f32.gmra.mxu0 %v2191
    %v2475 = vpop.f32.mrf.mxu0
    %v2476 = vadd.f32 %v2139, %v2475
    %v2477 = vpop.f32.mrf.mxu0
    %2478 = vmatprep.mubr.f32.mxu0 0.0
    %2479 = vmatmul.mubr.f32.gmra.mxu0 %v2194
    %v2480 = vpop.f32.mrf.mxu0
    %v2481 = vadd.f32 %v2144, %v2480
    %v2482 = vpop.f32.mrf.mxu0
    %2483 = vmatprep.mubr.f32.mxu0 0.0
    %2484 = vmatmul.mubr.f32.gmra.mxu0 %v2197
    %v2485 = vpop.f32.mrf.mxu0
    %v2486 = vadd.f32 %v2149, %v2485
    %v2487 = vpop.f32.mrf.mxu0
    %2488 = vdwg.mxu0
    %2490 = vset.pattern.permute.xlu0 0
    %2491 = vperm.xlu0 %2490, %v1485
    %v2492 = vpop.permute.xlu0 %2491
    %2495 = vset.pattern.permute.xlu0 0
    %2496 = vperm.xlu0 %2495, %v1486
    %v2497 = vpop.permute.xlu0 %2496
    %2500 = vset.pattern.permute.xlu0 0
    %2501 = vperm.xlu0 %2500, %v1487
    %v2502 = vpop.permute.xlu0 %2501
    %2505 = vset.pattern.permute.xlu0 0
    %2506 = vperm.xlu0 %2505, %v1488
    %v2507 = vpop.permute.xlu0 %2506
    %2509 = vmatprep.subr.mxu0 0.0
    %2510 = vmatpush1.msra.mxu0 %v2341
    %2511 = vmatprep.subr.mxu0 0.0
    %2512 = vmatpush1.msra.mxu0 %v2336
    %2513 = vmatprep.subr.mxu0 0.0
    %2514 = vmatpush1.msra.mxu0 %v2331
    %2515 = vmatprep.subr.mxu0 0.0
    %2516 = vmatpush1.msra.mxu0 %v2326
    %2517 = vmatprep.subr.mxu0 0.0
    %2518 = vmatpush1.msra.mxu0 %v2321
    %2519 = vmatprep.subr.mxu0 0.0
    %2520 = vmatpush1.msra.mxu0 %v2316
    %2521 = vmatprep.subr.mxu0 0.0
    %2522 = vmatpush1.msra.mxu0 %v2311
    %2523 = vmatprep.subr.mxu0 0.0
    %2524 = vmatpush1.msra.mxu0 %v2306
    %2525 = vmatprep.subr.mxu0 0.0
    %2526 = vmatpush1.msra.mxu0 %v2301
    %2527 = vmatprep.subr.mxu0 0.0
    %2528 = vmatpush1.msra.mxu0 %v2296
    %2529 = vmatprep.subr.mxu0 0.0
    %2530 = vmatpush1.msra.mxu0 %v2291
    %2531 = vmatprep.subr.mxu0 0.0
    %2532 = vmatpush1.msra.mxu0 %v2286
    %2533 = vmatprep.subr.mxu0 0.0
    %2534 = vmatpush1.msra.mxu0 %v2281
    %2535 = vmatprep.subr.mxu0 0.0
    %2536 = vmatpush1.msra.mxu0 %v2276
    %2537 = vmatprep.subr.mxu0 0.0
    %2538 = vmatpush1.msra.mxu0 %v2271
    %2539 = vmatprep.subr.mxu0 0.0
    %2540 = vmatpush1.msra.mxu0 %v2266
    %2541 = vmatprep.subr.mxu0 0.0
    %2542 = vmatpush2.msra.mxu0 0.0
    %2543 = vmatprep.subr.mxu0 0.0
    %2544 = vmatpush2.msra.mxu0 0.0
    %2545 = vmatprep.subr.mxu0 0.0
    %2546 = vmatpush2.msra.mxu0 0.0
    %2547 = vmatprep.subr.mxu0 0.0
    %2548 = vmatpush2.msra.mxu0 0.0
    %2549 = vmatprep.subr.mxu0 0.0
    %2550 = vmatpush2.msra.mxu0 0.0
    %2551 = vmatprep.subr.mxu0 0.0
    %2552 = vmatpush2.msra.mxu0 0.0
    %2553 = vmatprep.subr.mxu0 0.0
    %2554 = vmatpush2.msra.mxu0 0.0
    %2555 = vmatprep.subr.mxu0 0.0
    %2556 = vmatpush2.msra.mxu0 0.0
    %2557 = vmatprep.subr.mxu0 0.0
    %2558 = vmatpush2.msra.mxu0 0.0
    %2559 = vmatprep.subr.mxu0 0.0
    %2560 = vmatpush2.msra.mxu0 0.0
    %2561 = vmatprep.subr.mxu0 0.0
    %2562 = vmatpush2.msra.mxu0 0.0
    %2563 = vmatprep.subr.mxu0 0.0
    %2564 = vmatpush2.msra.mxu0 0.0
    %2565 = vmatprep.subr.mxu0 0.0
    %2566 = vmatpush2.msra.mxu0 0.0
    %2567 = vmatprep.subr.mxu0 0.0
    %2568 = vmatpush2.msra.mxu0 0.0
    %2569 = vmatprep.subr.mxu0 0.0
    %2570 = vmatpush2.msra.mxu0 0.0
    %2571 = vmatprep.subr.mxu0 0.0
    %2572 = vmatpush2.msra.mxu0 0.0
    %2573 = vmatprep.mubr.f32.mxu0 0.0
    %2574 = vmatmul.mubr.f32.gmra.mxu0 %v1445
    %v2575 = vpop.f32.mrf.mxu0
    %v2576 = vadd.f32 %v2492, %v2575
    %v2577 = vpop.f32.mrf.mxu0
    %2578 = vmatprep.mubr.f32.mxu0 0.0
    %2579 = vmatmul.mubr.f32.gmra.mxu0 %v1446
    %v2580 = vpop.f32.mrf.mxu0
    %v2581 = vadd.f32 %v2497, %v2580
    %v2582 = vpop.f32.mrf.mxu0
    %2583 = vmatprep.mubr.f32.mxu0 0.0
    %2584 = vmatmul.mubr.f32.gmra.mxu0 %v1447
    %v2585 = vpop.f32.mrf.mxu0
    %v2586 = vadd.f32 %v2502, %v2585
    %v2587 = vpop.f32.mrf.mxu0
    %2588 = vmatprep.mubr.f32.mxu0 0.0
    %2589 = vmatmul.mubr.f32.gmra.mxu0 %v1448
    %v2590 = vpop.f32.mrf.mxu0
    %v2591 = vadd.f32 %v2507, %v2590
    %v2592 = vpop.f32.mrf.mxu0
    %2593 = vdwg.mxu0
    %2594 = vmatprep.subr.mxu0 0.0
    %2595 = vmatpush1.msra.mxu0 %v2486
    %2596 = vmatprep.subr.mxu0 0.0
    %2597 = vmatpush1.msra.mxu0 %v2481
    %2598 = vmatprep.subr.mxu0 0.0
    %2599 = vmatpush1.msra.mxu0 %v2476
    %2600 = vmatprep.subr.mxu0 0.0
    %2601 = vmatpush1.msra.mxu0 %v2471
    %2602 = vmatprep.subr.mxu0 0.0
    %2603 = vmatpush1.msra.mxu0 %v2466
    %2604 = vmatprep.subr.mxu0 0.0
    %2605 = vmatpush1.msra.mxu0 %v2461
    %2606 = vmatprep.subr.mxu0 0.0
    %2607 = vmatpush1.msra.mxu0 %v2456
    %2608 = vmatprep.subr.mxu0 0.0
    %2609 = vmatpush1.msra.mxu0 %v2451
    %2610 = vmatprep.subr.mxu0 0.0
    %2611 = vmatpush1.msra.mxu0 %v2446
    %2612 = vmatprep.subr.mxu0 0.0
    %2613 = vmatpush1.msra.mxu0 %v2441
    %2614 = vmatprep.subr.mxu0 0.0
    %2615 = vmatpush1.msra.mxu0 %v2436
    %2616 = vmatprep.subr.mxu0 0.0
    %2617 = vmatpush1.msra.mxu0 %v2431
    %2618 = vmatprep.subr.mxu0 0.0
    %2619 = vmatpush1.msra.mxu0 %v2426
    %2620 = vmatprep.subr.mxu0 0.0
    %2621 = vmatpush1.msra.mxu0 %v2421
    %2622 = vmatprep.subr.mxu0 0.0
    %2623 = vmatpush1.msra.mxu0 %v2416
    %2624 = vmatprep.subr.mxu0 0.0
    %2625 = vmatpush1.msra.mxu0 %v2411
    %2626 = vmatprep.subr.mxu0 0.0
    %2627 = vmatpush2.msra.mxu0 0.0
    %2628 = vmatprep.subr.mxu0 0.0
    %2629 = vmatpush2.msra.mxu0 0.0
    %2630 = vmatprep.subr.mxu0 0.0
    %2631 = vmatpush2.msra.mxu0 0.0
    %2632 = vmatprep.subr.mxu0 0.0
    %2633 = vmatpush2.msra.mxu0 0.0
    %2634 = vmatprep.subr.mxu0 0.0
    %2635 = vmatpush2.msra.mxu0 0.0
    %2636 = vmatprep.subr.mxu0 0.0
    %2637 = vmatpush2.msra.mxu0 0.0
    %2638 = vmatprep.subr.mxu0 0.0
    %2639 = vmatpush2.msra.mxu0 0.0
    %2640 = vmatprep.subr.mxu0 0.0
    %2641 = vmatpush2.msra.mxu0 0.0
    %2642 = vmatprep.subr.mxu0 0.0
    %2643 = vmatpush2.msra.mxu0 0.0
    %2644 = vmatprep.subr.mxu0 0.0
    %2645 = vmatpush2.msra.mxu0 0.0
    %2646 = vmatprep.subr.mxu0 0.0
    %2647 = vmatpush2.msra.mxu0 0.0
    %2648 = vmatprep.subr.mxu0 0.0
    %2649 = vmatpush2.msra.mxu0 0.0
    %2650 = vmatprep.subr.mxu0 0.0
    %2651 = vmatpush2.msra.mxu0 0.0
    %2652 = vmatprep.subr.mxu0 0.0
    %2653 = vmatpush2.msra.mxu0 0.0
    %2654 = vmatprep.subr.mxu0 0.0
    %2655 = vmatpush2.msra.mxu0 0.0
    %2656 = vmatprep.subr.mxu0 0.0
    %2657 = vmatpush2.msra.mxu0 0.0
    %2658 = vmatprep.mubr.f32.mxu0 0.0
    %2659 = vmatmul.mubr.f32.gmra.mxu0 %v1445
    %v2660 = vpop.f32.mrf.mxu0
    %v2661 = vadd.f32 %v2492, %v2660
    %v2662 = vpop.f32.mrf.mxu0
    %2663 = vmatprep.mubr.f32.mxu0 0.0
    %2664 = vmatmul.mubr.f32.gmra.mxu0 %v1446
    %v2665 = vpop.f32.mrf.mxu0
    %v2666 = vadd.f32 %v2497, %v2665
    %v2667 = vpop.f32.mrf.mxu0
    %2668 = vmatprep.mubr.f32.mxu0 0.0
    %2669 = vmatmul.mubr.f32.gmra.mxu0 %v1447
    %v2670 = vpop.f32.mrf.mxu0
    %v2671 = vadd.f32 %v2502, %v2670
    %v2672 = vpop.f32.mrf.mxu0
    %2673 = vmatprep.mubr.f32.mxu0 0.0
    %2674 = vmatmul.mubr.f32.gmra.mxu0 %v1448
    %v2675 = vpop.f32.mrf.mxu0
    %v2676 = vadd.f32 %v2507, %v2675
    %v2677 = vpop.f32.mrf.mxu0
    %2678 = vdwg.mxu0
    %v2679 = vadd.f32 %v2576, %v2581
    %v2680 = vadd.f32 %v2679, %v2586
    %v2681 = vadd.f32 %v2680, %v2591
    %v2682 = vrot.slane %v2681, 4
    %v2683 = vadd.f32 %v2681, %v2682
    %v2684 = vrot.slane %v2683, 2
    %v2685 = vadd.f32 %v2683, %v2684
    %v2686 = vrot.slane %v2685, 1
    %v2687 = vadd.f32 %v2685, %v2686
    %v2688 = vmul.f32 %v2687, %v569
    %v2689 = vsub.f32 %v2576, %v2688
    %v2690 = vsub.f32 %v2581, %v2688
    %v2691 = vsub.f32 %v2586, %v2688
    %v2692 = vsub.f32 %v2591, %v2688
    %v2693 = vmul.f32 %v2689, %v2689
    %v2694 = vmul.f32 %v2690, %v2690
    %v2695 = vmul.f32 %v2691, %v2691
    %v2696 = vmul.f32 %v2692, %v2692
    %v2697 = vadd.f32 %v2693, %v2694
    %v2698 = vadd.f32 %v2697, %v2695
    %v2699 = vadd.f32 %v2698, %v2696
    %v2700 = vrot.slane %v2699, 4
    %v2701 = vadd.f32 %v2699, %v2700
    %v2702 = vrot.slane %v2701, 2
    %v2703 = vadd.f32 %v2701, %v2702
    %v2704 = vrot.slane %v2703, 1
    %v2705 = vadd.f32 %v2703, %v2704
    %v2706 = vmul.f32 %v2705, %v569
    %v2707 = vadd.f32 %v2706, 1e-05
    %v2708 = vrsqrt.pop %v2707
    %v2709 = vmul.f32 %v2689, %v2708
    %v2710 = vmul.f32 %v2690, %v2708
    %v2711 = vmul.f32 %v2691, %v2708
    %v2712 = vmul.f32 %v2692, %v2708
    %2714 = vset.pattern.permute.xlu0 0
    %2715 = vperm.xlu0 %2714, %v1489
    %v2716 = vpop.permute.xlu0 %2715
    %2719 = vset.pattern.permute.xlu0 0
    %2720 = vperm.xlu0 %2719, %v1490
    %v2721 = vpop.permute.xlu0 %2720
    %2724 = vset.pattern.permute.xlu0 0
    %2725 = vperm.xlu0 %2724, %v1491
    %v2726 = vpop.permute.xlu0 %2725
    %2729 = vset.pattern.permute.xlu0 0
    %2730 = vperm.xlu0 %2729, %v1492
    %v2731 = vpop.permute.xlu0 %2730
    %v2733 = vmul.f32 %v2709, %v2716
    %v2734 = vmul.f32 %v2710, %v2721
    %v2735 = vmul.f32 %v2711, %v2726
    %v2736 = vmul.f32 %v2712, %v2731
    %2738 = vset.pattern.permute.xlu0 0
    %2739 = vperm.xlu0 %2738, %v1493
    %v2740 = vpop.permute.xlu0 %2739
    %2743 = vset.pattern.permute.xlu0 0
    %2744 = vperm.xlu0 %2743, %v1494
    %v2745 = vpop.permute.xlu0 %2744
    %2748 = vset.pattern.permute.xlu0 0
    %2749 = vperm.xlu0 %2748, %v1495
    %v2750 = vpop.permute.xlu0 %2749
    %2753 = vset.pattern.permute.xlu0 0
    %2754 = vperm.xlu0 %2753, %v1496
    %v2755 = vpop.permute.xlu0 %2754
    %v2757 = vadd.f32 %v2733, %v2740
    %v2758 = vadd.f32 %v2734, %v2745
    %v2759 = vadd.f32 %v2735, %v2750
    %v2760 = vadd.f32 %v2736, %v2755
    %v2761 = vadd.f32 %v2661, %v2666
    %v2762 = vadd.f32 %v2761, %v2671
    %v2763 = vadd.f32 %v2762, %v2676
    %v2764 = vrot.slane %v2763, 4
    %v2765 = vadd.f32 %v2763, %v2764
    %v2766 = vrot.slane %v2765, 2
    %v2767 = vadd.f32 %v2765, %v2766
    %v2768 = vrot.slane %v2767, 1
    %v2769 = vadd.f32 %v2767, %v2768
    %v2770 = vmul.f32 %v2769, %v569
    %v2771 = vsub.f32 %v2661, %v2770
    %v2772 = vsub.f32 %v2666, %v2770
    %v2773 = vsub.f32 %v2671, %v2770
    %v2774 = vsub.f32 %v2676, %v2770
    %v2775 = vmul.f32 %v2771, %v2771
    %v2776 = vmul.f32 %v2772, %v2772
    %v2777 = vmul.f32 %v2773, %v2773
    %v2778 = vmul.f32 %v2774, %v2774
    %v2779 = vadd.f32 %v2775, %v2776
    %v2780 = vadd.f32 %v2779, %v2777
    %v2781 = vadd.f32 %v2780, %v2778
    %v2782 = vrot.slane %v2781, 4
    %v2783 = vadd.f32 %v2781, %v2782
    %v2784 = vrot.slane %v2783, 2
    %v2785 = vadd.f32 %v2783, %v2784
    %v2786 = vrot.slane %v2785, 1
    %v2787 = vadd.f32 %v2785, %v2786
    %v2788 = vmul.f32 %v2787, %v569
    %v2789 = vadd.f32 %v2788, 1e-05
    %v2790 = vrsqrt.pop %v2789
    %v2791 = vmul.f32 %v2771, %v2790
    %v2792 = vmul.f32 %v2772, %v2790
    %v2793 = vmul.f32 %v2773, %v2790
    %v2794 = vmul.f32 %v2774, %v2790
    %v2795 = vmul.f32 %v2791, %v2716
    %v2796 = vmul.f32 %v2792, %v2721
    %v2797 = vmul.f32 %v2793, %v2726
    %v2798 = vmul.f32 %v2794, %v2731
    %v2799 = vadd.f32 %v2795, %v2740
    %v2800 = vadd.f32 %v2796, %v2745
    %v2801 = vadd.f32 %v2797, %v2750
    %v2802 = vadd.f32 %v2798, %v2755
    %v2803 = vld [vmem:[%s2 + $0x1c0] sm:$0xff]
    %v2804 = vld [vmem:[%s2 + $0x1c8] sm:$0xff]
    %v2805 = vld [vmem:[%s2 + $0x1d0] sm:$0xff]
    %v2806 = vld [vmem:[%s2 + $0x1d8] sm:$0xff]
    %v2807 = vld [vmem:[%s2 + $0x1e0] sm:$0xff]
    %v2808 = vld [vmem:[%s2 + $0x1e8] sm:$0xff]
    %v2809 = vld [vmem:[%s2 + $0x1f0] sm:$0xff]
    %v2810 = vld [vmem:[%s2 + $0x1f8] sm:$0xff]
    %v2811 = vld [vmem:[%s4 + $0x300] sm:$0xff]
    %v2812 = vld [vmem:[%s4 + $0x308] sm:$0xff]
    %v2813 = vld [vmem:[%s4 + $0x310] sm:$0xff]
    %v2814 = vld [vmem:[%s4 + $0x318] sm:$0xff]
    %v2816 = vsel %vm169, %v2807, 0
    %v2819 = vsel %vm169, %v2808, 0
    %v2822 = vsel %vm169, %v2809, 0
    %v2825 = vsel %vm169, %v2810, 0
    %2827 = vmatprep.subr.mxu0 0.0
    %2828 = vmatpush1.msra.mxu0 0.0
    %2829 = vmatprep.subr.mxu0 0.0
    %2830 = vmatpush1.msra.mxu0 0.0
    %2831 = vmatprep.subr.mxu0 0.0
    %2832 = vmatpush1.msra.mxu0 0.0
    %2833 = vmatprep.subr.mxu0 0.0
    %2834 = vmatpush1.msra.mxu0 0.0
    %2835 = vmatprep.subr.mxu0 0.0
    %2836 = vmatpush1.msra.mxu0 0.0
    %2837 = vmatprep.subr.mxu0 0.0
    %2838 = vmatpush1.msra.mxu0 0.0
    %2839 = vmatprep.subr.mxu0 0.0
    %2840 = vmatpush1.msra.mxu0 0.0
    %2841 = vmatprep.subr.mxu0 0.0
    %2842 = vmatpush1.msra.mxu0 0.0
    %2843 = vmatprep.subr.mxu0 0.0
    %2844 = vmatpush1.msra.mxu0 0.0
    %2845 = vmatprep.subr.mxu0 0.0
    %2846 = vmatpush1.msra.mxu0 0.0
    %2847 = vmatprep.subr.mxu0 0.0
    %2848 = vmatpush1.msra.mxu0 0.0
    %2849 = vmatprep.subr.mxu0 0.0
    %2850 = vmatpush1.msra.mxu0 0.0
    %2851 = vmatprep.subr.mxu0 0.0
    %2852 = vmatpush1.msra.mxu0 %v2802
    %2853 = vmatprep.subr.mxu0 0.0
    %2854 = vmatpush1.msra.mxu0 %v2801
    %2855 = vmatprep.subr.mxu0 0.0
    %2856 = vmatpush1.msra.mxu0 %v2800
    %2857 = vmatprep.subr.mxu0 0.0
    %2858 = vmatpush1.msra.mxu0 %v2799
    %2859 = vmatprep.subr.mxu0 0.0
    %2860 = vmatpush2.msra.mxu0 0.0
    %2861 = vmatprep.subr.mxu0 0.0
    %2862 = vmatpush2.msra.mxu0 0.0
    %2863 = vmatprep.subr.mxu0 0.0
    %2864 = vmatpush2.msra.mxu0 0.0
    %2865 = vmatprep.subr.mxu0 0.0
    %2866 = vmatpush2.msra.mxu0 0.0
    %2867 = vmatprep.subr.mxu0 0.0
    %2868 = vmatpush2.msra.mxu0 0.0
    %2869 = vmatprep.subr.mxu0 0.0
    %2870 = vmatpush2.msra.mxu0 0.0
    %2871 = vmatprep.subr.mxu0 0.0
    %2872 = vmatpush2.msra.mxu0 0.0
    %2873 = vmatprep.subr.mxu0 0.0
    %2874 = vmatpush2.msra.mxu0 0.0
    %2875 = vmatprep.subr.mxu0 0.0
    %2876 = vmatpush2.msra.mxu0 0.0
    %2877 = vmatprep.subr.mxu0 0.0
    %2878 = vmatpush2.msra.mxu0 0.0
    %2879 = vmatprep.subr.mxu0 0.0
    %2880 = vmatpush2.msra.mxu0 0.0
    %2881 = vmatprep.subr.mxu0 0.0
    %2882 = vmatpush2.msra.mxu0 0.0
    %2883 = vmatprep.subr.mxu0 0.0
    %2884 = vmatpush2.msra.mxu0 0.0
    %2885 = vmatprep.subr.mxu0 0.0
    %2886 = vmatpush2.msra.mxu0 0.0
    %2887 = vmatprep.subr.mxu0 0.0
    %2888 = vmatpush2.msra.mxu0 0.0
    %2889 = vmatprep.subr.mxu0 0.0
    %2890 = vmatpush2.msra.mxu0 0.0
    %2891 = vmatprep.mubr.f32.mxu0 0.0
    %2892 = vmatmul.mubr.f32.gmra.mxu0 %v2816
    %v2893 = vpop.f32.mrf.mxu0
    %v2894 = vadd.f32 0.0, %v2893
    %v2895 = vpop.f32.mrf.mxu0
    %2896 = vmatprep.mubr.f32.mxu0 0.0
    %2897 = vmatmul.mubr.f32.gmra.mxu0 %v2819
    %v2898 = vpop.f32.mrf.mxu0
    %v2899 = vadd.f32 0.0, %v2898
    %v2900 = vpop.f32.mrf.mxu0
    %2901 = vmatprep.mubr.f32.mxu0 0.0
    %2902 = vmatmul.mubr.f32.gmra.mxu0 %v2822
    %v2903 = vpop.f32.mrf.mxu0
    %v2904 = vadd.f32 0.0, %v2903
    %v2905 = vpop.f32.mrf.mxu0
    %2906 = vmatprep.mubr.f32.mxu0 0.0
    %2907 = vmatmul.mubr.f32.gmra.mxu0 %v2825
    %v2908 = vpop.f32.mrf.mxu0
    %v2909 = vadd.f32 0.0, %v2908
    %v2910 = vpop.f32.mrf.mxu0
    %2911 = vdwg.mxu0
    %v2913 = vsel %vm169, %v2803, 0
    %v2916 = vsel %vm169, %v2804, 0
    %v2919 = vsel %vm169, %v2805, 0
    %v2922 = vsel %vm169, %v2806, 0
    %2924 = vmatprep.subr.mxu0 0.0
    %2925 = vmatpush1.msra.mxu0 0.0
    %2926 = vmatprep.subr.mxu0 0.0
    %2927 = vmatpush1.msra.mxu0 0.0
    %2928 = vmatprep.subr.mxu0 0.0
    %2929 = vmatpush1.msra.mxu0 0.0
    %2930 = vmatprep.subr.mxu0 0.0
    %2931 = vmatpush1.msra.mxu0 0.0
    %2932 = vmatprep.subr.mxu0 0.0
    %2933 = vmatpush1.msra.mxu0 0.0
    %2934 = vmatprep.subr.mxu0 0.0
    %2935 = vmatpush1.msra.mxu0 0.0
    %2936 = vmatprep.subr.mxu0 0.0
    %2937 = vmatpush1.msra.mxu0 0.0
    %2938 = vmatprep.subr.mxu0 0.0
    %2939 = vmatpush1.msra.mxu0 0.0
    %2940 = vmatprep.subr.mxu0 0.0
    %2941 = vmatpush1.msra.mxu0 0.0
    %2942 = vmatprep.subr.mxu0 0.0
    %2943 = vmatpush1.msra.mxu0 0.0
    %2944 = vmatprep.subr.mxu0 0.0
    %2945 = vmatpush1.msra.mxu0 0.0
    %2946 = vmatprep.subr.mxu0 0.0
    %2947 = vmatpush1.msra.mxu0 0.0
    %2948 = vmatprep.subr.mxu0 0.0
    %2949 = vmatpush1.msra.mxu0 %v2760
    %2950 = vmatprep.subr.mxu0 0.0
    %2951 = vmatpush1.msra.mxu0 %v2759
    %2952 = vmatprep.subr.mxu0 0.0
    %2953 = vmatpush1.msra.mxu0 %v2758
    %2954 = vmatprep.subr.mxu0 0.0
    %2955 = vmatpush1.msra.mxu0 %v2757
    %2956 = vmatprep.subr.mxu0 0.0
    %2957 = vmatpush2.msra.mxu0 0.0
    %2958 = vmatprep.subr.mxu0 0.0
    %2959 = vmatpush2.msra.mxu0 0.0
    %2960 = vmatprep.subr.mxu0 0.0
    %2961 = vmatpush2.msra.mxu0 0.0
    %2962 = vmatprep.subr.mxu0 0.0
    %2963 = vmatpush2.msra.mxu0 0.0
    %2964 = vmatprep.subr.mxu0 0.0
    %2965 = vmatpush2.msra.mxu0 0.0
    %2966 = vmatprep.subr.mxu0 0.0
    %2967 = vmatpush2.msra.mxu0 0.0
    %2968 = vmatprep.subr.mxu0 0.0
    %2969 = vmatpush2.msra.mxu0 0.0
    %2970 = vmatprep.subr.mxu0 0.0
    %2971 = vmatpush2.msra.mxu0 0.0
    %2972 = vmatprep.subr.mxu0 0.0
    %2973 = vmatpush2.msra.mxu0 0.0
    %2974 = vmatprep.subr.mxu0 0.0
    %2975 = vmatpush2.msra.mxu0 0.0
    %2976 = vmatprep.subr.mxu0 0.0
    %2977 = vmatpush2.msra.mxu0 0.0
    %2978 = vmatprep.subr.mxu0 0.0
    %2979 = vmatpush2.msra.mxu0 0.0
    %2980 = vmatprep.subr.mxu0 0.0
    %2981 = vmatpush2.msra.mxu0 0.0
    %2982 = vmatprep.subr.mxu0 0.0
    %2983 = vmatpush2.msra.mxu0 0.0
    %2984 = vmatprep.subr.mxu0 0.0
    %2985 = vmatpush2.msra.mxu0 0.0
    %2986 = vmatprep.subr.mxu0 0.0
    %2987 = vmatpush2.msra.mxu0 0.0
    %2988 = vmatprep.mubr.f32.mxu0 0.0
    %2989 = vmatmul.mubr.f32.gmra.mxu0 %v2913
    %v2990 = vpop.f32.mrf.mxu0
    %v2991 = vadd.f32 %v2894, %v2990
    %v2992 = vpop.f32.mrf.mxu0
    %2993 = vmatprep.mubr.f32.mxu0 0.0
    %2994 = vmatmul.mubr.f32.gmra.mxu0 %v2916
    %v2995 = vpop.f32.mrf.mxu0
    %v2996 = vadd.f32 %v2899, %v2995
    %v2997 = vpop.f32.mrf.mxu0
    %2998 = vmatprep.mubr.f32.mxu0 0.0
    %2999 = vmatmul.mubr.f32.gmra.mxu0 %v2919
    %v3000 = vpop.f32.mrf.mxu0
    %v3001 = vadd.f32 %v2904, %v3000
    %v3002 = vpop.f32.mrf.mxu0
    %3003 = vmatprep.mubr.f32.mxu0 0.0
    %3004 = vmatmul.mubr.f32.gmra.mxu0 %v2922
    %v3005 = vpop.f32.mrf.mxu0
    %v3006 = vadd.f32 %v2909, %v3005
    %v3007 = vpop.f32.mrf.mxu0
    %3008 = vdwg.mxu0
    %3010 = vset.pattern.permute.xlu0 0
    %3011 = vperm.xlu0 %3010, %v2811
    %v3012 = vpop.permute.xlu0 %3011
    %3015 = vset.pattern.permute.xlu0 0
    %3016 = vperm.xlu0 %3015, %v2812
    %v3017 = vpop.permute.xlu0 %3016
    %3020 = vset.pattern.permute.xlu0 0
    %3021 = vperm.xlu0 %3020, %v2813
    %v3022 = vpop.permute.xlu0 %3021
    %3025 = vset.pattern.permute.xlu0 0
    %3026 = vperm.xlu0 %3025, %v2814
    %v3027 = vpop.permute.xlu0 %3026
    %v3029 = vadd.f32 %v2991, %v3012
    %v3030 = vadd.f32 %v2996, %v3017
    %v3031 = vadd.f32 %v3001, %v3022
    %v3032 = vadd.f32 %v3006, %v3027
    %vm3033 = vcmp.ge.f32.partialorder %v3029, 0.0
    %vm3034 = vcmp.ge.f32.partialorder %v3030, 0.0
    %vm3035 = vcmp.ge.f32.partialorder %v3031, 0.0
    %vm3036 = vcmp.ge.f32.partialorder %v3032, 0.0
    %v3037 = vmul.f32 %v3029, 0.01
    %v3038 = vmul.f32 %v3030, 0.01
    %v3039 = vmul.f32 %v3031, 0.01
    %v3040 = vmul.f32 %v3032, 0.01
    %v3041 = vsel %vm3033, %v3029, %v3037
    %v3042 = vsel %vm3034, %v3030, %v3038
    %v3043 = vsel %vm3035, %v3031, %v3039
    %v3044 = vsel %vm3036, %v3032, %v3040
    %v3045 = vld [vmem:[%s4 + $0x320] sm:$0xff]
    %v3046 = vld [vmem:[%s4 + $0x328] sm:$0xff]
    %v3047 = vld [vmem:[%s4 + $0x330] sm:$0xff]
    %v3048 = vld [vmem:[%s4 + $0x338] sm:$0xff]
    %v3049 = vld [vmem:[%s4 + $0x340] sm:$0x1]
    %3051 = vset.pattern.permute.xlu0 0
    %3052 = vperm.xlu0 %3051, %v3045
    %v3053 = vpop.permute.xlu0 %3052
    %3056 = vset.pattern.permute.xlu0 0
    %3057 = vperm.xlu0 %3056, %v3046
    %v3058 = vpop.permute.xlu0 %3057
    %3061 = vset.pattern.permute.xlu0 0
    %3062 = vperm.xlu0 %3061, %v3047
    %v3063 = vpop.permute.xlu0 %3062
    %3066 = vset.pattern.permute.xlu0 0
    %3067 = vperm.xlu0 %3066, %v3048
    %v3068 = vpop.permute.xlu0 %3067
    %v3070 = vmul.f32 %v3041, %v3053
    %v3071 = vmul.f32 %v3042, %v3058
    %v3072 = vmul.f32 %v3043, %v3063
    %v3073 = vmul.f32 %v3044, %v3068
    %v3074 = vadd.f32 %v3070, %v3071
    %v3075 = vadd.f32 %v3074, %v3072
    %v3076 = vadd.f32 %v3075, %v3073
    %v3077 = vrot.slane %v3076, 4
    %v3078 = vadd.f32 %v3076, %v3077
    %v3079 = vrot.slane %v3078, 2
    %v3080 = vadd.f32 %v3078, %v3079
    %v3081 = vrot.slane %v3080, 1
    %v3082 = vadd.f32 %v3080, %v3081
    %3084 = vset.pattern.permute.xlu0 0
    %3085 = vperm.xlu0 %3084, %v3049
    %v3086 = vpop.permute.xlu0 %3085
    %v3088 = vadd.f32 %v3082, %v3086
    %v3089 = vlaneseq
    %v3090 = vshrl.u32 %v3089, 7
    %v3091 = vsub.s32 0, %v3090
    %v3092 = vrot.slane %v3088, %v3091
    %3093 = vst [vmem:[#allocation2] sm:$0xff] %v3092
    // Predicated region
    $region22: #{tpu_custom_call.1} parent=1 // pred_check
      _
    $region23: #{tpu_custom_call.1} parent=1 // pred_check_branch
      %3095 = sbr.rel (0) target = $region25
    $region24: #{tpu_custom_call.1} parent=1 // pred_region
      %s3097 = ssub.s32 128, 128
      %3098 = vsyncadd [#allocation3], %s3097
      %s3100 = sshll.u32 [#allocation2], 4
      %s3101 = int_to_ptr.vmem [resolvable:$true] %s3100
      %3103 = dma.vmem_to_hbm [thread:$0]  %s3101, 128, %s5, [#allocation3]
    $region25: #{tpu_custom_call.1} parent=1 // pred_fallthru
      _
    // Predicated region
    $region26: #{tpu_custom_call.1} parent=1 // pred_check
      _
    $region27: #{tpu_custom_call.1} parent=1 // pred_check_branch
      %3105 = sbr.rel (0) target = $region29
    $region28: #{tpu_custom_call.1} parent=1 // pred_region
      %3106 = dma.done [#allocation3], 128
    $region29: #{tpu_custom_call.1} parent=1 // pred_fallthru
      _
    %3107 = vsyncpa [#allocation3], 1

</llo_original>
